<compile_context>
chip_gen: v5e
topology: v5e:2x2
jax: 0.10.0
libtpu: 0.0.40
codegen_flags: <defaults>
</compile_context>

<pallas_src>
import functools

import jax
import jax.numpy as jnp
from jax.experimental import pallas as pl
from jax.experimental.pallas import tpu as pltpu


def _round_up(v, m):
    return (v + m - 1) // m * m


def mps_kernel(xT_ref, expM_ref, mmax_ref, expRow_ref, rmax_ref, col_ref,
               out_ref, *, input_size, alpha_pad, categories):
    L = input_size - 2
    Ap = alpha_pad
    C = categories
    T = xT_ref.shape[1]                                       # lanes in this batch tile

    # ---- initial state: v[a, n] = colstack[x[n, -1]][a]
    # (the z lane has x == C everywhere, so it picks the logsumexp-over-c column)
    x_last = xT_ref[input_size - 1:input_size, :]             # (1, T)
    v = jnp.broadcast_to(col_ref[0], (Ap, T))
    for c in range(1, C + 1):
        v = jnp.where(x_last == c, jnp.broadcast_to(col_ref[c], (Ap, T)), v)

    # ---- serial chain over the L interior positions: one exp-space matmul per step
    for idx in range(L):
        seq = L - idx - 1                  # matrices position  (== -(idx+1))
        pos = input_size - idx - 2         # x position         (== -(idx+2))
        x_row = xT_ref[pos:pos + 1, :]                        # (1, T)

        colmax = jnp.max(v, axis=0, keepdims=True)            # (1, T)
        ev = jnp.exp(v - colmax)                               # (Ap, T)
        prod = jnp.dot(expM_ref[seq], ev,
                       preferred_element_type=jnp.float32)     # ((C+1)*Ap, T)

        # Select the per-lane category block of `prod` (and matching mmax rows)
        # in exp-space, then take log of only that (Ap, T) block (EUP saving).
        sel = prod[0:Ap, :]
        msel = mmax_ref[seq, 0:Ap]                             # (Ap, 1)
        for c in range(1, C + 1):
            m = x_row == c
            sel = jnp.where(m, prod[c * Ap:(c + 1) * Ap, :], sel)
            msel = jnp.where(m, mmax_ref[seq, c * Ap:(c + 1) * Ap], msel)
        # log sel[a,n] + mmax[a] + colmax[n] == logsumexp_b( M[x_n, seq, a, b] + v[b, n] )
        v = jnp.log(sel) + msel + colmax

    # ---- final contraction with the row vectors (again: select, then log)
    colmax = jnp.max(v, axis=0, keepdims=True)
    ev = jnp.exp(v - colmax)
    prod = jnp.dot(expRow_ref[...], ev, preferred_element_type=jnp.float32)  # (Rp, T)

    x_first = xT_ref[0:1, :]
    sel = prod[0:1, :]
    msel = rmax_ref[0:1]
    for c in range(1, C + 1):
        m = x_first == c
        sel = jnp.where(m, prod[c:c + 1, :], sel)
        msel = jnp.where(m, rmax_ref[c:c + 1], msel)
    # log_p_tilde per lane; the z lane carries log_Z
    out_ref[...] = jnp.log(sel) + msel + colmax


def mps_forward(x, matrices, row, column, *, max_lane_tile=1024):
    """Pallas equivalent of MPS.forward: returns (log_prob, matrices)."""
    N, input_size = x.shape
    C, L, A, _ = matrices.shape
    assert L == input_size - 2
    assert row.shape == (C, 1, A) and column.shape == (C, A, 1)

    Ap = _round_up(A, 8)          # bond dim padded to a full sublane tile
    Rp = _round_up(C + 1, 8)      # row-stack M-dim padded for the final matmul

    # ---------- parameter-only precompute (shared by both chains) ----------
    m = jnp.asarray(matrices, jnp.float32)
    Msum = jax.nn.logsumexp(m, axis=0)                                   # (L, A, A)
    Mstack = jnp.concatenate(
        [jnp.transpose(m, (1, 0, 2, 3)).reshape(L, C * A, A), Msum],
        axis=1)                                                          # (L, (C+1)A, A)
    mmax = jnp.max(Mstack, axis=-1, keepdims=True)                       # (L, (C+1)A, 1)
    expM = jnp.exp(Mstack - mmax)
    # pad each A-row block to Ap rows and the contraction dim to Ap (zeros contribute 0)
    expM = jnp.pad(expM.reshape(L, C + 1, A, A),
                   ((0, 0), (0, 0), (0, Ap - A), (0, Ap - A))).reshape(L, (C + 1) * Ap, Ap)
    mmax = jnp.pad(mmax.reshape(L, C + 1, A, 1),
                   ((0, 0), (0, 0), (0, Ap - A), (0, 0))).reshape(L, (C + 1) * Ap, 1)

    r = jnp.asarray(row, jnp.float32)[:, 0, :]                           # (C, A)
    rstack = jnp.concatenate(
        [r, jax.nn.logsumexp(r, axis=0, keepdims=True)], axis=0)         # (C+1, A)
    rmax = jnp.max(rstack, axis=-1, keepdims=True)                       # (C+1, 1)
    expRow = jnp.exp(rstack - rmax)
    expRow = jnp.pad(expRow, ((0, Rp - (C + 1)), (0, Ap - A)))           # (Rp, Ap)
    rmax = jnp.pad(rmax, ((0, Rp - (C + 1)), (0, 0)))                    # (Rp, 1)

    col = jnp.asarray(column, jnp.float32)                               # (C, A, 1)
    colstack = jnp.concatenate(
        [col, jax.nn.logsumexp(col, axis=0, keepdims=True)], axis=0)     # (C+1, A, 1)
    colstack = jnp.pad(colstack, ((0, 0), (0, Ap - A), (0, 0)),
                       constant_values=-1e30)                            # (C+1, Ap, 1)

    # ---------- batch layout: lane-dense tiles; z chain at lane index N ----------
    if N + 1 > max_lane_tile:
        TILE = max_lane_tile
    else:
        TILE = _round_up(N + 1, 128)
    Npad = _round_up(N + 1, TILE)
    num_tiles = Npad // TILE

    xT = jnp.zeros((input_size, Npad), jnp.int32)
    xT = xT.at[:, :N].set(jnp.asarray(x, jnp.int32).T)
    xT = xT.at[:, N].set(C)          # the log_Z lane: virtual category C at every position

    # VMEM budget: parameters resident + double-buffered batch tiles + headroom.
    param_bytes = sum(int(a.size) * a.dtype.itemsize
                      for a in (expM, mmax, expRow, rmax, colstack))
    tile_bytes = (input_size + 1) * TILE * 4
    vmem_limit = int(min(max(2 * (param_bytes + 2 * tile_bytes) + (4 << 20),
                             32 << 20), 120 << 20))

    kernel = functools.partial(mps_kernel, input_size=input_size,
                               alpha_pad=Ap, categories=C)
    out = pl.pallas_call(
        kernel,
        out_shape=jax.ShapeDtypeStruct((1, Npad), jnp.float32),
        grid=(num_tiles,),
        in_specs=[
            pl.BlockSpec((input_size, TILE), lambda i: (0, i)),
            pl.BlockSpec((L, (C + 1) * Ap, Ap), lambda i: (0, 0, 0)),
            pl.BlockSpec((L, (C + 1) * Ap, 1), lambda i: (0, 0, 0)),
            pl.BlockSpec((Rp, Ap), lambda i: (0, 0)),
            pl.BlockSpec((Rp, 1), lambda i: (0, 0)),
            pl.BlockSpec((C + 1, Ap, 1), lambda i: (0, 0, 0)),
        ],
        out_specs=pl.BlockSpec((1, TILE), lambda i: (0, i)),
        compiler_params=pltpu.CompilerParams(
            dimension_semantics=("parallel",),
            vmem_limit_bytes=vmem_limit),
    )(xT, expM, mmax, expRow, rmax, colstack)

    log_p_tilde = out[0, :N]
    log_z = out[0, N]
    return log_p_tilde - log_z, matrices


def mps_reference(x, matrices, row, column):
    """Pure-JAX transcription of the PyTorch log_prob / log_z for validation."""
    x = x.astype(jnp.int32)
    C, L, A, _ = matrices.shape
    v = column[x[:, -1]]                                        # (N, A, 1)
    for idx in range(L):
        M = matrices[x[:, -(idx + 2)], -(idx + 1)]              # (N, A, A)
        v = jax.nn.logsumexp(M + jnp.swapaxes(v, 1, 2), axis=-1, keepdims=True)
    log_p_tilde = jax.nn.logsumexp(row[x[:, 0]] + jnp.swapaxes(v, 1, 2), axis=-1)[:, 0]

    vz = jax.nn.logsumexp(column, axis=0, keepdims=True)        # (1, A, 1)
    for idx in range(L):
        M = matrices[:, -(idx + 1)]                             # (C, A, A)
        vz = jax.nn.logsumexp(
            jax.nn.logsumexp(M + jnp.swapaxes(vz, 1, 2), axis=-1, keepdims=True),
            axis=0, keepdims=True)
    log_z = jax.nn.logsumexp(
        jax.nn.logsumexp(row + jnp.swapaxes(vz, 1, 2), axis=-1), axis=0)[0]
    return log_p_tilde - log_z


if __name__ == "__main__":
    key = jax.random.PRNGKey(0)
    k1, k2, k3, k4 = jax.random.split(key, 4)

    input_size, alpha_dim, categories, batch = 16, 4, 3, 8

    # Deterministic synthetic parameters (same shapes as MPS.__init__).
    matrices = jax.random.normal(
        k1, (categories, input_size - 2, alpha_dim, alpha_dim), jnp.float32)
    row = jax.random.normal(k2, (categories, 1, alpha_dim), jnp.float32)
    column = jax.random.normal(k3, (categories, alpha_dim, 1), jnp.float32)

    # Categorical inputs (the torch module casts to long before indexing).
    x = jax.random.randint(k4, (batch, input_size), 0, categories, jnp.int32)

    log_p, mats_out = mps_forward(x, matrices, row, column)
    log_p = jax.block_until_ready(log_p)

    ref = mps_reference(x, matrices, row, column)
    assert log_p.shape == (batch,)
    assert mats_out.shape == matrices.shape
    assert jnp.allclose(log_p, ref, atol=1e-3, rtol=1e-4), (log_p, ref)

    print("KERNEL_OK")
</pallas_src>

<mosaic_0001>
module attributes {stable_mosaic.version = 11 : i64} {
  func.func @mps_kernel(%arg0: i32, %arg1: memref<16x128xi32, #tpu.memory_space<vmem>>, %arg2: memref<14x32x8xf32, #tpu.memory_space<vmem>>, %arg3: memref<14x32x1xf32, #tpu.memory_space<vmem>>, %arg4: memref<8x8xf32, #tpu.memory_space<vmem>>, %arg5: memref<8x1xf32, #tpu.memory_space<vmem>>, %arg6: memref<4x8x1xf32, #tpu.memory_space<vmem>>, %arg7: memref<1x128xf32, #tpu.memory_space<vmem>>) attributes {dimension_semantics = [#tpu.dimension_semantics<parallel>], iteration_bounds = array<i64: 1>, scalar_prefetch = 0 : i64, scratch_operands = 0 : i64, tpu.core_type = #tpu.core_type<tc>, window_params = [{transform_indices = @transform_0, window_bounds = array<i64: 16, 128>}, {pipeline_mode = #tpu.pipeline_mode<synchronous>, transform_indices = @transform_1, window_bounds = array<i64: 14, 32, 8>}, {pipeline_mode = #tpu.pipeline_mode<synchronous>, transform_indices = @transform_2, window_bounds = array<i64: 14, 32, 1>}, {pipeline_mode = #tpu.pipeline_mode<synchronous>, transform_indices = @transform_3, window_bounds = array<i64: 8, 8>}, {pipeline_mode = #tpu.pipeline_mode<synchronous>, transform_indices = @transform_4, window_bounds = array<i64: 8, 1>}, {pipeline_mode = #tpu.pipeline_mode<synchronous>, transform_indices = @transform_5, window_bounds = array<i64: 4, 8, 1>}, {transform_indices = @transform_6, window_bounds = array<i64: 1, 128>}]} {
    %c15 = arith.constant 15 : index
    %c0 = arith.constant 0 : index
    %0 = vector.load %arg1[%c15, %c0] : memref<16x128xi32, #tpu.memory_space<vmem>>, vector<1x128xi32>
    %c0_0 = arith.constant 0 : index
    %c0_1 = arith.constant 0 : index
    %c0_2 = arith.constant 0 : index
    %1 = vector.load %arg6[%c0_0, %c0_1, %c0_2] : memref<4x8x1xf32, #tpu.memory_space<vmem>>, vector<1x8x1xf32>
    %2 = vector.shape_cast %1 : vector<1x8x1xf32> to vector<8x1xf32>
    %3 = vector.shape_cast %2 : vector<8x1xf32> to vector<8x1xf32>
    %4 = vector.broadcast %3 : vector<8x1xf32> to vector<8x128xf32>
    %c1_i32 = arith.constant 1 : i32
    %5 = vector.broadcast %c1_i32 : i32 to vector<1x128xi32>
    %6 = arith.cmpi eq, %0, %5 : vector<1x128xi32>
    %c1 = arith.constant 1 : index
    %c0_3 = arith.constant 0 : index
    %c0_4 = arith.constant 0 : index
    %7 = vector.load %arg6[%c1, %c0_3, %c0_4] : memref<4x8x1xf32, #tpu.memory_space<vmem>>, vector<1x8x1xf32>
    %8 = vector.shape_cast %7 : vector<1x8x1xf32> to vector<8x1xf32>
    %9 = vector.shape_cast %8 : vector<8x1xf32> to vector<8x1xf32>
    %10 = vector.broadcast %9 : vector<8x1xf32> to vector<8x128xf32>
    %11 = vector.shape_cast %6 : vector<1x128xi1> to vector<1x128xi1>
    %12 = vector.broadcast %11 : vector<1x128xi1> to vector<8x128xi1>
    %13 = arith.select %12, %10, %4 : vector<8x128xi1>, vector<8x128xf32>
    %c2_i32 = arith.constant 2 : i32
    %14 = vector.broadcast %c2_i32 : i32 to vector<1x128xi32>
    %15 = arith.cmpi eq, %0, %14 : vector<1x128xi32>
    %c2 = arith.constant 2 : index
    %c0_5 = arith.constant 0 : index
    %c0_6 = arith.constant 0 : index
    %16 = vector.load %arg6[%c2, %c0_5, %c0_6] : memref<4x8x1xf32, #tpu.memory_space<vmem>>, vector<1x8x1xf32>
    %17 = vector.shape_cast %16 : vector<1x8x1xf32> to vector<8x1xf32>
    %18 = vector.shape_cast %17 : vector<8x1xf32> to vector<8x1xf32>
    %19 = vector.broadcast %18 : vector<8x1xf32> to vector<8x128xf32>
    %20 = vector.shape_cast %15 : vector<1x128xi1> to vector<1x128xi1>
    %21 = vector.broadcast %20 : vector<1x128xi1> to vector<8x128xi1>
    %22 = arith.select %21, %19, %13 : vector<8x128xi1>, vector<8x128xf32>
    %c3_i32 = arith.constant 3 : i32
    %23 = vector.broadcast %c3_i32 : i32 to vector<1x128xi32>
    %24 = arith.cmpi eq, %0, %23 : vector<1x128xi32>
    %c3 = arith.constant 3 : index
    %c0_7 = arith.constant 0 : index
    %c0_8 = arith.constant 0 : index
    %25 = vector.load %arg6[%c3, %c0_7, %c0_8] : memref<4x8x1xf32, #tpu.memory_space<vmem>>, vector<1x8x1xf32>
    %26 = vector.shape_cast %25 : vector<1x8x1xf32> to vector<8x1xf32>
    %27 = vector.shape_cast %26 : vector<8x1xf32> to vector<8x1xf32>
    %28 = vector.broadcast %27 : vector<8x1xf32> to vector<8x128xf32>
    %29 = vector.shape_cast %24 : vector<1x128xi1> to vector<1x128xi1>
    %30 = vector.broadcast %29 : vector<1x128xi1> to vector<8x128xi1>
    %31 = arith.select %30, %28, %22 : vector<8x128xi1>, vector<8x128xf32>
    %c14 = arith.constant 14 : index
    %c0_9 = arith.constant 0 : index
    %32 = vector.load %arg1[%c14, %c0_9] : memref<16x128xi32, #tpu.memory_space<vmem>>, vector<1x128xi32>
    %cst = arith.constant dense<0xFF800000> : vector<128xf32>
    %33 = vector.multi_reduction <maximumf>, %31, %cst [0] : vector<8x128xf32> to vector<128xf32>
    %34 = vector.shape_cast %33 : vector<128xf32> to vector<1x128xf32>
    %35 = vector.broadcast %34 : vector<1x128xf32> to vector<8x128xf32>
    %36 = arith.subf %31, %35 : vector<8x128xf32>
    %37 = math.exp %36 : vector<8x128xf32>
    %c13 = arith.constant 13 : index
    %c0_10 = arith.constant 0 : index
    %c0_11 = arith.constant 0 : index
    %38 = vector.load %arg2[%c13, %c0_10, %c0_11] : memref<14x32x8xf32, #tpu.memory_space<vmem>>, vector<1x32x8xf32>
    %39 = vector.shape_cast %38 : vector<1x32x8xf32> to vector<32x8xf32>
    %cst_12 = arith.constant dense<0.000000e+00> : vector<32x128xf32>
    %40 = tpu.matmul %39, %37, %cst_12 {dimension_numbers = #tpu.dot_dimension_numbers<[1], [0], [0], [1], [0, 0, 1, 1], [], []>} : vector<32x8xf32>, vector<8x128xf32>, vector<32x128xf32> -> vector<32x128xf32>
    %41 = vector.extract_strided_slice %40 {offsets = [0, 0], sizes = [8, 128], strides = [1, 1]} : vector<32x128xf32> to vector<8x128xf32>
    %c13_13 = arith.constant 13 : index
    %c0_14 = arith.constant 0 : index
    %c0_15 = arith.constant 0 : index
    %42 = vector.load %arg3[%c13_13, %c0_14, %c0_15] : memref<14x32x1xf32, #tpu.memory_space<vmem>>, vector<1x8x1xf32>
    %43 = vector.shape_cast %42 : vector<1x8x1xf32> to vector<8x1xf32>
    %c1_i32_16 = arith.constant 1 : i32
    %44 = vector.broadcast %c1_i32_16 : i32 to vector<1x128xi32>
    %45 = arith.cmpi eq, %32, %44 : vector<1x128xi32>
    %46 = vector.extract_strided_slice %40 {offsets = [8, 0], sizes = [8, 128], strides = [1, 1]} : vector<32x128xf32> to vector<8x128xf32>
    %47 = vector.shape_cast %45 : vector<1x128xi1> to vector<1x128xi1>
    %48 = vector.broadcast %47 : vector<1x128xi1> to vector<8x128xi1>
    %49 = arith.select %48, %46, %41 : vector<8x128xi1>, vector<8x128xf32>
    %c13_17 = arith.constant 13 : index
    %c8 = arith.constant 8 : index
    %c0_18 = arith.constant 0 : index
    %50 = vector.load %arg3[%c13_17, %c8, %c0_18] : memref<14x32x1xf32, #tpu.memory_space<vmem>>, vector<1x8x1xf32>
    %51 = vector.shape_cast %50 : vector<1x8x1xf32> to vector<8x1xf32>
    %52 = vector.shape_cast %45 : vector<1x128xi1> to vector<1x128xi1>
    %53 = vector.broadcast %52 : vector<1x128xi1> to vector<8x128xi1>
    %54 = vector.shape_cast %51 : vector<8x1xf32> to vector<8x1xf32>
    %55 = vector.broadcast %54 : vector<8x1xf32> to vector<8x128xf32>
    %56 = vector.shape_cast %43 : vector<8x1xf32> to vector<8x1xf32>
    %57 = vector.broadcast %56 : vector<8x1xf32> to vector<8x128xf32>
    %58 = arith.select %53, %55, %57 : vector<8x128xi1>, vector<8x128xf32>
    %c2_i32_19 = arith.constant 2 : i32
    %59 = vector.broadcast %c2_i32_19 : i32 to vector<1x128xi32>
    %60 = arith.cmpi eq, %32, %59 : vector<1x128xi32>
    %61 = vector.extract_strided_slice %40 {offsets = [16, 0], sizes = [8, 128], strides = [1, 1]} : vector<32x128xf32> to vector<8x128xf32>
    %62 = vector.shape_cast %60 : vector<1x128xi1> to vector<1x128xi1>
    %63 = vector.broadcast %62 : vector<1x128xi1> to vector<8x128xi1>
    %64 = arith.select %63, %61, %49 : vector<8x128xi1>, vector<8x128xf32>
    %c13_20 = arith.constant 13 : index
    %c16 = arith.constant 16 : index
    %c0_21 = arith.constant 0 : index
    %65 = vector.load %arg3[%c13_20, %c16, %c0_21] : memref<14x32x1xf32, #tpu.memory_space<vmem>>, vector<1x8x1xf32>
    %66 = vector.shape_cast %65 : vector<1x8x1xf32> to vector<8x1xf32>
    %67 = vector.shape_cast %60 : vector<1x128xi1> to vector<1x128xi1>
    %68 = vector.broadcast %67 : vector<1x128xi1> to vector<8x128xi1>
    %69 = vector.shape_cast %66 : vector<8x1xf32> to vector<8x1xf32>
    %70 = vector.broadcast %69 : vector<8x1xf32> to vector<8x128xf32>
    %71 = arith.select %68, %70, %58 : vector<8x128xi1>, vector<8x128xf32>
    %c3_i32_22 = arith.constant 3 : i32
    %72 = vector.broadcast %c3_i32_22 : i32 to vector<1x128xi32>
    %73 = arith.cmpi eq, %32, %72 : vector<1x128xi32>
    %74 = vector.extract_strided_slice %40 {offsets = [24, 0], sizes = [8, 128], strides = [1, 1]} : vector<32x128xf32> to vector<8x128xf32>
    %75 = vector.shape_cast %73 : vector<1x128xi1> to vector<1x128xi1>
    %76 = vector.broadcast %75 : vector<1x128xi1> to vector<8x128xi1>
    %77 = arith.select %76, %74, %64 : vector<8x128xi1>, vector<8x128xf32>
    %c13_23 = arith.constant 13 : index
    %c24 = arith.constant 24 : index
    %c0_24 = arith.constant 0 : index
    %78 = vector.load %arg3[%c13_23, %c24, %c0_24] : memref<14x32x1xf32, #tpu.memory_space<vmem>>, vector<1x8x1xf32>
    %79 = vector.shape_cast %78 : vector<1x8x1xf32> to vector<8x1xf32>
    %80 = vector.shape_cast %73 : vector<1x128xi1> to vector<1x128xi1>
    %81 = vector.broadcast %80 : vector<1x128xi1> to vector<8x128xi1>
    %82 = vector.shape_cast %79 : vector<8x1xf32> to vector<8x1xf32>
    %83 = vector.broadcast %82 : vector<8x1xf32> to vector<8x128xf32>
    %84 = arith.select %81, %83, %71 : vector<8x128xi1>, vector<8x128xf32>
    %85 = math.log %77 : vector<8x128xf32>
    %86 = arith.addf %85, %84 : vector<8x128xf32>
    %87 = vector.broadcast %34 : vector<1x128xf32> to vector<8x128xf32>
    %88 = arith.addf %86, %87 : vector<8x128xf32>
    %c13_25 = arith.constant 13 : index
    %c0_26 = arith.constant 0 : index
    %89 = vector.load %arg1[%c13_25, %c0_26] : memref<16x128xi32, #tpu.memory_space<vmem>>, vector<1x128xi32>
    %cst_27 = arith.constant dense<0xFF800000> : vector<128xf32>
    %90 = vector.multi_reduction <maximumf>, %88, %cst_27 [0] : vector<8x128xf32> to vector<128xf32>
    %91 = vector.shape_cast %90 : vector<128xf32> to vector<1x128xf32>
    %92 = vector.broadcast %91 : vector<1x128xf32> to vector<8x128xf32>
    %93 = arith.subf %88, %92 : vector<8x128xf32>
    %94 = math.exp %93 : vector<8x128xf32>
    %c12 = arith.constant 12 : index
    %c0_28 = arith.constant 0 : index
    %c0_29 = arith.constant 0 : index
    %95 = vector.load %arg2[%c12, %c0_28, %c0_29] : memref<14x32x8xf32, #tpu.memory_space<vmem>>, vector<1x32x8xf32>
    %96 = vector.shape_cast %95 : vector<1x32x8xf32> to vector<32x8xf32>
    %cst_30 = arith.constant dense<0.000000e+00> : vector<32x128xf32>
    %97 = tpu.matmul %96, %94, %cst_30 {dimension_numbers = #tpu.dot_dimension_numbers<[1], [0], [0], [1], [0, 0, 1, 1], [], []>} : vector<32x8xf32>, vector<8x128xf32>, vector<32x128xf32> -> vector<32x128xf32>
    %98 = vector.extract_strided_slice %97 {offsets = [0, 0], sizes = [8, 128], strides = [1, 1]} : vector<32x128xf32> to vector<8x128xf32>
    %c12_31 = arith.constant 12 : index
    %c0_32 = arith.constant 0 : index
    %c0_33 = arith.constant 0 : index
    %99 = vector.load %arg3[%c12_31, %c0_32, %c0_33] : memref<14x32x1xf32, #tpu.memory_space<vmem>>, vector<1x8x1xf32>
    %100 = vector.shape_cast %99 : vector<1x8x1xf32> to vector<8x1xf32>
    %c1_i32_34 = arith.constant 1 : i32
    %101 = vector.broadcast %c1_i32_34 : i32 to vector<1x128xi32>
    %102 = arith.cmpi eq, %89, %101 : vector<1x128xi32>
    %103 = vector.extract_strided_slice %97 {offsets = [8, 0], sizes = [8, 128], strides = [1, 1]} : vector<32x128xf32> to vector<8x128xf32>
    %104 = vector.shape_cast %102 : vector<1x128xi1> to vector<1x128xi1>
    %105 = vector.broadcast %104 : vector<1x128xi1> to vector<8x128xi1>
    %106 = arith.select %105, %103, %98 : vector<8x128xi1>, vector<8x128xf32>
    %c12_35 = arith.constant 12 : index
    %c8_36 = arith.constant 8 : index
    %c0_37 = arith.constant 0 : index
    %107 = vector.load %arg3[%c12_35, %c8_36, %c0_37] : memref<14x32x1xf32, #tpu.memory_space<vmem>>, vector<1x8x1xf32>
    %108 = vector.shape_cast %107 : vector<1x8x1xf32> to vector<8x1xf32>
    %109 = vector.shape_cast %102 : vector<1x128xi1> to vector<1x128xi1>
    %110 = vector.broadcast %109 : vector<1x128xi1> to vector<8x128xi1>
    %111 = vector.shape_cast %108 : vector<8x1xf32> to vector<8x1xf32>
    %112 = vector.broadcast %111 : vector<8x1xf32> to vector<8x128xf32>
    %113 = vector.shape_cast %100 : vector<8x1xf32> to vector<8x1xf32>
    %114 = vector.broadcast %113 : vector<8x1xf32> to vector<8x128xf32>
    %115 = arith.select %110, %112, %114 : vector<8x128xi1>, vector<8x128xf32>
    %c2_i32_38 = arith.constant 2 : i32
    %116 = vector.broadcast %c2_i32_38 : i32 to vector<1x128xi32>
    %117 = arith.cmpi eq, %89, %116 : vector<1x128xi32>
    %118 = vector.extract_strided_slice %97 {offsets = [16, 0], sizes = [8, 128], strides = [1, 1]} : vector<32x128xf32> to vector<8x128xf32>
    %119 = vector.shape_cast %117 : vector<1x128xi1> to vector<1x128xi1>
    %120 = vector.broadcast %119 : vector<1x128xi1> to vector<8x128xi1>
    %121 = arith.select %120, %118, %106 : vector<8x128xi1>, vector<8x128xf32>
    %c12_39 = arith.constant 12 : index
    %c16_40 = arith.constant 16 : index
    %c0_41 = arith.constant 0 : index
    %122 = vector.load %arg3[%c12_39, %c16_40, %c0_41] : memref<14x32x1xf32, #tpu.memory_space<vmem>>, vector<1x8x1xf32>
    %123 = vector.shape_cast %122 : vector<1x8x1xf32> to vector<8x1xf32>
    %124 = vector.shape_cast %117 : vector<1x128xi1> to vector<1x128xi1>
    %125 = vector.broadcast %124 : vector<1x128xi1> to vector<8x128xi1>
    %126 = vector.shape_cast %123 : vector<8x1xf32> to vector<8x1xf32>
    %127 = vector.broadcast %126 : vector<8x1xf32> to vector<8x128xf32>
    %128 = arith.select %125, %127, %115 : vector<8x128xi1>, vector<8x128xf32>
    %c3_i32_42 = arith.constant 3 : i32
    %129 = vector.broadcast %c3_i32_42 : i32 to vector<1x128xi32>
    %130 = arith.cmpi eq, %89, %129 : vector<1x128xi32>
    %131 = vector.extract_strided_slice %97 {offsets = [24, 0], sizes = [8, 128], strides = [1, 1]} : vector<32x128xf32> to vector<8x128xf32>
    %132 = vector.shape_cast %130 : vector<1x128xi1> to vector<1x128xi1>
    %133 = vector.broadcast %132 : vector<1x128xi1> to vector<8x128xi1>
    %134 = arith.select %133, %131, %121 : vector<8x128xi1>, vector<8x128xf32>
    %c12_43 = arith.constant 12 : index
    %c24_44 = arith.constant 24 : index
    %c0_45 = arith.constant 0 : index
    %135 = vector.load %arg3[%c12_43, %c24_44, %c0_45] : memref<14x32x1xf32, #tpu.memory_space<vmem>>, vector<1x8x1xf32>
    %136 = vector.shape_cast %135 : vector<1x8x1xf32> to vector<8x1xf32>
    %137 = vector.shape_cast %130 : vector<1x128xi1> to vector<1x128xi1>
    %138 = vector.broadcast %137 : vector<1x128xi1> to vector<8x128xi1>
    %139 = vector.shape_cast %136 : vector<8x1xf32> to vector<8x1xf32>
    %140 = vector.broadcast %139 : vector<8x1xf32> to vector<8x128xf32>
    %141 = arith.select %138, %140, %128 : vector<8x128xi1>, vector<8x128xf32>
    %142 = math.log %134 : vector<8x128xf32>
    %143 = arith.addf %142, %141 : vector<8x128xf32>
    %144 = vector.broadcast %91 : vector<1x128xf32> to vector<8x128xf32>
    %145 = arith.addf %143, %144 : vector<8x128xf32>
    %c12_46 = arith.constant 12 : index
    %c0_47 = arith.constant 0 : index
    %146 = vector.load %arg1[%c12_46, %c0_47] : memref<16x128xi32, #tpu.memory_space<vmem>>, vector<1x128xi32>
    %cst_48 = arith.constant dense<0xFF800000> : vector<128xf32>
    %147 = vector.multi_reduction <maximumf>, %145, %cst_48 [0] : vector<8x128xf32> to vector<128xf32>
    %148 = vector.shape_cast %147 : vector<128xf32> to vector<1x128xf32>
    %149 = vector.broadcast %148 : vector<1x128xf32> to vector<8x128xf32>
    %150 = arith.subf %145, %149 : vector<8x128xf32>
    %151 = math.exp %150 : vector<8x128xf32>
    %c11 = arith.constant 11 : index
    %c0_49 = arith.constant 0 : index
    %c0_50 = arith.constant 0 : index
    %152 = vector.load %arg2[%c11, %c0_49, %c0_50] : memref<14x32x8xf32, #tpu.memory_space<vmem>>, vector<1x32x8xf32>
    %153 = vector.shape_cast %152 : vector<1x32x8xf32> to vector<32x8xf32>
    %cst_51 = arith.constant dense<0.000000e+00> : vector<32x128xf32>
    %154 = tpu.matmul %153, %151, %cst_51 {dimension_numbers = #tpu.dot_dimension_numbers<[1], [0], [0], [1], [0, 0, 1, 1], [], []>} : vector<32x8xf32>, vector<8x128xf32>, vector<32x128xf32> -> vector<32x128xf32>
    %155 = vector.extract_strided_slice %154 {offsets = [0, 0], sizes = [8, 128], strides = [1, 1]} : vector<32x128xf32> to vector<8x128xf32>
    %c11_52 = arith.constant 11 : index
    %c0_53 = arith.constant 0 : index
    %c0_54 = arith.constant 0 : index
    %156 = vector.load %arg3[%c11_52, %c0_53, %c0_54] : memref<14x32x1xf32, #tpu.memory_space<vmem>>, vector<1x8x1xf32>
    %157 = vector.shape_cast %156 : vector<1x8x1xf32> to vector<8x1xf32>
    %c1_i32_55 = arith.constant 1 : i32
    %158 = vector.broadcast %c1_i32_55 : i32 to vector<1x128xi32>
    %159 = arith.cmpi eq, %146, %158 : vector<1x128xi32>
    %160 = vector.extract_strided_slice %154 {offsets = [8, 0], sizes = [8, 128], strides = [1, 1]} : vector<32x128xf32> to vector<8x128xf32>
    %161 = vector.shape_cast %159 : vector<1x128xi1> to vector<1x128xi1>
    %162 = vector.broadcast %161 : vector<1x128xi1> to vector<8x128xi1>
    %163 = arith.select %162, %160, %155 : vector<8x128xi1>, vector<8x128xf32>
    %c11_56 = arith.constant 11 : index
    %c8_57 = arith.constant 8 : index
    %c0_58 = arith.constant 0 : index
    %164 = vector.load %arg3[%c11_56, %c8_57, %c0_58] : memref<14x32x1xf32, #tpu.memory_space<vmem>>, vector<1x8x1xf32>
    %165 = vector.shape_cast %164 : vector<1x8x1xf32> to vector<8x1xf32>
    %166 = vector.shape_cast %159 : vector<1x128xi1> to vector<1x128xi1>
    %167 = vector.broadcast %166 : vector<1x128xi1> to vector<8x128xi1>
    %168 = vector.shape_cast %165 : vector<8x1xf32> to vector<8x1xf32>
    %169 = vector.broadcast %168 : vector<8x1xf32> to vector<8x128xf32>
    %170 = vector.shape_cast %157 : vector<8x1xf32> to vector<8x1xf32>
    %171 = vector.broadcast %170 : vector<8x1xf32> to vector<8x128xf32>
    %172 = arith.select %167, %169, %171 : vector<8x128xi1>, vector<8x128xf32>
    %c2_i32_59 = arith.constant 2 : i32
    %173 = vector.broadcast %c2_i32_59 : i32 to vector<1x128xi32>
    %174 = arith.cmpi eq, %146, %173 : vector<1x128xi32>
    %175 = vector.extract_strided_slice %154 {offsets = [16, 0], sizes = [8, 128], strides = [1, 1]} : vector<32x128xf32> to vector<8x128xf32>
    %176 = vector.shape_cast %174 : vector<1x128xi1> to vector<1x128xi1>
    %177 = vector.broadcast %176 : vector<1x128xi1> to vector<8x128xi1>
    %178 = arith.select %177, %175, %163 : vector<8x128xi1>, vector<8x128xf32>
    %c11_60 = arith.constant 11 : index
    %c16_61 = arith.constant 16 : index
    %c0_62 = arith.constant 0 : index
    %179 = vector.load %arg3[%c11_60, %c16_61, %c0_62] : memref<14x32x1xf32, #tpu.memory_space<vmem>>, vector<1x8x1xf32>
    %180 = vector.shape_cast %179 : vector<1x8x1xf32> to vector<8x1xf32>
    %181 = vector.shape_cast %174 : vector<1x128xi1> to vector<1x128xi1>
    %182 = vector.broadcast %181 : vector<1x128xi1> to vector<8x128xi1>
    %183 = vector.shape_cast %180 : vector<8x1xf32> to vector<8x1xf32>
    %184 = vector.broadcast %183 : vector<8x1xf32> to vector<8x128xf32>
    %185 = arith.select %182, %184, %172 : vector<8x128xi1>, vector<8x128xf32>
    %c3_i32_63 = arith.constant 3 : i32
    %186 = vector.broadcast %c3_i32_63 : i32 to vector<1x128xi32>
    %187 = arith.cmpi eq, %146, %186 : vector<1x128xi32>
    %188 = vector.extract_strided_slice %154 {offsets = [24, 0], sizes = [8, 128], strides = [1, 1]} : vector<32x128xf32> to vector<8x128xf32>
    %189 = vector.shape_cast %187 : vector<1x128xi1> to vector<1x128xi1>
    %190 = vector.broadcast %189 : vector<1x128xi1> to vector<8x128xi1>
    %191 = arith.select %190, %188, %178 : vector<8x128xi1>, vector<8x128xf32>
    %c11_64 = arith.constant 11 : index
    %c24_65 = arith.constant 24 : index
    %c0_66 = arith.constant 0 : index
    %192 = vector.load %arg3[%c11_64, %c24_65, %c0_66] : memref<14x32x1xf32, #tpu.memory_space<vmem>>, vector<1x8x1xf32>
    %193 = vector.shape_cast %192 : vector<1x8x1xf32> to vector<8x1xf32>
    %194 = vector.shape_cast %187 : vector<1x128xi1> to vector<1x128xi1>
    %195 = vector.broadcast %194 : vector<1x128xi1> to vector<8x128xi1>
    %196 = vector.shape_cast %193 : vector<8x1xf32> to vector<8x1xf32>
    %197 = vector.broadcast %196 : vector<8x1xf32> to vector<8x128xf32>
    %198 = arith.select %195, %197, %185 : vector<8x128xi1>, vector<8x128xf32>
    %199 = math.log %191 : vector<8x128xf32>
    %200 = arith.addf %199, %198 : vector<8x128xf32>
    %201 = vector.broadcast %148 : vector<1x128xf32> to vector<8x128xf32>
    %202 = arith.addf %200, %201 : vector<8x128xf32>
    %c11_67 = arith.constant 11 : index
    %c0_68 = arith.constant 0 : index
    %203 = vector.load %arg1[%c11_67, %c0_68] : memref<16x128xi32, #tpu.memory_space<vmem>>, vector<1x128xi32>
    %cst_69 = arith.constant dense<0xFF800000> : vector<128xf32>
    %204 = vector.multi_reduction <maximumf>, %202, %cst_69 [0] : vector<8x128xf32> to vector<128xf32>
    %205 = vector.shape_cast %204 : vector<128xf32> to vector<1x128xf32>
    %206 = vector.broadcast %205 : vector<1x128xf32> to vector<8x128xf32>
    %207 = arith.subf %202, %206 : vector<8x128xf32>
    %208 = math.exp %207 : vector<8x128xf32>
    %c10 = arith.constant 10 : index
    %c0_70 = arith.constant 0 : index
    %c0_71 = arith.constant 0 : index
    %209 = vector.load %arg2[%c10, %c0_70, %c0_71] : memref<14x32x8xf32, #tpu.memory_space<vmem>>, vector<1x32x8xf32>
    %210 = vector.shape_cast %209 : vector<1x32x8xf32> to vector<32x8xf32>
    %cst_72 = arith.constant dense<0.000000e+00> : vector<32x128xf32>
    %211 = tpu.matmul %210, %208, %cst_72 {dimension_numbers = #tpu.dot_dimension_numbers<[1], [0], [0], [1], [0, 0, 1, 1], [], []>} : vector<32x8xf32>, vector<8x128xf32>, vector<32x128xf32> -> vector<32x128xf32>
    %212 = vector.extract_strided_slice %211 {offsets = [0, 0], sizes = [8, 128], strides = [1, 1]} : vector<32x128xf32> to vector<8x128xf32>
    %c10_73 = arith.constant 10 : index
    %c0_74 = arith.constant 0 : index
    %c0_75 = arith.constant 0 : index
    %213 = vector.load %arg3[%c10_73, %c0_74, %c0_75] : memref<14x32x1xf32, #tpu.memory_space<vmem>>, vector<1x8x1xf32>
    %214 = vector.shape_cast %213 : vector<1x8x1xf32> to vector<8x1xf32>
    %c1_i32_76 = arith.constant 1 : i32
    %215 = vector.broadcast %c1_i32_76 : i32 to vector<1x128xi32>
    %216 = arith.cmpi eq, %203, %215 : vector<1x128xi32>
    %217 = vector.extract_strided_slice %211 {offsets = [8, 0], sizes = [8, 128], strides = [1, 1]} : vector<32x128xf32> to vector<8x128xf32>
    %218 = vector.shape_cast %216 : vector<1x128xi1> to vector<1x128xi1>
    %219 = vector.broadcast %218 : vector<1x128xi1> to vector<8x128xi1>
    %220 = arith.select %219, %217, %212 : vector<8x128xi1>, vector<8x128xf32>
    %c10_77 = arith.constant 10 : index
    %c8_78 = arith.constant 8 : index
    %c0_79 = arith.constant 0 : index
    %221 = vector.load %arg3[%c10_77, %c8_78, %c0_79] : memref<14x32x1xf32, #tpu.memory_space<vmem>>, vector<1x8x1xf32>
    %222 = vector.shape_cast %221 : vector<1x8x1xf32> to vector<8x1xf32>
    %223 = vector.shape_cast %216 : vector<1x128xi1> to vector<1x128xi1>
    %224 = vector.broadcast %223 : vector<1x128xi1> to vector<8x128xi1>
    %225 = vector.shape_cast %222 : vector<8x1xf32> to vector<8x1xf32>
    %226 = vector.broadcast %225 : vector<8x1xf32> to vector<8x128xf32>
    %227 = vector.shape_cast %214 : vector<8x1xf32> to vector<8x1xf32>
    %228 = vector.broadcast %227 : vector<8x1xf32> to vector<8x128xf32>
    %229 = arith.select %224, %226, %228 : vector<8x128xi1>, vector<8x128xf32>
    %c2_i32_80 = arith.constant 2 : i32
    %230 = vector.broadcast %c2_i32_80 : i32 to vector<1x128xi32>
    %231 = arith.cmpi eq, %203, %230 : vector<1x128xi32>
    %232 = vector.extract_strided_slice %211 {offsets = [16, 0], sizes = [8, 128], strides = [1, 1]} : vector<32x128xf32> to vector<8x128xf32>
    %233 = vector.shape_cast %231 : vector<1x128xi1> to vector<1x128xi1>
    %234 = vector.broadcast %233 : vector<1x128xi1> to vector<8x128xi1>
    %235 = arith.select %234, %232, %220 : vector<8x128xi1>, vector<8x128xf32>
    %c10_81 = arith.constant 10 : index
    %c16_82 = arith.constant 16 : index
    %c0_83 = arith.constant 0 : index
    %236 = vector.load %arg3[%c10_81, %c16_82, %c0_83] : memref<14x32x1xf32, #tpu.memory_space<vmem>>, vector<1x8x1xf32>
    %237 = vector.shape_cast %236 : vector<1x8x1xf32> to vector<8x1xf32>
    %238 = vector.shape_cast %231 : vector<1x128xi1> to vector<1x128xi1>
    %239 = vector.broadcast %238 : vector<1x128xi1> to vector<8x128xi1>
    %240 = vector.shape_cast %237 : vector<8x1xf32> to vector<8x1xf32>
    %241 = vector.broadcast %240 : vector<8x1xf32> to vector<8x128xf32>
    %242 = arith.select %239, %241, %229 : vector<8x128xi1>, vector<8x128xf32>
    %c3_i32_84 = arith.constant 3 : i32
    %243 = vector.broadcast %c3_i32_84 : i32 to vector<1x128xi32>
    %244 = arith.cmpi eq, %203, %243 : vector<1x128xi32>
    %245 = vector.extract_strided_slice %211 {offsets = [24, 0], sizes = [8, 128], strides = [1, 1]} : vector<32x128xf32> to vector<8x128xf32>
    %246 = vector.shape_cast %244 : vector<1x128xi1> to vector<1x128xi1>
    %247 = vector.broadcast %246 : vector<1x128xi1> to vector<8x128xi1>
    %248 = arith.select %247, %245, %235 : vector<8x128xi1>, vector<8x128xf32>
    %c10_85 = arith.constant 10 : index
    %c24_86 = arith.constant 24 : index
    %c0_87 = arith.constant 0 : index
    %249 = vector.load %arg3[%c10_85, %c24_86, %c0_87] : memref<14x32x1xf32, #tpu.memory_space<vmem>>, vector<1x8x1xf32>
    %250 = vector.shape_cast %249 : vector<1x8x1xf32> to vector<8x1xf32>
    %251 = vector.shape_cast %244 : vector<1x128xi1> to vector<1x128xi1>
    %252 = vector.broadcast %251 : vector<1x128xi1> to vector<8x128xi1>
    %253 = vector.shape_cast %250 : vector<8x1xf32> to vector<8x1xf32>
    %254 = vector.broadcast %253 : vector<8x1xf32> to vector<8x128xf32>
    %255 = arith.select %252, %254, %242 : vector<8x128xi1>, vector<8x128xf32>
    %256 = math.log %248 : vector<8x128xf32>
    %257 = arith.addf %256, %255 : vector<8x128xf32>
    %258 = vector.broadcast %205 : vector<1x128xf32> to vector<8x128xf32>
    %259 = arith.addf %257, %258 : vector<8x128xf32>
    %c10_88 = arith.constant 10 : index
    %c0_89 = arith.constant 0 : index
    %260 = vector.load %arg1[%c10_88, %c0_89] : memref<16x128xi32, #tpu.memory_space<vmem>>, vector<1x128xi32>
    %cst_90 = arith.constant dense<0xFF800000> : vector<128xf32>
    %261 = vector.multi_reduction <maximumf>, %259, %cst_90 [0] : vector<8x128xf32> to vector<128xf32>
    %262 = vector.shape_cast %261 : vector<128xf32> to vector<1x128xf32>
    %263 = vector.broadcast %262 : vector<1x128xf32> to vector<8x128xf32>
    %264 = arith.subf %259, %263 : vector<8x128xf32>
    %265 = math.exp %264 : vector<8x128xf32>
    %c9 = arith.constant 9 : index
    %c0_91 = arith.constant 0 : index
    %c0_92 = arith.constant 0 : index
    %266 = vector.load %arg2[%c9, %c0_91, %c0_92] : memref<14x32x8xf32, #tpu.memory_space<vmem>>, vector<1x32x8xf32>
    %267 = vector.shape_cast %266 : vector<1x32x8xf32> to vector<32x8xf32>
    %cst_93 = arith.constant dense<0.000000e+00> : vector<32x128xf32>
    %268 = tpu.matmul %267, %265, %cst_93 {dimension_numbers = #tpu.dot_dimension_numbers<[1], [0], [0], [1], [0, 0, 1, 1], [], []>} : vector<32x8xf32>, vector<8x128xf32>, vector<32x128xf32> -> vector<32x128xf32>
    %269 = vector.extract_strided_slice %268 {offsets = [0, 0], sizes = [8, 128], strides = [1, 1]} : vector<32x128xf32> to vector<8x128xf32>
    %c9_94 = arith.constant 9 : index
    %c0_95 = arith.constant 0 : index
    %c0_96 = arith.constant 0 : index
    %270 = vector.load %arg3[%c9_94, %c0_95, %c0_96] : memref<14x32x1xf32, #tpu.memory_space<vmem>>, vector<1x8x1xf32>
    %271 = vector.shape_cast %270 : vector<1x8x1xf32> to vector<8x1xf32>
    %c1_i32_97 = arith.constant 1 : i32
    %272 = vector.broadcast %c1_i32_97 : i32 to vector<1x128xi32>
    %273 = arith.cmpi eq, %260, %272 : vector<1x128xi32>
    %274 = vector.extract_strided_slice %268 {offsets = [8, 0], sizes = [8, 128], strides = [1, 1]} : vector<32x128xf32> to vector<8x128xf32>
    %275 = vector.shape_cast %273 : vector<1x128xi1> to vector<1x128xi1>
    %276 = vector.broadcast %275 : vector<1x128xi1> to vector<8x128xi1>
    %277 = arith.select %276, %274, %269 : vector<8x128xi1>, vector<8x128xf32>
    %c9_98 = arith.constant 9 : index
    %c8_99 = arith.constant 8 : index
    %c0_100 = arith.constant 0 : index
    %278 = vector.load %arg3[%c9_98, %c8_99, %c0_100] : memref<14x32x1xf32, #tpu.memory_space<vmem>>, vector<1x8x1xf32>
    %279 = vector.shape_cast %278 : vector<1x8x1xf32> to vector<8x1xf32>
    %280 = vector.shape_cast %273 : vector<1x128xi1> to vector<1x128xi1>
    %281 = vector.broadcast %280 : vector<1x128xi1> to vector<8x128xi1>
    %282 = vector.shape_cast %279 : vector<8x1xf32> to vector<8x1xf32>
    %283 = vector.broadcast %282 : vector<8x1xf32> to vector<8x128xf32>
    %284 = vector.shape_cast %271 : vector<8x1xf32> to vector<8x1xf32>
    %285 = vector.broadcast %284 : vector<8x1xf32> to vector<8x128xf32>
    %286 = arith.select %281, %283, %285 : vector<8x128xi1>, vector<8x128xf32>
    %c2_i32_101 = arith.constant 2 : i32
    %287 = vector.broadcast %c2_i32_101 : i32 to vector<1x128xi32>
    %288 = arith.cmpi eq, %260, %287 : vector<1x128xi32>
    %289 = vector.extract_strided_slice %268 {offsets = [16, 0], sizes = [8, 128], strides = [1, 1]} : vector<32x128xf32> to vector<8x128xf32>
    %290 = vector.shape_cast %288 : vector<1x128xi1> to vector<1x128xi1>
    %291 = vector.broadcast %290 : vector<1x128xi1> to vector<8x128xi1>
    %292 = arith.select %291, %289, %277 : vector<8x128xi1>, vector<8x128xf32>
    %c9_102 = arith.constant 9 : index
    %c16_103 = arith.constant 16 : index
    %c0_104 = arith.constant 0 : index
    %293 = vector.load %arg3[%c9_102, %c16_103, %c0_104] : memref<14x32x1xf32, #tpu.memory_space<vmem>>, vector<1x8x1xf32>
    %294 = vector.shape_cast %293 : vector<1x8x1xf32> to vector<8x1xf32>
    %295 = vector.shape_cast %288 : vector<1x128xi1> to vector<1x128xi1>
    %296 = vector.broadcast %295 : vector<1x128xi1> to vector<8x128xi1>
    %297 = vector.shape_cast %294 : vector<8x1xf32> to vector<8x1xf32>
    %298 = vector.broadcast %297 : vector<8x1xf32> to vector<8x128xf32>
    %299 = arith.select %296, %298, %286 : vector<8x128xi1>, vector<8x128xf32>
    %c3_i32_105 = arith.constant 3 : i32
    %300 = vector.broadcast %c3_i32_105 : i32 to vector<1x128xi32>
    %301 = arith.cmpi eq, %260, %300 : vector<1x128xi32>
    %302 = vector.extract_strided_slice %268 {offsets = [24, 0], sizes = [8, 128], strides = [1, 1]} : vector<32x128xf32> to vector<8x128xf32>
    %303 = vector.shape_cast %301 : vector<1x128xi1> to vector<1x128xi1>
    %304 = vector.broadcast %303 : vector<1x128xi1> to vector<8x128xi1>
    %305 = arith.select %304, %302, %292 : vector<8x128xi1>, vector<8x128xf32>
    %c9_106 = arith.constant 9 : index
    %c24_107 = arith.constant 24 : index
    %c0_108 = arith.constant 0 : index
    %306 = vector.load %arg3[%c9_106, %c24_107, %c0_108] : memref<14x32x1xf32, #tpu.memory_space<vmem>>, vector<1x8x1xf32>
    %307 = vector.shape_cast %306 : vector<1x8x1xf32> to vector<8x1xf32>
    %308 = vector.shape_cast %301 : vector<1x128xi1> to vector<1x128xi1>
    %309 = vector.broadcast %308 : vector<1x128xi1> to vector<8x128xi1>
    %310 = vector.shape_cast %307 : vector<8x1xf32> to vector<8x1xf32>
    %311 = vector.broadcast %310 : vector<8x1xf32> to vector<8x128xf32>
    %312 = arith.select %309, %311, %299 : vector<8x128xi1>, vector<8x128xf32>
    %313 = math.log %305 : vector<8x128xf32>
    %314 = arith.addf %313, %312 : vector<8x128xf32>
    %315 = vector.broadcast %262 : vector<1x128xf32> to vector<8x128xf32>
    %316 = arith.addf %314, %315 : vector<8x128xf32>
    %c9_109 = arith.constant 9 : index
    %c0_110 = arith.constant 0 : index
    %317 = vector.load %arg1[%c9_109, %c0_110] : memref<16x128xi32, #tpu.memory_space<vmem>>, vector<1x128xi32>
    %cst_111 = arith.constant dense<0xFF800000> : vector<128xf32>
    %318 = vector.multi_reduction <maximumf>, %316, %cst_111 [0] : vector<8x128xf32> to vector<128xf32>
    %319 = vector.shape_cast %318 : vector<128xf32> to vector<1x128xf32>
    %320 = vector.broadcast %319 : vector<1x128xf32> to vector<8x128xf32>
    %321 = arith.subf %316, %320 : vector<8x128xf32>
    %322 = math.exp %321 : vector<8x128xf32>
    %c8_112 = arith.constant 8 : index
    %c0_113 = arith.constant 0 : index
    %c0_114 = arith.constant 0 : index
    %323 = vector.load %arg2[%c8_112, %c0_113, %c0_114] : memref<14x32x8xf32, #tpu.memory_space<vmem>>, vector<1x32x8xf32>
    %324 = vector.shape_cast %323 : vector<1x32x8xf32> to vector<32x8xf32>
    %cst_115 = arith.constant dense<0.000000e+00> : vector<32x128xf32>
    %325 = tpu.matmul %324, %322, %cst_115 {dimension_numbers = #tpu.dot_dimension_numbers<[1], [0], [0], [1], [0, 0, 1, 1], [], []>} : vector<32x8xf32>, vector<8x128xf32>, vector<32x128xf32> -> vector<32x128xf32>
    %326 = vector.extract_strided_slice %325 {offsets = [0, 0], sizes = [8, 128], strides = [1, 1]} : vector<32x128xf32> to vector<8x128xf32>
    %c8_116 = arith.constant 8 : index
    %c0_117 = arith.constant 0 : index
    %c0_118 = arith.constant 0 : index
    %327 = vector.load %arg3[%c8_116, %c0_117, %c0_118] : memref<14x32x1xf32, #tpu.memory_space<vmem>>, vector<1x8x1xf32>
    %328 = vector.shape_cast %327 : vector<1x8x1xf32> to vector<8x1xf32>
    %c1_i32_119 = arith.constant 1 : i32
    %329 = vector.broadcast %c1_i32_119 : i32 to vector<1x128xi32>
    %330 = arith.cmpi eq, %317, %329 : vector<1x128xi32>
    %331 = vector.extract_strided_slice %325 {offsets = [8, 0], sizes = [8, 128], strides = [1, 1]} : vector<32x128xf32> to vector<8x128xf32>
    %332 = vector.shape_cast %330 : vector<1x128xi1> to vector<1x128xi1>
    %333 = vector.broadcast %332 : vector<1x128xi1> to vector<8x128xi1>
    %334 = arith.select %333, %331, %326 : vector<8x128xi1>, vector<8x128xf32>
    %c8_120 = arith.constant 8 : index
    %c8_121 = arith.constant 8 : index
    %c0_122 = arith.constant 0 : index
    %335 = vector.load %arg3[%c8_120, %c8_121, %c0_122] : memref<14x32x1xf32, #tpu.memory_space<vmem>>, vector<1x8x1xf32>
    %336 = vector.shape_cast %335 : vector<1x8x1xf32> to vector<8x1xf32>
    %337 = vector.shape_cast %330 : vector<1x128xi1> to vector<1x128xi1>
    %338 = vector.broadcast %337 : vector<1x128xi1> to vector<8x128xi1>
    %339 = vector.shape_cast %336 : vector<8x1xf32> to vector<8x1xf32>
    %340 = vector.broadcast %339 : vector<8x1xf32> to vector<8x128xf32>
    %341 = vector.shape_cast %328 : vector<8x1xf32> to vector<8x1xf32>
    %342 = vector.broadcast %341 : vector<8x1xf32> to vector<8x128xf32>
    %343 = arith.select %338, %340, %342 : vector<8x128xi1>, vector<8x128xf32>
    %c2_i32_123 = arith.constant 2 : i32
    %344 = vector.broadcast %c2_i32_123 : i32 to vector<1x128xi32>
    %345 = arith.cmpi eq, %317, %344 : vector<1x128xi32>
    %346 = vector.extract_strided_slice %325 {offsets = [16, 0], sizes = [8, 128], strides = [1, 1]} : vector<32x128xf32> to vector<8x128xf32>
    %347 = vector.shape_cast %345 : vector<1x128xi1> to vector<1x128xi1>
    %348 = vector.broadcast %347 : vector<1x128xi1> to vector<8x128xi1>
    %349 = arith.select %348, %346, %334 : vector<8x128xi1>, vector<8x128xf32>
    %c8_124 = arith.constant 8 : index
    %c16_125 = arith.constant 16 : index
    %c0_126 = arith.constant 0 : index
    %350 = vector.load %arg3[%c8_124, %c16_125, %c0_126] : memref<14x32x1xf32, #tpu.memory_space<vmem>>, vector<1x8x1xf32>
    %351 = vector.shape_cast %350 : vector<1x8x1xf32> to vector<8x1xf32>
    %352 = vector.shape_cast %345 : vector<1x128xi1> to vector<1x128xi1>
    %353 = vector.broadcast %352 : vector<1x128xi1> to vector<8x128xi1>
    %354 = vector.shape_cast %351 : vector<8x1xf32> to vector<8x1xf32>
    %355 = vector.broadcast %354 : vector<8x1xf32> to vector<8x128xf32>
    %356 = arith.select %353, %355, %343 : vector<8x128xi1>, vector<8x128xf32>
    %c3_i32_127 = arith.constant 3 : i32
    %357 = vector.broadcast %c3_i32_127 : i32 to vector<1x128xi32>
    %358 = arith.cmpi eq, %317, %357 : vector<1x128xi32>
    %359 = vector.extract_strided_slice %325 {offsets = [24, 0], sizes = [8, 128], strides = [1, 1]} : vector<32x128xf32> to vector<8x128xf32>
    %360 = vector.shape_cast %358 : vector<1x128xi1> to vector<1x128xi1>
    %361 = vector.broadcast %360 : vector<1x128xi1> to vector<8x128xi1>
    %362 = arith.select %361, %359, %349 : vector<8x128xi1>, vector<8x128xf32>
    %c8_128 = arith.constant 8 : index
    %c24_129 = arith.constant 24 : index
    %c0_130 = arith.constant 0 : index
    %363 = vector.load %arg3[%c8_128, %c24_129, %c0_130] : memref<14x32x1xf32, #tpu.memory_space<vmem>>, vector<1x8x1xf32>
    %364 = vector.shape_cast %363 : vector<1x8x1xf32> to vector<8x1xf32>
    %365 = vector.shape_cast %358 : vector<1x128xi1> to vector<1x128xi1>
    %366 = vector.broadcast %365 : vector<1x128xi1> to vector<8x128xi1>
    %367 = vector.shape_cast %364 : vector<8x1xf32> to vector<8x1xf32>
    %368 = vector.broadcast %367 : vector<8x1xf32> to vector<8x128xf32>
    %369 = arith.select %366, %368, %356 : vector<8x128xi1>, vector<8x128xf32>
    %370 = math.log %362 : vector<8x128xf32>
    %371 = arith.addf %370, %369 : vector<8x128xf32>
    %372 = vector.broadcast %319 : vector<1x128xf32> to vector<8x128xf32>
    %373 = arith.addf %371, %372 : vector<8x128xf32>
    %c8_131 = arith.constant 8 : index
    %c0_132 = arith.constant 0 : index
    %374 = vector.load %arg1[%c8_131, %c0_132] : memref<16x128xi32, #tpu.memory_space<vmem>>, vector<1x128xi32>
    %cst_133 = arith.constant dense<0xFF800000> : vector<128xf32>
    %375 = vector.multi_reduction <maximumf>, %373, %cst_133 [0] : vector<8x128xf32> to vector<128xf32>
    %376 = vector.shape_cast %375 : vector<128xf32> to vector<1x128xf32>
    %377 = vector.broadcast %376 : vector<1x128xf32> to vector<8x128xf32>
    %378 = arith.subf %373, %377 : vector<8x128xf32>
    %379 = math.exp %378 : vector<8x128xf32>
    %c7 = arith.constant 7 : index
    %c0_134 = arith.constant 0 : index
    %c0_135 = arith.constant 0 : index
    %380 = vector.load %arg2[%c7, %c0_134, %c0_135] : memref<14x32x8xf32, #tpu.memory_space<vmem>>, vector<1x32x8xf32>
    %381 = vector.shape_cast %380 : vector<1x32x8xf32> to vector<32x8xf32>
    %cst_136 = arith.constant dense<0.000000e+00> : vector<32x128xf32>
    %382 = tpu.matmul %381, %379, %cst_136 {dimension_numbers = #tpu.dot_dimension_numbers<[1], [0], [0], [1], [0, 0, 1, 1], [], []>} : vector<32x8xf32>, vector<8x128xf32>, vector<32x128xf32> -> vector<32x128xf32>
    %383 = vector.extract_strided_slice %382 {offsets = [0, 0], sizes = [8, 128], strides = [1, 1]} : vector<32x128xf32> to vector<8x128xf32>
    %c7_137 = arith.constant 7 : index
    %c0_138 = arith.constant 0 : index
    %c0_139 = arith.constant 0 : index
    %384 = vector.load %arg3[%c7_137, %c0_138, %c0_139] : memref<14x32x1xf32, #tpu.memory_space<vmem>>, vector<1x8x1xf32>
    %385 = vector.shape_cast %384 : vector<1x8x1xf32> to vector<8x1xf32>
    %c1_i32_140 = arith.constant 1 : i32
    %386 = vector.broadcast %c1_i32_140 : i32 to vector<1x128xi32>
    %387 = arith.cmpi eq, %374, %386 : vector<1x128xi32>
    %388 = vector.extract_strided_slice %382 {offsets = [8, 0], sizes = [8, 128], strides = [1, 1]} : vector<32x128xf32> to vector<8x128xf32>
    %389 = vector.shape_cast %387 : vector<1x128xi1> to vector<1x128xi1>
    %390 = vector.broadcast %389 : vector<1x128xi1> to vector<8x128xi1>
    %391 = arith.select %390, %388, %383 : vector<8x128xi1>, vector<8x128xf32>
    %c7_141 = arith.constant 7 : index
    %c8_142 = arith.constant 8 : index
    %c0_143 = arith.constant 0 : index
    %392 = vector.load %arg3[%c7_141, %c8_142, %c0_143] : memref<14x32x1xf32, #tpu.memory_space<vmem>>, vector<1x8x1xf32>
    %393 = vector.shape_cast %392 : vector<1x8x1xf32> to vector<8x1xf32>
    %394 = vector.shape_cast %387 : vector<1x128xi1> to vector<1x128xi1>
    %395 = vector.broadcast %394 : vector<1x128xi1> to vector<8x128xi1>
    %396 = vector.shape_cast %393 : vector<8x1xf32> to vector<8x1xf32>
    %397 = vector.broadcast %396 : vector<8x1xf32> to vector<8x128xf32>
    %398 = vector.shape_cast %385 : vector<8x1xf32> to vector<8x1xf32>
    %399 = vector.broadcast %398 : vector<8x1xf32> to vector<8x128xf32>
    %400 = arith.select %395, %397, %399 : vector<8x128xi1>, vector<8x128xf32>
    %c2_i32_144 = arith.constant 2 : i32
    %401 = vector.broadcast %c2_i32_144 : i32 to vector<1x128xi32>
    %402 = arith.cmpi eq, %374, %401 : vector<1x128xi32>
    %403 = vector.extract_strided_slice %382 {offsets = [16, 0], sizes = [8, 128], strides = [1, 1]} : vector<32x128xf32> to vector<8x128xf32>
    %404 = vector.shape_cast %402 : vector<1x128xi1> to vector<1x128xi1>
    %405 = vector.broadcast %404 : vector<1x128xi1> to vector<8x128xi1>
    %406 = arith.select %405, %403, %391 : vector<8x128xi1>, vector<8x128xf32>
    %c7_145 = arith.constant 7 : index
    %c16_146 = arith.constant 16 : index
    %c0_147 = arith.constant 0 : index
    %407 = vector.load %arg3[%c7_145, %c16_146, %c0_147] : memref<14x32x1xf32, #tpu.memory_space<vmem>>, vector<1x8x1xf32>
    %408 = vector.shape_cast %407 : vector<1x8x1xf32> to vector<8x1xf32>
    %409 = vector.shape_cast %402 : vector<1x128xi1> to vector<1x128xi1>
    %410 = vector.broadcast %409 : vector<1x128xi1> to vector<8x128xi1>
    %411 = vector.shape_cast %408 : vector<8x1xf32> to vector<8x1xf32>
    %412 = vector.broadcast %411 : vector<8x1xf32> to vector<8x128xf32>
    %413 = arith.select %410, %412, %400 : vector<8x128xi1>, vector<8x128xf32>
    %c3_i32_148 = arith.constant 3 : i32
    %414 = vector.broadcast %c3_i32_148 : i32 to vector<1x128xi32>
    %415 = arith.cmpi eq, %374, %414 : vector<1x128xi32>
    %416 = vector.extract_strided_slice %382 {offsets = [24, 0], sizes = [8, 128], strides = [1, 1]} : vector<32x128xf32> to vector<8x128xf32>
    %417 = vector.shape_cast %415 : vector<1x128xi1> to vector<1x128xi1>
    %418 = vector.broadcast %417 : vector<1x128xi1> to vector<8x128xi1>
    %419 = arith.select %418, %416, %406 : vector<8x128xi1>, vector<8x128xf32>
    %c7_149 = arith.constant 7 : index
    %c24_150 = arith.constant 24 : index
    %c0_151 = arith.constant 0 : index
    %420 = vector.load %arg3[%c7_149, %c24_150, %c0_151] : memref<14x32x1xf32, #tpu.memory_space<vmem>>, vector<1x8x1xf32>
    %421 = vector.shape_cast %420 : vector<1x8x1xf32> to vector<8x1xf32>
    %422 = vector.shape_cast %415 : vector<1x128xi1> to vector<1x128xi1>
    %423 = vector.broadcast %422 : vector<1x128xi1> to vector<8x128xi1>
    %424 = vector.shape_cast %421 : vector<8x1xf32> to vector<8x1xf32>
    %425 = vector.broadcast %424 : vector<8x1xf32> to vector<8x128xf32>
    %426 = arith.select %423, %425, %413 : vector<8x128xi1>, vector<8x128xf32>
    %427 = math.log %419 : vector<8x128xf32>
    %428 = arith.addf %427, %426 : vector<8x128xf32>
    %429 = vector.broadcast %376 : vector<1x128xf32> to vector<8x128xf32>
    %430 = arith.addf %428, %429 : vector<8x128xf32>
    %c7_152 = arith.constant 7 : index
    %c0_153 = arith.constant 0 : index
    %431 = vector.load %arg1[%c7_152, %c0_153] : memref<16x128xi32, #tpu.memory_space<vmem>>, vector<1x128xi32>
    %cst_154 = arith.constant dense<0xFF800000> : vector<128xf32>
    %432 = vector.multi_reduction <maximumf>, %430, %cst_154 [0] : vector<8x128xf32> to vector<128xf32>
    %433 = vector.shape_cast %432 : vector<128xf32> to vector<1x128xf32>
    %434 = vector.broadcast %433 : vector<1x128xf32> to vector<8x128xf32>
    %435 = arith.subf %430, %434 : vector<8x128xf32>
    %436 = math.exp %435 : vector<8x128xf32>
    %c6 = arith.constant 6 : index
    %c0_155 = arith.constant 0 : index
    %c0_156 = arith.constant 0 : index
    %437 = vector.load %arg2[%c6, %c0_155, %c0_156] : memref<14x32x8xf32, #tpu.memory_space<vmem>>, vector<1x32x8xf32>
    %438 = vector.shape_cast %437 : vector<1x32x8xf32> to vector<32x8xf32>
    %cst_157 = arith.constant dense<0.000000e+00> : vector<32x128xf32>
    %439 = tpu.matmul %438, %436, %cst_157 {dimension_numbers = #tpu.dot_dimension_numbers<[1], [0], [0], [1], [0, 0, 1, 1], [], []>} : vector<32x8xf32>, vector<8x128xf32>, vector<32x128xf32> -> vector<32x128xf32>
    %440 = vector.extract_strided_slice %439 {offsets = [0, 0], sizes = [8, 128], strides = [1, 1]} : vector<32x128xf32> to vector<8x128xf32>
    %c6_158 = arith.constant 6 : index
    %c0_159 = arith.constant 0 : index
    %c0_160 = arith.constant 0 : index
    %441 = vector.load %arg3[%c6_158, %c0_159, %c0_160] : memref<14x32x1xf32, #tpu.memory_space<vmem>>, vector<1x8x1xf32>
    %442 = vector.shape_cast %441 : vector<1x8x1xf32> to vector<8x1xf32>
    %c1_i32_161 = arith.constant 1 : i32
    %443 = vector.broadcast %c1_i32_161 : i32 to vector<1x128xi32>
    %444 = arith.cmpi eq, %431, %443 : vector<1x128xi32>
    %445 = vector.extract_strided_slice %439 {offsets = [8, 0], sizes = [8, 128], strides = [1, 1]} : vector<32x128xf32> to vector<8x128xf32>
    %446 = vector.shape_cast %444 : vector<1x128xi1> to vector<1x128xi1>
    %447 = vector.broadcast %446 : vector<1x128xi1> to vector<8x128xi1>
    %448 = arith.select %447, %445, %440 : vector<8x128xi1>, vector<8x128xf32>
    %c6_162 = arith.constant 6 : index
    %c8_163 = arith.constant 8 : index
    %c0_164 = arith.constant 0 : index
    %449 = vector.load %arg3[%c6_162, %c8_163, %c0_164] : memref<14x32x1xf32, #tpu.memory_space<vmem>>, vector<1x8x1xf32>
    %450 = vector.shape_cast %449 : vector<1x8x1xf32> to vector<8x1xf32>
    %451 = vector.shape_cast %444 : vector<1x128xi1> to vector<1x128xi1>
    %452 = vector.broadcast %451 : vector<1x128xi1> to vector<8x128xi1>
    %453 = vector.shape_cast %450 : vector<8x1xf32> to vector<8x1xf32>
    %454 = vector.broadcast %453 : vector<8x1xf32> to vector<8x128xf32>
    %455 = vector.shape_cast %442 : vector<8x1xf32> to vector<8x1xf32>
    %456 = vector.broadcast %455 : vector<8x1xf32> to vector<8x128xf32>
    %457 = arith.select %452, %454, %456 : vector<8x128xi1>, vector<8x128xf32>
    %c2_i32_165 = arith.constant 2 : i32
    %458 = vector.broadcast %c2_i32_165 : i32 to vector<1x128xi32>
    %459 = arith.cmpi eq, %431, %458 : vector<1x128xi32>
    %460 = vector.extract_strided_slice %439 {offsets = [16, 0], sizes = [8, 128], strides = [1, 1]} : vector<32x128xf32> to vector<8x128xf32>
    %461 = vector.shape_cast %459 : vector<1x128xi1> to vector<1x128xi1>
    %462 = vector.broadcast %461 : vector<1x128xi1> to vector<8x128xi1>
    %463 = arith.select %462, %460, %448 : vector<8x128xi1>, vector<8x128xf32>
    %c6_166 = arith.constant 6 : index
    %c16_167 = arith.constant 16 : index
    %c0_168 = arith.constant 0 : index
    %464 = vector.load %arg3[%c6_166, %c16_167, %c0_168] : memref<14x32x1xf32, #tpu.memory_space<vmem>>, vector<1x8x1xf32>
    %465 = vector.shape_cast %464 : vector<1x8x1xf32> to vector<8x1xf32>
    %466 = vector.shape_cast %459 : vector<1x128xi1> to vector<1x128xi1>
    %467 = vector.broadcast %466 : vector<1x128xi1> to vector<8x128xi1>
    %468 = vector.shape_cast %465 : vector<8x1xf32> to vector<8x1xf32>
    %469 = vector.broadcast %468 : vector<8x1xf32> to vector<8x128xf32>
    %470 = arith.select %467, %469, %457 : vector<8x128xi1>, vector<8x128xf32>
    %c3_i32_169 = arith.constant 3 : i32
    %471 = vector.broadcast %c3_i32_169 : i32 to vector<1x128xi32>
    %472 = arith.cmpi eq, %431, %471 : vector<1x128xi32>
    %473 = vector.extract_strided_slice %439 {offsets = [24, 0], sizes = [8, 128], strides = [1, 1]} : vector<32x128xf32> to vector<8x128xf32>
    %474 = vector.shape_cast %472 : vector<1x128xi1> to vector<1x128xi1>
    %475 = vector.broadcast %474 : vector<1x128xi1> to vector<8x128xi1>
    %476 = arith.select %475, %473, %463 : vector<8x128xi1>, vector<8x128xf32>
    %c6_170 = arith.constant 6 : index
    %c24_171 = arith.constant 24 : index
    %c0_172 = arith.constant 0 : index
    %477 = vector.load %arg3[%c6_170, %c24_171, %c0_172] : memref<14x32x1xf32, #tpu.memory_space<vmem>>, vector<1x8x1xf32>
    %478 = vector.shape_cast %477 : vector<1x8x1xf32> to vector<8x1xf32>
    %479 = vector.shape_cast %472 : vector<1x128xi1> to vector<1x128xi1>
    %480 = vector.broadcast %479 : vector<1x128xi1> to vector<8x128xi1>
    %481 = vector.shape_cast %478 : vector<8x1xf32> to vector<8x1xf32>
    %482 = vector.broadcast %481 : vector<8x1xf32> to vector<8x128xf32>
    %483 = arith.select %480, %482, %470 : vector<8x128xi1>, vector<8x128xf32>
    %484 = math.log %476 : vector<8x128xf32>
    %485 = arith.addf %484, %483 : vector<8x128xf32>
    %486 = vector.broadcast %433 : vector<1x128xf32> to vector<8x128xf32>
    %487 = arith.addf %485, %486 : vector<8x128xf32>
    %c6_173 = arith.constant 6 : index
    %c0_174 = arith.constant 0 : index
    %488 = vector.load %arg1[%c6_173, %c0_174] : memref<16x128xi32, #tpu.memory_space<vmem>>, vector<1x128xi32>
    %cst_175 = arith.constant dense<0xFF800000> : vector<128xf32>
    %489 = vector.multi_reduction <maximumf>, %487, %cst_175 [0] : vector<8x128xf32> to vector<128xf32>
    %490 = vector.shape_cast %489 : vector<128xf32> to vector<1x128xf32>
    %491 = vector.broadcast %490 : vector<1x128xf32> to vector<8x128xf32>
    %492 = arith.subf %487, %491 : vector<8x128xf32>
    %493 = math.exp %492 : vector<8x128xf32>
    %c5 = arith.constant 5 : index
    %c0_176 = arith.constant 0 : index
    %c0_177 = arith.constant 0 : index
    %494 = vector.load %arg2[%c5, %c0_176, %c0_177] : memref<14x32x8xf32, #tpu.memory_space<vmem>>, vector<1x32x8xf32>
    %495 = vector.shape_cast %494 : vector<1x32x8xf32> to vector<32x8xf32>
    %cst_178 = arith.constant dense<0.000000e+00> : vector<32x128xf32>
    %496 = tpu.matmul %495, %493, %cst_178 {dimension_numbers = #tpu.dot_dimension_numbers<[1], [0], [0], [1], [0, 0, 1, 1], [], []>} : vector<32x8xf32>, vector<8x128xf32>, vector<32x128xf32> -> vector<32x128xf32>
    %497 = vector.extract_strided_slice %496 {offsets = [0, 0], sizes = [8, 128], strides = [1, 1]} : vector<32x128xf32> to vector<8x128xf32>
    %c5_179 = arith.constant 5 : index
    %c0_180 = arith.constant 0 : index
    %c0_181 = arith.constant 0 : index
    %498 = vector.load %arg3[%c5_179, %c0_180, %c0_181] : memref<14x32x1xf32, #tpu.memory_space<vmem>>, vector<1x8x1xf32>
    %499 = vector.shape_cast %498 : vector<1x8x1xf32> to vector<8x1xf32>
    %c1_i32_182 = arith.constant 1 : i32
    %500 = vector.broadcast %c1_i32_182 : i32 to vector<1x128xi32>
    %501 = arith.cmpi eq, %488, %500 : vector<1x128xi32>
    %502 = vector.extract_strided_slice %496 {offsets = [8, 0], sizes = [8, 128], strides = [1, 1]} : vector<32x128xf32> to vector<8x128xf32>
    %503 = vector.shape_cast %501 : vector<1x128xi1> to vector<1x128xi1>
    %504 = vector.broadcast %503 : vector<1x128xi1> to vector<8x128xi1>
    %505 = arith.select %504, %502, %497 : vector<8x128xi1>, vector<8x128xf32>
    %c5_183 = arith.constant 5 : index
    %c8_184 = arith.constant 8 : index
    %c0_185 = arith.constant 0 : index
    %506 = vector.load %arg3[%c5_183, %c8_184, %c0_185] : memref<14x32x1xf32, #tpu.memory_space<vmem>>, vector<1x8x1xf32>
    %507 = vector.shape_cast %506 : vector<1x8x1xf32> to vector<8x1xf32>
    %508 = vector.shape_cast %501 : vector<1x128xi1> to vector<1x128xi1>
    %509 = vector.broadcast %508 : vector<1x128xi1> to vector<8x128xi1>
    %510 = vector.shape_cast %507 : vector<8x1xf32> to vector<8x1xf32>
    %511 = vector.broadcast %510 : vector<8x1xf32> to vector<8x128xf32>
    %512 = vector.shape_cast %499 : vector<8x1xf32> to vector<8x1xf32>
    %513 = vector.broadcast %512 : vector<8x1xf32> to vector<8x128xf32>
    %514 = arith.select %509, %511, %513 : vector<8x128xi1>, vector<8x128xf32>
    %c2_i32_186 = arith.constant 2 : i32
    %515 = vector.broadcast %c2_i32_186 : i32 to vector<1x128xi32>
    %516 = arith.cmpi eq, %488, %515 : vector<1x128xi32>
    %517 = vector.extract_strided_slice %496 {offsets = [16, 0], sizes = [8, 128], strides = [1, 1]} : vector<32x128xf32> to vector<8x128xf32>
    %518 = vector.shape_cast %516 : vector<1x128xi1> to vector<1x128xi1>
    %519 = vector.broadcast %518 : vector<1x128xi1> to vector<8x128xi1>
    %520 = arith.select %519, %517, %505 : vector<8x128xi1>, vector<8x128xf32>
    %c5_187 = arith.constant 5 : index
    %c16_188 = arith.constant 16 : index
    %c0_189 = arith.constant 0 : index
    %521 = vector.load %arg3[%c5_187, %c16_188, %c0_189] : memref<14x32x1xf32, #tpu.memory_space<vmem>>, vector<1x8x1xf32>
    %522 = vector.shape_cast %521 : vector<1x8x1xf32> to vector<8x1xf32>
    %523 = vector.shape_cast %516 : vector<1x128xi1> to vector<1x128xi1>
    %524 = vector.broadcast %523 : vector<1x128xi1> to vector<8x128xi1>
    %525 = vector.shape_cast %522 : vector<8x1xf32> to vector<8x1xf32>
    %526 = vector.broadcast %525 : vector<8x1xf32> to vector<8x128xf32>
    %527 = arith.select %524, %526, %514 : vector<8x128xi1>, vector<8x128xf32>
    %c3_i32_190 = arith.constant 3 : i32
    %528 = vector.broadcast %c3_i32_190 : i32 to vector<1x128xi32>
    %529 = arith.cmpi eq, %488, %528 : vector<1x128xi32>
    %530 = vector.extract_strided_slice %496 {offsets = [24, 0], sizes = [8, 128], strides = [1, 1]} : vector<32x128xf32> to vector<8x128xf32>
    %531 = vector.shape_cast %529 : vector<1x128xi1> to vector<1x128xi1>
    %532 = vector.broadcast %531 : vector<1x128xi1> to vector<8x128xi1>
    %533 = arith.select %532, %530, %520 : vector<8x128xi1>, vector<8x128xf32>
    %c5_191 = arith.constant 5 : index
    %c24_192 = arith.constant 24 : index
    %c0_193 = arith.constant 0 : index
    %534 = vector.load %arg3[%c5_191, %c24_192, %c0_193] : memref<14x32x1xf32, #tpu.memory_space<vmem>>, vector<1x8x1xf32>
    %535 = vector.shape_cast %534 : vector<1x8x1xf32> to vector<8x1xf32>
    %536 = vector.shape_cast %529 : vector<1x128xi1> to vector<1x128xi1>
    %537 = vector.broadcast %536 : vector<1x128xi1> to vector<8x128xi1>
    %538 = vector.shape_cast %535 : vector<8x1xf32> to vector<8x1xf32>
    %539 = vector.broadcast %538 : vector<8x1xf32> to vector<8x128xf32>
    %540 = arith.select %537, %539, %527 : vector<8x128xi1>, vector<8x128xf32>
    %541 = math.log %533 : vector<8x128xf32>
    %542 = arith.addf %541, %540 : vector<8x128xf32>
    %543 = vector.broadcast %490 : vector<1x128xf32> to vector<8x128xf32>
    %544 = arith.addf %542, %543 : vector<8x128xf32>
    %c5_194 = arith.constant 5 : index
    %c0_195 = arith.constant 0 : index
    %545 = vector.load %arg1[%c5_194, %c0_195] : memref<16x128xi32, #tpu.memory_space<vmem>>, vector<1x128xi32>
    %cst_196 = arith.constant dense<0xFF800000> : vector<128xf32>
    %546 = vector.multi_reduction <maximumf>, %544, %cst_196 [0] : vector<8x128xf32> to vector<128xf32>
    %547 = vector.shape_cast %546 : vector<128xf32> to vector<1x128xf32>
    %548 = vector.broadcast %547 : vector<1x128xf32> to vector<8x128xf32>
    %549 = arith.subf %544, %548 : vector<8x128xf32>
    %550 = math.exp %549 : vector<8x128xf32>
    %c4 = arith.constant 4 : index
    %c0_197 = arith.constant 0 : index
    %c0_198 = arith.constant 0 : index
    %551 = vector.load %arg2[%c4, %c0_197, %c0_198] : memref<14x32x8xf32, #tpu.memory_space<vmem>>, vector<1x32x8xf32>
    %552 = vector.shape_cast %551 : vector<1x32x8xf32> to vector<32x8xf32>
    %cst_199 = arith.constant dense<0.000000e+00> : vector<32x128xf32>
    %553 = tpu.matmul %552, %550, %cst_199 {dimension_numbers = #tpu.dot_dimension_numbers<[1], [0], [0], [1], [0, 0, 1, 1], [], []>} : vector<32x8xf32>, vector<8x128xf32>, vector<32x128xf32> -> vector<32x128xf32>
    %554 = vector.extract_strided_slice %553 {offsets = [0, 0], sizes = [8, 128], strides = [1, 1]} : vector<32x128xf32> to vector<8x128xf32>
    %c4_200 = arith.constant 4 : index
    %c0_201 = arith.constant 0 : index
    %c0_202 = arith.constant 0 : index
    %555 = vector.load %arg3[%c4_200, %c0_201, %c0_202] : memref<14x32x1xf32, #tpu.memory_space<vmem>>, vector<1x8x1xf32>
    %556 = vector.shape_cast %555 : vector<1x8x1xf32> to vector<8x1xf32>
    %c1_i32_203 = arith.constant 1 : i32
    %557 = vector.broadcast %c1_i32_203 : i32 to vector<1x128xi32>
    %558 = arith.cmpi eq, %545, %557 : vector<1x128xi32>
    %559 = vector.extract_strided_slice %553 {offsets = [8, 0], sizes = [8, 128], strides = [1, 1]} : vector<32x128xf32> to vector<8x128xf32>
    %560 = vector.shape_cast %558 : vector<1x128xi1> to vector<1x128xi1>
    %561 = vector.broadcast %560 : vector<1x128xi1> to vector<8x128xi1>
    %562 = arith.select %561, %559, %554 : vector<8x128xi1>, vector<8x128xf32>
    %c4_204 = arith.constant 4 : index
    %c8_205 = arith.constant 8 : index
    %c0_206 = arith.constant 0 : index
    %563 = vector.load %arg3[%c4_204, %c8_205, %c0_206] : memref<14x32x1xf32, #tpu.memory_space<vmem>>, vector<1x8x1xf32>
    %564 = vector.shape_cast %563 : vector<1x8x1xf32> to vector<8x1xf32>
    %565 = vector.shape_cast %558 : vector<1x128xi1> to vector<1x128xi1>
    %566 = vector.broadcast %565 : vector<1x128xi1> to vector<8x128xi1>
    %567 = vector.shape_cast %564 : vector<8x1xf32> to vector<8x1xf32>
    %568 = vector.broadcast %567 : vector<8x1xf32> to vector<8x128xf32>
    %569 = vector.shape_cast %556 : vector<8x1xf32> to vector<8x1xf32>
    %570 = vector.broadcast %569 : vector<8x1xf32> to vector<8x128xf32>
    %571 = arith.select %566, %568, %570 : vector<8x128xi1>, vector<8x128xf32>
    %c2_i32_207 = arith.constant 2 : i32
    %572 = vector.broadcast %c2_i32_207 : i32 to vector<1x128xi32>
    %573 = arith.cmpi eq, %545, %572 : vector<1x128xi32>
    %574 = vector.extract_strided_slice %553 {offsets = [16, 0], sizes = [8, 128], strides = [1, 1]} : vector<32x128xf32> to vector<8x128xf32>
    %575 = vector.shape_cast %573 : vector<1x128xi1> to vector<1x128xi1>
    %576 = vector.broadcast %575 : vector<1x128xi1> to vector<8x128xi1>
    %577 = arith.select %576, %574, %562 : vector<8x128xi1>, vector<8x128xf32>
    %c4_208 = arith.constant 4 : index
    %c16_209 = arith.constant 16 : index
    %c0_210 = arith.constant 0 : index
    %578 = vector.load %arg3[%c4_208, %c16_209, %c0_210] : memref<14x32x1xf32, #tpu.memory_space<vmem>>, vector<1x8x1xf32>
    %579 = vector.shape_cast %578 : vector<1x8x1xf32> to vector<8x1xf32>
    %580 = vector.shape_cast %573 : vector<1x128xi1> to vector<1x128xi1>
    %581 = vector.broadcast %580 : vector<1x128xi1> to vector<8x128xi1>
    %582 = vector.shape_cast %579 : vector<8x1xf32> to vector<8x1xf32>
    %583 = vector.broadcast %582 : vector<8x1xf32> to vector<8x128xf32>
    %584 = arith.select %581, %583, %571 : vector<8x128xi1>, vector<8x128xf32>
    %c3_i32_211 = arith.constant 3 : i32
    %585 = vector.broadcast %c3_i32_211 : i32 to vector<1x128xi32>
    %586 = arith.cmpi eq, %545, %585 : vector<1x128xi32>
    %587 = vector.extract_strided_slice %553 {offsets = [24, 0], sizes = [8, 128], strides = [1, 1]} : vector<32x128xf32> to vector<8x128xf32>
    %588 = vector.shape_cast %586 : vector<1x128xi1> to vector<1x128xi1>
    %589 = vector.broadcast %588 : vector<1x128xi1> to vector<8x128xi1>
    %590 = arith.select %589, %587, %577 : vector<8x128xi1>, vector<8x128xf32>
    %c4_212 = arith.constant 4 : index
    %c24_213 = arith.constant 24 : index
    %c0_214 = arith.constant 0 : index
    %591 = vector.load %arg3[%c4_212, %c24_213, %c0_214] : memref<14x32x1xf32, #tpu.memory_space<vmem>>, vector<1x8x1xf32>
    %592 = vector.shape_cast %591 : vector<1x8x1xf32> to vector<8x1xf32>
    %593 = vector.shape_cast %586 : vector<1x128xi1> to vector<1x128xi1>
    %594 = vector.broadcast %593 : vector<1x128xi1> to vector<8x128xi1>
    %595 = vector.shape_cast %592 : vector<8x1xf32> to vector<8x1xf32>
    %596 = vector.broadcast %595 : vector<8x1xf32> to vector<8x128xf32>
    %597 = arith.select %594, %596, %584 : vector<8x128xi1>, vector<8x128xf32>
    %598 = math.log %590 : vector<8x128xf32>
    %599 = arith.addf %598, %597 : vector<8x128xf32>
    %600 = vector.broadcast %547 : vector<1x128xf32> to vector<8x128xf32>
    %601 = arith.addf %599, %600 : vector<8x128xf32>
    %c4_215 = arith.constant 4 : index
    %c0_216 = arith.constant 0 : index
    %602 = vector.load %arg1[%c4_215, %c0_216] : memref<16x128xi32, #tpu.memory_space<vmem>>, vector<1x128xi32>
    %cst_217 = arith.constant dense<0xFF800000> : vector<128xf32>
    %603 = vector.multi_reduction <maximumf>, %601, %cst_217 [0] : vector<8x128xf32> to vector<128xf32>
    %604 = vector.shape_cast %603 : vector<128xf32> to vector<1x128xf32>
    %605 = vector.broadcast %604 : vector<1x128xf32> to vector<8x128xf32>
    %606 = arith.subf %601, %605 : vector<8x128xf32>
    %607 = math.exp %606 : vector<8x128xf32>
    %c3_218 = arith.constant 3 : index
    %c0_219 = arith.constant 0 : index
    %c0_220 = arith.constant 0 : index
    %608 = vector.load %arg2[%c3_218, %c0_219, %c0_220] : memref<14x32x8xf32, #tpu.memory_space<vmem>>, vector<1x32x8xf32>
    %609 = vector.shape_cast %608 : vector<1x32x8xf32> to vector<32x8xf32>
    %cst_221 = arith.constant dense<0.000000e+00> : vector<32x128xf32>
    %610 = tpu.matmul %609, %607, %cst_221 {dimension_numbers = #tpu.dot_dimension_numbers<[1], [0], [0], [1], [0, 0, 1, 1], [], []>} : vector<32x8xf32>, vector<8x128xf32>, vector<32x128xf32> -> vector<32x128xf32>
    %611 = vector.extract_strided_slice %610 {offsets = [0, 0], sizes = [8, 128], strides = [1, 1]} : vector<32x128xf32> to vector<8x128xf32>
    %c3_222 = arith.constant 3 : index
    %c0_223 = arith.constant 0 : index
    %c0_224 = arith.constant 0 : index
    %612 = vector.load %arg3[%c3_222, %c0_223, %c0_224] : memref<14x32x1xf32, #tpu.memory_space<vmem>>, vector<1x8x1xf32>
    %613 = vector.shape_cast %612 : vector<1x8x1xf32> to vector<8x1xf32>
    %c1_i32_225 = arith.constant 1 : i32
    %614 = vector.broadcast %c1_i32_225 : i32 to vector<1x128xi32>
    %615 = arith.cmpi eq, %602, %614 : vector<1x128xi32>
    %616 = vector.extract_strided_slice %610 {offsets = [8, 0], sizes = [8, 128], strides = [1, 1]} : vector<32x128xf32> to vector<8x128xf32>
    %617 = vector.shape_cast %615 : vector<1x128xi1> to vector<1x128xi1>
    %618 = vector.broadcast %617 : vector<1x128xi1> to vector<8x128xi1>
    %619 = arith.select %618, %616, %611 : vector<8x128xi1>, vector<8x128xf32>
    %c3_226 = arith.constant 3 : index
    %c8_227 = arith.constant 8 : index
    %c0_228 = arith.constant 0 : index
    %620 = vector.load %arg3[%c3_226, %c8_227, %c0_228] : memref<14x32x1xf32, #tpu.memory_space<vmem>>, vector<1x8x1xf32>
    %621 = vector.shape_cast %620 : vector<1x8x1xf32> to vector<8x1xf32>
    %622 = vector.shape_cast %615 : vector<1x128xi1> to vector<1x128xi1>
    %623 = vector.broadcast %622 : vector<1x128xi1> to vector<8x128xi1>
    %624 = vector.shape_cast %621 : vector<8x1xf32> to vector<8x1xf32>
    %625 = vector.broadcast %624 : vector<8x1xf32> to vector<8x128xf32>
    %626 = vector.shape_cast %613 : vector<8x1xf32> to vector<8x1xf32>
    %627 = vector.broadcast %626 : vector<8x1xf32> to vector<8x128xf32>
    %628 = arith.select %623, %625, %627 : vector<8x128xi1>, vector<8x128xf32>
    %c2_i32_229 = arith.constant 2 : i32
    %629 = vector.broadcast %c2_i32_229 : i32 to vector<1x128xi32>
    %630 = arith.cmpi eq, %602, %629 : vector<1x128xi32>
    %631 = vector.extract_strided_slice %610 {offsets = [16, 0], sizes = [8, 128], strides = [1, 1]} : vector<32x128xf32> to vector<8x128xf32>
    %632 = vector.shape_cast %630 : vector<1x128xi1> to vector<1x128xi1>
    %633 = vector.broadcast %632 : vector<1x128xi1> to vector<8x128xi1>
    %634 = arith.select %633, %631, %619 : vector<8x128xi1>, vector<8x128xf32>
    %c3_230 = arith.constant 3 : index
    %c16_231 = arith.constant 16 : index
    %c0_232 = arith.constant 0 : index
    %635 = vector.load %arg3[%c3_230, %c16_231, %c0_232] : memref<14x32x1xf32, #tpu.memory_space<vmem>>, vector<1x8x1xf32>
    %636 = vector.shape_cast %635 : vector<1x8x1xf32> to vector<8x1xf32>
    %637 = vector.shape_cast %630 : vector<1x128xi1> to vector<1x128xi1>
    %638 = vector.broadcast %637 : vector<1x128xi1> to vector<8x128xi1>
    %639 = vector.shape_cast %636 : vector<8x1xf32> to vector<8x1xf32>
    %640 = vector.broadcast %639 : vector<8x1xf32> to vector<8x128xf32>
    %641 = arith.select %638, %640, %628 : vector<8x128xi1>, vector<8x128xf32>
    %c3_i32_233 = arith.constant 3 : i32
    %642 = vector.broadcast %c3_i32_233 : i32 to vector<1x128xi32>
    %643 = arith.cmpi eq, %602, %642 : vector<1x128xi32>
    %644 = vector.extract_strided_slice %610 {offsets = [24, 0], sizes = [8, 128], strides = [1, 1]} : vector<32x128xf32> to vector<8x128xf32>
    %645 = vector.shape_cast %643 : vector<1x128xi1> to vector<1x128xi1>
    %646 = vector.broadcast %645 : vector<1x128xi1> to vector<8x128xi1>
    %647 = arith.select %646, %644, %634 : vector<8x128xi1>, vector<8x128xf32>
    %c3_234 = arith.constant 3 : index
    %c24_235 = arith.constant 24 : index
    %c0_236 = arith.constant 0 : index
    %648 = vector.load %arg3[%c3_234, %c24_235, %c0_236] : memref<14x32x1xf32, #tpu.memory_space<vmem>>, vector<1x8x1xf32>
    %649 = vector.shape_cast %648 : vector<1x8x1xf32> to vector<8x1xf32>
    %650 = vector.shape_cast %643 : vector<1x128xi1> to vector<1x128xi1>
    %651 = vector.broadcast %650 : vector<1x128xi1> to vector<8x128xi1>
    %652 = vector.shape_cast %649 : vector<8x1xf32> to vector<8x1xf32>
    %653 = vector.broadcast %652 : vector<8x1xf32> to vector<8x128xf32>
    %654 = arith.select %651, %653, %641 : vector<8x128xi1>, vector<8x128xf32>
    %655 = math.log %647 : vector<8x128xf32>
    %656 = arith.addf %655, %654 : vector<8x128xf32>
    %657 = vector.broadcast %604 : vector<1x128xf32> to vector<8x128xf32>
    %658 = arith.addf %656, %657 : vector<8x128xf32>
    %c3_237 = arith.constant 3 : index
    %c0_238 = arith.constant 0 : index
    %659 = vector.load %arg1[%c3_237, %c0_238] : memref<16x128xi32, #tpu.memory_space<vmem>>, vector<1x128xi32>
    %cst_239 = arith.constant dense<0xFF800000> : vector<128xf32>
    %660 = vector.multi_reduction <maximumf>, %658, %cst_239 [0] : vector<8x128xf32> to vector<128xf32>
    %661 = vector.shape_cast %660 : vector<128xf32> to vector<1x128xf32>
    %662 = vector.broadcast %661 : vector<1x128xf32> to vector<8x128xf32>
    %663 = arith.subf %658, %662 : vector<8x128xf32>
    %664 = math.exp %663 : vector<8x128xf32>
    %c2_240 = arith.constant 2 : index
    %c0_241 = arith.constant 0 : index
    %c0_242 = arith.constant 0 : index
    %665 = vector.load %arg2[%c2_240, %c0_241, %c0_242] : memref<14x32x8xf32, #tpu.memory_space<vmem>>, vector<1x32x8xf32>
    %666 = vector.shape_cast %665 : vector<1x32x8xf32> to vector<32x8xf32>
    %cst_243 = arith.constant dense<0.000000e+00> : vector<32x128xf32>
    %667 = tpu.matmul %666, %664, %cst_243 {dimension_numbers = #tpu.dot_dimension_numbers<[1], [0], [0], [1], [0, 0, 1, 1], [], []>} : vector<32x8xf32>, vector<8x128xf32>, vector<32x128xf32> -> vector<32x128xf32>
    %668 = vector.extract_strided_slice %667 {offsets = [0, 0], sizes = [8, 128], strides = [1, 1]} : vector<32x128xf32> to vector<8x128xf32>
    %c2_244 = arith.constant 2 : index
    %c0_245 = arith.constant 0 : index
    %c0_246 = arith.constant 0 : index
    %669 = vector.load %arg3[%c2_244, %c0_245, %c0_246] : memref<14x32x1xf32, #tpu.memory_space<vmem>>, vector<1x8x1xf32>
    %670 = vector.shape_cast %669 : vector<1x8x1xf32> to vector<8x1xf32>
    %c1_i32_247 = arith.constant 1 : i32
    %671 = vector.broadcast %c1_i32_247 : i32 to vector<1x128xi32>
    %672 = arith.cmpi eq, %659, %671 : vector<1x128xi32>
    %673 = vector.extract_strided_slice %667 {offsets = [8, 0], sizes = [8, 128], strides = [1, 1]} : vector<32x128xf32> to vector<8x128xf32>
    %674 = vector.shape_cast %672 : vector<1x128xi1> to vector<1x128xi1>
    %675 = vector.broadcast %674 : vector<1x128xi1> to vector<8x128xi1>
    %676 = arith.select %675, %673, %668 : vector<8x128xi1>, vector<8x128xf32>
    %c2_248 = arith.constant 2 : index
    %c8_249 = arith.constant 8 : index
    %c0_250 = arith.constant 0 : index
    %677 = vector.load %arg3[%c2_248, %c8_249, %c0_250] : memref<14x32x1xf32, #tpu.memory_space<vmem>>, vector<1x8x1xf32>
    %678 = vector.shape_cast %677 : vector<1x8x1xf32> to vector<8x1xf32>
    %679 = vector.shape_cast %672 : vector<1x128xi1> to vector<1x128xi1>
    %680 = vector.broadcast %679 : vector<1x128xi1> to vector<8x128xi1>
    %681 = vector.shape_cast %678 : vector<8x1xf32> to vector<8x1xf32>
    %682 = vector.broadcast %681 : vector<8x1xf32> to vector<8x128xf32>
    %683 = vector.shape_cast %670 : vector<8x1xf32> to vector<8x1xf32>
    %684 = vector.broadcast %683 : vector<8x1xf32> to vector<8x128xf32>
    %685 = arith.select %680, %682, %684 : vector<8x128xi1>, vector<8x128xf32>
    %c2_i32_251 = arith.constant 2 : i32
    %686 = vector.broadcast %c2_i32_251 : i32 to vector<1x128xi32>
    %687 = arith.cmpi eq, %659, %686 : vector<1x128xi32>
    %688 = vector.extract_strided_slice %667 {offsets = [16, 0], sizes = [8, 128], strides = [1, 1]} : vector<32x128xf32> to vector<8x128xf32>
    %689 = vector.shape_cast %687 : vector<1x128xi1> to vector<1x128xi1>
    %690 = vector.broadcast %689 : vector<1x128xi1> to vector<8x128xi1>
    %691 = arith.select %690, %688, %676 : vector<8x128xi1>, vector<8x128xf32>
    %c2_252 = arith.constant 2 : index
    %c16_253 = arith.constant 16 : index
    %c0_254 = arith.constant 0 : index
    %692 = vector.load %arg3[%c2_252, %c16_253, %c0_254] : memref<14x32x1xf32, #tpu.memory_space<vmem>>, vector<1x8x1xf32>
    %693 = vector.shape_cast %692 : vector<1x8x1xf32> to vector<8x1xf32>
    %694 = vector.shape_cast %687 : vector<1x128xi1> to vector<1x128xi1>
    %695 = vector.broadcast %694 : vector<1x128xi1> to vector<8x128xi1>
    %696 = vector.shape_cast %693 : vector<8x1xf32> to vector<8x1xf32>
    %697 = vector.broadcast %696 : vector<8x1xf32> to vector<8x128xf32>
    %698 = arith.select %695, %697, %685 : vector<8x128xi1>, vector<8x128xf32>
    %c3_i32_255 = arith.constant 3 : i32
    %699 = vector.broadcast %c3_i32_255 : i32 to vector<1x128xi32>
    %700 = arith.cmpi eq, %659, %699 : vector<1x128xi32>
    %701 = vector.extract_strided_slice %667 {offsets = [24, 0], sizes = [8, 128], strides = [1, 1]} : vector<32x128xf32> to vector<8x128xf32>
    %702 = vector.shape_cast %700 : vector<1x128xi1> to vector<1x128xi1>
    %703 = vector.broadcast %702 : vector<1x128xi1> to vector<8x128xi1>
    %704 = arith.select %703, %701, %691 : vector<8x128xi1>, vector<8x128xf32>
    %c2_256 = arith.constant 2 : index
    %c24_257 = arith.constant 24 : index
    %c0_258 = arith.constant 0 : index
    %705 = vector.load %arg3[%c2_256, %c24_257, %c0_258] : memref<14x32x1xf32, #tpu.memory_space<vmem>>, vector<1x8x1xf32>
    %706 = vector.shape_cast %705 : vector<1x8x1xf32> to vector<8x1xf32>
    %707 = vector.shape_cast %700 : vector<1x128xi1> to vector<1x128xi1>
    %708 = vector.broadcast %707 : vector<1x128xi1> to vector<8x128xi1>
    %709 = vector.shape_cast %706 : vector<8x1xf32> to vector<8x1xf32>
    %710 = vector.broadcast %709 : vector<8x1xf32> to vector<8x128xf32>
    %711 = arith.select %708, %710, %698 : vector<8x128xi1>, vector<8x128xf32>
    %712 = math.log %704 : vector<8x128xf32>
    %713 = arith.addf %712, %711 : vector<8x128xf32>
    %714 = vector.broadcast %661 : vector<1x128xf32> to vector<8x128xf32>
    %715 = arith.addf %713, %714 : vector<8x128xf32>
    %c2_259 = arith.constant 2 : index
    %c0_260 = arith.constant 0 : index
    %716 = vector.load %arg1[%c2_259, %c0_260] : memref<16x128xi32, #tpu.memory_space<vmem>>, vector<1x128xi32>
    %cst_261 = arith.constant dense<0xFF800000> : vector<128xf32>
    %717 = vector.multi_reduction <maximumf>, %715, %cst_261 [0] : vector<8x128xf32> to vector<128xf32>
    %718 = vector.shape_cast %717 : vector<128xf32> to vector<1x128xf32>
    %719 = vector.broadcast %718 : vector<1x128xf32> to vector<8x128xf32>
    %720 = arith.subf %715, %719 : vector<8x128xf32>
    %721 = math.exp %720 : vector<8x128xf32>
    %c1_262 = arith.constant 1 : index
    %c0_263 = arith.constant 0 : index
    %c0_264 = arith.constant 0 : index
    %722 = vector.load %arg2[%c1_262, %c0_263, %c0_264] : memref<14x32x8xf32, #tpu.memory_space<vmem>>, vector<1x32x8xf32>
    %723 = vector.shape_cast %722 : vector<1x32x8xf32> to vector<32x8xf32>
    %cst_265 = arith.constant dense<0.000000e+00> : vector<32x128xf32>
    %724 = tpu.matmul %723, %721, %cst_265 {dimension_numbers = #tpu.dot_dimension_numbers<[1], [0], [0], [1], [0, 0, 1, 1], [], []>} : vector<32x8xf32>, vector<8x128xf32>, vector<32x128xf32> -> vector<32x128xf32>
    %725 = vector.extract_strided_slice %724 {offsets = [0, 0], sizes = [8, 128], strides = [1, 1]} : vector<32x128xf32> to vector<8x128xf32>
    %c1_266 = arith.constant 1 : index
    %c0_267 = arith.constant 0 : index
    %c0_268 = arith.constant 0 : index
    %726 = vector.load %arg3[%c1_266, %c0_267, %c0_268] : memref<14x32x1xf32, #tpu.memory_space<vmem>>, vector<1x8x1xf32>
    %727 = vector.shape_cast %726 : vector<1x8x1xf32> to vector<8x1xf32>
    %c1_i32_269 = arith.constant 1 : i32
    %728 = vector.broadcast %c1_i32_269 : i32 to vector<1x128xi32>
    %729 = arith.cmpi eq, %716, %728 : vector<1x128xi32>
    %730 = vector.extract_strided_slice %724 {offsets = [8, 0], sizes = [8, 128], strides = [1, 1]} : vector<32x128xf32> to vector<8x128xf32>
    %731 = vector.shape_cast %729 : vector<1x128xi1> to vector<1x128xi1>
    %732 = vector.broadcast %731 : vector<1x128xi1> to vector<8x128xi1>
    %733 = arith.select %732, %730, %725 : vector<8x128xi1>, vector<8x128xf32>
    %c1_270 = arith.constant 1 : index
    %c8_271 = arith.constant 8 : index
    %c0_272 = arith.constant 0 : index
    %734 = vector.load %arg3[%c1_270, %c8_271, %c0_272] : memref<14x32x1xf32, #tpu.memory_space<vmem>>, vector<1x8x1xf32>
    %735 = vector.shape_cast %734 : vector<1x8x1xf32> to vector<8x1xf32>
    %736 = vector.shape_cast %729 : vector<1x128xi1> to vector<1x128xi1>
    %737 = vector.broadcast %736 : vector<1x128xi1> to vector<8x128xi1>
    %738 = vector.shape_cast %735 : vector<8x1xf32> to vector<8x1xf32>
    %739 = vector.broadcast %738 : vector<8x1xf32> to vector<8x128xf32>
    %740 = vector.shape_cast %727 : vector<8x1xf32> to vector<8x1xf32>
    %741 = vector.broadcast %740 : vector<8x1xf32> to vector<8x128xf32>
    %742 = arith.select %737, %739, %741 : vector<8x128xi1>, vector<8x128xf32>
    %c2_i32_273 = arith.constant 2 : i32
    %743 = vector.broadcast %c2_i32_273 : i32 to vector<1x128xi32>
    %744 = arith.cmpi eq, %716, %743 : vector<1x128xi32>
    %745 = vector.extract_strided_slice %724 {offsets = [16, 0], sizes = [8, 128], strides = [1, 1]} : vector<32x128xf32> to vector<8x128xf32>
    %746 = vector.shape_cast %744 : vector<1x128xi1> to vector<1x128xi1>
    %747 = vector.broadcast %746 : vector<1x128xi1> to vector<8x128xi1>
    %748 = arith.select %747, %745, %733 : vector<8x128xi1>, vector<8x128xf32>
    %c1_274 = arith.constant 1 : index
    %c16_275 = arith.constant 16 : index
    %c0_276 = arith.constant 0 : index
    %749 = vector.load %arg3[%c1_274, %c16_275, %c0_276] : memref<14x32x1xf32, #tpu.memory_space<vmem>>, vector<1x8x1xf32>
    %750 = vector.shape_cast %749 : vector<1x8x1xf32> to vector<8x1xf32>
    %751 = vector.shape_cast %744 : vector<1x128xi1> to vector<1x128xi1>
    %752 = vector.broadcast %751 : vector<1x128xi1> to vector<8x128xi1>
    %753 = vector.shape_cast %750 : vector<8x1xf32> to vector<8x1xf32>
    %754 = vector.broadcast %753 : vector<8x1xf32> to vector<8x128xf32>
    %755 = arith.select %752, %754, %742 : vector<8x128xi1>, vector<8x128xf32>
    %c3_i32_277 = arith.constant 3 : i32
    %756 = vector.broadcast %c3_i32_277 : i32 to vector<1x128xi32>
    %757 = arith.cmpi eq, %716, %756 : vector<1x128xi32>
    %758 = vector.extract_strided_slice %724 {offsets = [24, 0], sizes = [8, 128], strides = [1, 1]} : vector<32x128xf32> to vector<8x128xf32>
    %759 = vector.shape_cast %757 : vector<1x128xi1> to vector<1x128xi1>
    %760 = vector.broadcast %759 : vector<1x128xi1> to vector<8x128xi1>
    %761 = arith.select %760, %758, %748 : vector<8x128xi1>, vector<8x128xf32>
    %c1_278 = arith.constant 1 : index
    %c24_279 = arith.constant 24 : index
    %c0_280 = arith.constant 0 : index
    %762 = vector.load %arg3[%c1_278, %c24_279, %c0_280] : memref<14x32x1xf32, #tpu.memory_space<vmem>>, vector<1x8x1xf32>
    %763 = vector.shape_cast %762 : vector<1x8x1xf32> to vector<8x1xf32>
    %764 = vector.shape_cast %757 : vector<1x128xi1> to vector<1x128xi1>
    %765 = vector.broadcast %764 : vector<1x128xi1> to vector<8x128xi1>
    %766 = vector.shape_cast %763 : vector<8x1xf32> to vector<8x1xf32>
    %767 = vector.broadcast %766 : vector<8x1xf32> to vector<8x128xf32>
    %768 = arith.select %765, %767, %755 : vector<8x128xi1>, vector<8x128xf32>
    %769 = math.log %761 : vector<8x128xf32>
    %770 = arith.addf %769, %768 : vector<8x128xf32>
    %771 = vector.broadcast %718 : vector<1x128xf32> to vector<8x128xf32>
    %772 = arith.addf %770, %771 : vector<8x128xf32>
    %c1_281 = arith.constant 1 : index
    %c0_282 = arith.constant 0 : index
    %773 = vector.load %arg1[%c1_281, %c0_282] : memref<16x128xi32, #tpu.memory_space<vmem>>, vector<1x128xi32>
    %cst_283 = arith.constant dense<0xFF800000> : vector<128xf32>
    %774 = vector.multi_reduction <maximumf>, %772, %cst_283 [0] : vector<8x128xf32> to vector<128xf32>
    %775 = vector.shape_cast %774 : vector<128xf32> to vector<1x128xf32>
    %776 = vector.broadcast %775 : vector<1x128xf32> to vector<8x128xf32>
    %777 = arith.subf %772, %776 : vector<8x128xf32>
    %778 = math.exp %777 : vector<8x128xf32>
    %c0_284 = arith.constant 0 : index
    %c0_285 = arith.constant 0 : index
    %c0_286 = arith.constant 0 : index
    %779 = vector.load %arg2[%c0_284, %c0_285, %c0_286] : memref<14x32x8xf32, #tpu.memory_space<vmem>>, vector<1x32x8xf32>
    %780 = vector.shape_cast %779 : vector<1x32x8xf32> to vector<32x8xf32>
    %cst_287 = arith.constant dense<0.000000e+00> : vector<32x128xf32>
    %781 = tpu.matmul %780, %778, %cst_287 {dimension_numbers = #tpu.dot_dimension_numbers<[1], [0], [0], [1], [0, 0, 1, 1], [], []>} : vector<32x8xf32>, vector<8x128xf32>, vector<32x128xf32> -> vector<32x128xf32>
    %782 = vector.extract_strided_slice %781 {offsets = [0, 0], sizes = [8, 128], strides = [1, 1]} : vector<32x128xf32> to vector<8x128xf32>
    %c0_288 = arith.constant 0 : index
    %c0_289 = arith.constant 0 : index
    %c0_290 = arith.constant 0 : index
    %783 = vector.load %arg3[%c0_288, %c0_289, %c0_290] : memref<14x32x1xf32, #tpu.memory_space<vmem>>, vector<1x8x1xf32>
    %784 = vector.shape_cast %783 : vector<1x8x1xf32> to vector<8x1xf32>
    %c1_i32_291 = arith.constant 1 : i32
    %785 = vector.broadcast %c1_i32_291 : i32 to vector<1x128xi32>
    %786 = arith.cmpi eq, %773, %785 : vector<1x128xi32>
    %787 = vector.extract_strided_slice %781 {offsets = [8, 0], sizes = [8, 128], strides = [1, 1]} : vector<32x128xf32> to vector<8x128xf32>
    %788 = vector.shape_cast %786 : vector<1x128xi1> to vector<1x128xi1>
    %789 = vector.broadcast %788 : vector<1x128xi1> to vector<8x128xi1>
    %790 = arith.select %789, %787, %782 : vector<8x128xi1>, vector<8x128xf32>
    %c0_292 = arith.constant 0 : index
    %c8_293 = arith.constant 8 : index
    %c0_294 = arith.constant 0 : index
    %791 = vector.load %arg3[%c0_292, %c8_293, %c0_294] : memref<14x32x1xf32, #tpu.memory_space<vmem>>, vector<1x8x1xf32>
    %792 = vector.shape_cast %791 : vector<1x8x1xf32> to vector<8x1xf32>
    %793 = vector.shape_cast %786 : vector<1x128xi1> to vector<1x128xi1>
    %794 = vector.broadcast %793 : vector<1x128xi1> to vector<8x128xi1>
    %795 = vector.shape_cast %792 : vector<8x1xf32> to vector<8x1xf32>
    %796 = vector.broadcast %795 : vector<8x1xf32> to vector<8x128xf32>
    %797 = vector.shape_cast %784 : vector<8x1xf32> to vector<8x1xf32>
    %798 = vector.broadcast %797 : vector<8x1xf32> to vector<8x128xf32>
    %799 = arith.select %794, %796, %798 : vector<8x128xi1>, vector<8x128xf32>
    %c2_i32_295 = arith.constant 2 : i32
    %800 = vector.broadcast %c2_i32_295 : i32 to vector<1x128xi32>
    %801 = arith.cmpi eq, %773, %800 : vector<1x128xi32>
    %802 = vector.extract_strided_slice %781 {offsets = [16, 0], sizes = [8, 128], strides = [1, 1]} : vector<32x128xf32> to vector<8x128xf32>
    %803 = vector.shape_cast %801 : vector<1x128xi1> to vector<1x128xi1>
    %804 = vector.broadcast %803 : vector<1x128xi1> to vector<8x128xi1>
    %805 = arith.select %804, %802, %790 : vector<8x128xi1>, vector<8x128xf32>
    %c0_296 = arith.constant 0 : index
    %c16_297 = arith.constant 16 : index
    %c0_298 = arith.constant 0 : index
    %806 = vector.load %arg3[%c0_296, %c16_297, %c0_298] : memref<14x32x1xf32, #tpu.memory_space<vmem>>, vector<1x8x1xf32>
    %807 = vector.shape_cast %806 : vector<1x8x1xf32> to vector<8x1xf32>
    %808 = vector.shape_cast %801 : vector<1x128xi1> to vector<1x128xi1>
    %809 = vector.broadcast %808 : vector<1x128xi1> to vector<8x128xi1>
    %810 = vector.shape_cast %807 : vector<8x1xf32> to vector<8x1xf32>
    %811 = vector.broadcast %810 : vector<8x1xf32> to vector<8x128xf32>
    %812 = arith.select %809, %811, %799 : vector<8x128xi1>, vector<8x128xf32>
    %c3_i32_299 = arith.constant 3 : i32
    %813 = vector.broadcast %c3_i32_299 : i32 to vector<1x128xi32>
    %814 = arith.cmpi eq, %773, %813 : vector<1x128xi32>
    %815 = vector.extract_strided_slice %781 {offsets = [24, 0], sizes = [8, 128], strides = [1, 1]} : vector<32x128xf32> to vector<8x128xf32>
    %816 = vector.shape_cast %814 : vector<1x128xi1> to vector<1x128xi1>
    %817 = vector.broadcast %816 : vector<1x128xi1> to vector<8x128xi1>
    %818 = arith.select %817, %815, %805 : vector<8x128xi1>, vector<8x128xf32>
    %c0_300 = arith.constant 0 : index
    %c24_301 = arith.constant 24 : index
    %c0_302 = arith.constant 0 : index
    %819 = vector.load %arg3[%c0_300, %c24_301, %c0_302] : memref<14x32x1xf32, #tpu.memory_space<vmem>>, vector<1x8x1xf32>
    %820 = vector.shape_cast %819 : vector<1x8x1xf32> to vector<8x1xf32>
    %821 = vector.shape_cast %814 : vector<1x128xi1> to vector<1x128xi1>
    %822 = vector.broadcast %821 : vector<1x128xi1> to vector<8x128xi1>
    %823 = vector.shape_cast %820 : vector<8x1xf32> to vector<8x1xf32>
    %824 = vector.broadcast %823 : vector<8x1xf32> to vector<8x128xf32>
    %825 = arith.select %822, %824, %812 : vector<8x128xi1>, vector<8x128xf32>
    %826 = math.log %818 : vector<8x128xf32>
    %827 = arith.addf %826, %825 : vector<8x128xf32>
    %828 = vector.broadcast %775 : vector<1x128xf32> to vector<8x128xf32>
    %829 = arith.addf %827, %828 : vector<8x128xf32>
    %cst_303 = arith.constant dense<0xFF800000> : vector<128xf32>
    %830 = vector.multi_reduction <maximumf>, %829, %cst_303 [0] : vector<8x128xf32> to vector<128xf32>
    %831 = vector.shape_cast %830 : vector<128xf32> to vector<1x128xf32>
    %832 = vector.broadcast %831 : vector<1x128xf32> to vector<8x128xf32>
    %833 = arith.subf %829, %832 : vector<8x128xf32>
    %834 = math.exp %833 : vector<8x128xf32>
    %c0_304 = arith.constant 0 : index
    %c0_305 = arith.constant 0 : index
    %835 = vector.load %arg4[%c0_304, %c0_305] : memref<8x8xf32, #tpu.memory_space<vmem>>, vector<8x8xf32>
    %cst_306 = arith.constant dense<0.000000e+00> : vector<8x128xf32>
    %836 = tpu.matmul %835, %834, %cst_306 {dimension_numbers = #tpu.dot_dimension_numbers<[1], [0], [0], [1], [0, 0, 1, 1], [], []>} : vector<8x8xf32>, vector<8x128xf32>, vector<8x128xf32> -> vector<8x128xf32>
    %c0_307 = arith.constant 0 : index
    %c0_308 = arith.constant 0 : index
    %837 = vector.load %arg1[%c0_307, %c0_308] : memref<16x128xi32, #tpu.memory_space<vmem>>, vector<1x128xi32>
    %838 = vector.extract_strided_slice %836 {offsets = [0, 0], sizes = [1, 128], strides = [1, 1]} : vector<8x128xf32> to vector<1x128xf32>
    %c0_309 = arith.constant 0 : index
    %c0_310 = arith.constant 0 : index
    %839 = vector.load %arg5[%c0_309, %c0_310] : memref<8x1xf32, #tpu.memory_space<vmem>>, vector<1x1xf32>
    %c1_i32_311 = arith.constant 1 : i32
    %840 = vector.broadcast %c1_i32_311 : i32 to vector<1x128xi32>
    %841 = arith.cmpi eq, %837, %840 : vector<1x128xi32>
    %842 = vector.extract_strided_slice %836 {offsets = [1, 0], sizes = [1, 128], strides = [1, 1]} : vector<8x128xf32> to vector<1x128xf32>
    %843 = arith.select %841, %842, %838 : vector<1x128xi1>, vector<1x128xf32>
    %c1_312 = arith.constant 1 : index
    %c0_313 = arith.constant 0 : index
    %844 = vector.load %arg5[%c1_312, %c0_313] : memref<8x1xf32, #tpu.memory_space<vmem>>, vector<1x1xf32>
    %845 = vector.shape_cast %844 : vector<1x1xf32> to vector<1x1xf32>
    %846 = vector.broadcast %845 : vector<1x1xf32> to vector<1x128xf32>
    %847 = vector.shape_cast %839 : vector<1x1xf32> to vector<1x1xf32>
    %848 = vector.broadcast %847 : vector<1x1xf32> to vector<1x128xf32>
    %849 = arith.select %841, %846, %848 : vector<1x128xi1>, vector<1x128xf32>
    %c2_i32_314 = arith.constant 2 : i32
    %850 = vector.broadcast %c2_i32_314 : i32 to vector<1x128xi32>
    %851 = arith.cmpi eq, %837, %850 : vector<1x128xi32>
    %852 = vector.extract_strided_slice %836 {offsets = [2, 0], sizes = [1, 128], strides = [1, 1]} : vector<8x128xf32> to vector<1x128xf32>
    %853 = arith.select %851, %852, %843 : vector<1x128xi1>, vector<1x128xf32>
    %c2_315 = arith.constant 2 : index
    %c0_316 = arith.constant 0 : index
    %854 = vector.load %arg5[%c2_315, %c0_316] : memref<8x1xf32, #tpu.memory_space<vmem>>, vector<1x1xf32>
    %855 = vector.shape_cast %854 : vector<1x1xf32> to vector<1x1xf32>
    %856 = vector.broadcast %855 : vector<1x1xf32> to vector<1x128xf32>
    %857 = arith.select %851, %856, %849 : vector<1x128xi1>, vector<1x128xf32>
    %c3_i32_317 = arith.constant 3 : i32
    %858 = vector.broadcast %c3_i32_317 : i32 to vector<1x128xi32>
    %859 = arith.cmpi eq, %837, %858 : vector<1x128xi32>
    %860 = vector.extract_strided_slice %836 {offsets = [3, 0], sizes = [1, 128], strides = [1, 1]} : vector<8x128xf32> to vector<1x128xf32>
    %861 = arith.select %859, %860, %853 : vector<1x128xi1>, vector<1x128xf32>
    %c3_318 = arith.constant 3 : index
    %c0_319 = arith.constant 0 : index
    %862 = vector.load %arg5[%c3_318, %c0_319] : memref<8x1xf32, #tpu.memory_space<vmem>>, vector<1x1xf32>
    %863 = vector.shape_cast %862 : vector<1x1xf32> to vector<1x1xf32>
    %864 = vector.broadcast %863 : vector<1x1xf32> to vector<1x128xf32>
    %865 = arith.select %859, %864, %857 : vector<1x128xi1>, vector<1x128xf32>
    %866 = math.log %861 : vector<1x128xf32>
    %867 = arith.addf %866, %865 : vector<1x128xf32>
    %868 = arith.addf %867, %831 : vector<1x128xf32>
    %c0_320 = arith.constant 0 : index
    %c0_321 = arith.constant 0 : index
    %869 = vector.load %arg7[%c0_320, %c0_321] : memref<1x128xf32, #tpu.memory_space<vmem>>, vector<1x128xf32>
    tpu.vector_store %arg7[%c0_320, %c0_321], %868 {strides = array<i32>} : memref<1x128xf32, #tpu.memory_space<vmem>>, vector<1x128xf32>,
    return
  }
  func.func @transform_0(%arg0: i32) -> (i32, i32) {
    %c0_i32 = arith.constant 0 : i32
    %c0_i32_0 = arith.constant 0 : i32
    return %c0_i32, %arg0 : i32, i32
  }
  func.func @transform_1(%arg0: i32) -> (i32, i32, i32) {
    %c0_i32 = arith.constant 0 : i32
    %c0_i32_0 = arith.constant 0 : i32
    %c0_i32_1 = arith.constant 0 : i32
    %c0_i32_2 = arith.constant 0 : i32
    return %c0_i32, %c0_i32_0, %c0_i32_1 : i32, i32, i32
  }
  func.func @transform_2(%arg0: i32) -> (i32, i32, i32) {
    %c0_i32 = arith.constant 0 : i32
    %c0_i32_0 = arith.constant 0 : i32
    %c0_i32_1 = arith.constant 0 : i32
    %c0_i32_2 = arith.constant 0 : i32
    return %c0_i32, %c0_i32_0, %c0_i32_1 : i32, i32, i32
  }
  func.func @transform_3(%arg0: i32) -> (i32, i32) {
    %c0_i32 = arith.constant 0 : i32
    %c0_i32_0 = arith.constant 0 : i32
    %c0_i32_1 = arith.constant 0 : i32
    return %c0_i32, %c0_i32_0 : i32, i32
  }
  func.func @transform_4(%arg0: i32) -> (i32, i32) {
    %c0_i32 = arith.constant 0 : i32
    %c0_i32_0 = arith.constant 0 : i32
    %c0_i32_1 = arith.constant 0 : i32
    return %c0_i32, %c0_i32_0 : i32, i32
  }
  func.func @transform_5(%arg0: i32) -> (i32, i32, i32) {
    %c0_i32 = arith.constant 0 : i32
    %c0_i32_0 = arith.constant 0 : i32
    %c0_i32_1 = arith.constant 0 : i32
    %c0_i32_2 = arith.constant 0 : i32
    return %c0_i32, %c0_i32_0, %c0_i32_1 : i32, i32, i32
  }
  func.func @transform_6(%arg0: i32) -> (i32, i32) {
    %c0_i32 = arith.constant 0 : i32
    %c0_i32_0 = arith.constant 0 : i32
    return %c0_i32, %arg0 : i32, i32
  }
}

</mosaic_0001>

<llo_original>
// kernel: tpu_custom_call.1
$region0: #{tpu_custom_call.1}
  #allocation0 [shape = 'u32[]', space=smem, size = 0x4, offset = 0x4, fixed_abs, tag = 'smem constant byte address 0x4 - core index']
  #allocation1 [shape = 'u32[72,128]{1,0:T(1,128)}', space=vmem, size = 0x9000, scoped, tag = 'internal scratch']
  %s0 = inlined_call_operand.vmem [shape: s32[16,128], index: 0, kind: input, shape index: {}]
  %s1 = inlined_call_operand.vmem [shape: f32[14,32,8], index: 1, kind: input, shape index: {}]
  %s2 = inlined_call_operand.vmem [shape: f32[14,32,1], index: 2, kind: input, shape index: {}]
  %s3 = inlined_call_operand.vmem [shape: f32[8,8], index: 3, kind: input, shape index: {}]
  %s4 = inlined_call_operand.vmem [shape: f32[8,1], index: 4, kind: input, shape index: {}]
  %s5 = inlined_call_operand.vmem [shape: f32[4,8,1], index: 5, kind: input, shape index: {}]
  %s6 = inlined_call_operand.hbm [shape: f32[1,128], index: 6, kind: output, shape index: {}]
  %s7 = sld [smem:[#allocation0]]
  $region34: #{tpu_custom_call.1} parent=0
    _
  %s9 = ssub.s32 1, %s7
  %s10 = scalar_select 0, %s9, %s7
  $region1: #{tpu_custom_call.1} parent=0
    #allocation2 [shape = 'u8[512]{0}', space=vmem, size = 0x400, scoped, tag = 'output window, operand 0, single buffered']
    #allocation3 [shape = 's32[1]{0}', space=sflag, size = 0x4, scoped, tag = 'scoped memory for tpu_custom_call.1']
    %11 = vsyncpa [#allocation3], 0
    // Predicated region
    $region2: #{tpu_custom_call.1} parent=1 // pred_check
      _
    $region3: #{tpu_custom_call.1} parent=1 // pred_check_branch
      %13 = sbr.rel (0) target = $region5
    $region4: #{tpu_custom_call.1} parent=1 // pred_region
      _
    $region5: #{tpu_custom_call.1} parent=1 // pred_fallthru
      _
    // Predicated region
    $region6: #{tpu_custom_call.1} parent=1 // pred_check
      _
    $region7: #{tpu_custom_call.1} parent=1 // pred_check_branch
      %15 = sbr.rel (0) target = $region9
    $region8: #{tpu_custom_call.1} parent=1 // pred_region
      _
    $region9: #{tpu_custom_call.1} parent=1 // pred_fallthru
      _
    // Predicated region
    $region10: #{tpu_custom_call.1} parent=1 // pred_check
      _
    $region11: #{tpu_custom_call.1} parent=1 // pred_check_branch
      %17 = sbr.rel (0) target = $region13
    $region12: #{tpu_custom_call.1} parent=1 // pred_region
      _
    $region13: #{tpu_custom_call.1} parent=1 // pred_fallthru
      _
    // Predicated region
    $region14: #{tpu_custom_call.1} parent=1 // pred_check
      _
    $region15: #{tpu_custom_call.1} parent=1 // pred_check_branch
      %19 = sbr.rel (0) target = $region17
    $region16: #{tpu_custom_call.1} parent=1 // pred_region
      _
    $region17: #{tpu_custom_call.1} parent=1 // pred_fallthru
      _
    // Predicated region
    $region18: #{tpu_custom_call.1} parent=1 // pred_check
      _
    $region19: #{tpu_custom_call.1} parent=1 // pred_check_branch
      %21 = sbr.rel (0) target = $region21
    $region20: #{tpu_custom_call.1} parent=1 // pred_region
      _
    $region21: #{tpu_custom_call.1} parent=1 // pred_fallthru
      _
    // Predicated region
    $region22: #{tpu_custom_call.1} parent=1 // pred_check
      _
    $region23: #{tpu_custom_call.1} parent=1 // pred_check_branch
      %23 = sbr.rel (0) target = $region25
    $region24: #{tpu_custom_call.1} parent=1 // pred_region
      _
    $region25: #{tpu_custom_call.1} parent=1 // pred_fallthru
      _
    %v24 = vld [vmem:[%s0 + $0xf] sm:$0x1]
    %v25 = vld [vmem:[%s5] sm:$0xff]
    %27 = vset.pattern.permute.xlu0 0
    %28 = vperm.xlu0 %27, %v25
    %v29 = vpop.permute.xlu0 %28
    %vm31 = vcmp.eq.s32.totalorder %v24, 1
    %s32 = scalar_lea.vmem %s5, 8
    %v33 = vld [vmem:[%s32] sm:$0xff]
    %35 = vset.pattern.permute.xlu0 0
    %36 = vperm.xlu0 %35, %v33
    %v37 = vpop.permute.xlu0 %36
    %v39 = vsel %vm31, 1, 0
    %v40 = vperm.slane %v39, 0
    %vm41 = vcmp.eq.s32.totalorder %v40, 1
    %v42 = vsel %vm41, %v37, %v29
    %vm43 = vcmp.eq.s32.totalorder %v24, 2
    %s44 = scalar_lea.vmem %s5, 16
    %v45 = vld [vmem:[%s44] sm:$0xff]
    %47 = vset.pattern.permute.xlu0 0
    %48 = vperm.xlu0 %47, %v45
    %v49 = vpop.permute.xlu0 %48
    %v51 = vsel %vm43, 1, 0
    %v52 = vperm.slane %v51, 0
    %vm53 = vcmp.eq.s32.totalorder %v52, 1
    %v54 = vsel %vm53, %v49, %v42
    %vm55 = vcmp.eq.s32.totalorder %v24, 3
    %s56 = scalar_lea.vmem %s5, 24
    %v57 = vld [vmem:[%s56] sm:$0xff]
    %59 = vset.pattern.permute.xlu0 0
    %60 = vperm.xlu0 %59, %v57
    %v61 = vpop.permute.xlu0 %60
    %v63 = vsel %vm55, 1, 0
    %v64 = vperm.slane %v63, 0
    %vm65 = vcmp.eq.s32.totalorder %v64, 1
    %v66 = vsel %vm65, %v61, %v54
    %v67 = vld [vmem:[%s0 + $0xe] sm:$0x1]
    %v68 = vrot.slane %v66, 4
    %v69 = vmax.f32 %v66, %v68
    %v70 = vrot.slane %v69, 2
    %v71 = vmax.f32 %v69, %v70
    %v72 = vrot.slane %v71, 1
    %v73 = vmax.f32 %v71, %v72
    %v74 = vsub.f32 %v66, %v73
    %v75 = vmul.f32 %v74, 1.442695
    %v76 = vpow.pop %v75
    %s77 = scalar_lea.vmem %s1, 416
    %v78 = vld [vmem:[%s77] sm:$0xff]
    %v79 = vld [vmem:[%s77 + $0x8] sm:$0xff]
    %v80 = vld [vmem:[%s77 + $0x10] sm:$0xff]
    %v81 = vld [vmem:[%s77 + $0x18] sm:$0xff]
    %vm82 = vcmask 64512
    %v84 = vsel %vm82, %v78, 0
    %v87 = vsel %vm82, %v79, 0
    %v90 = vsel %vm82, %v80, 0
    %v93 = vsel %vm82, %v81, 0
    %95 = vmatpush.msra.mxu0 0.0
    %96 = vmatpush.msra.mxu0 0.0
    %97 = vmatpush.msra.mxu0 0.0
    %98 = vmatpush.msra.mxu0 0.0
    %99 = vmatpush.msra.mxu0 0.0
    %100 = vmatpush.msra.mxu0 0.0
    %101 = vmatpush.msra.mxu0 0.0
    %102 = vmatpush.msra.mxu0 0.0
    %103 = vmatpush.msra.mxu0 0.0
    %104 = vmatpush.msra.mxu0 0.0
    %105 = vmatpush.msra.mxu0 0.0
    %106 = vmatpush.msra.mxu0 0.0
    %107 = vmatpush.msra.mxu0 0.0
    %108 = vmatpush.msra.mxu0 0.0
    %109 = vmatpush.msra.mxu0 0.0
    %110 = vmatpush.msra.mxu0 %v76
    %111 = vmatmul.f32.gmra.mxu0 %v84
    %v112 = vpop.f32.mrf.mxu0
    %v113 = vadd.f32 0.0, %v112
    %114 = vmatmul.f32.gmra.mxu0 %v87
    %v115 = vpop.f32.mrf.mxu0
    %v116 = vadd.f32 0.0, %v115
    %117 = vmatmul.f32.gmra.mxu0 %v90
    %v118 = vpop.f32.mrf.mxu0
    %v119 = vadd.f32 0.0, %v118
    %120 = vmatmul.f32.gmra.mxu0 %v93
    %v121 = vpop.f32.mrf.mxu0
    %v122 = vadd.f32 0.0, %v121
    %123 = vdwg.mxu0
    %s124 = scalar_lea.vmem %s2, 416
    %v125 = vld [vmem:[%s124] sm:$0xff]
    %vm126 = vcmp.eq.s32.totalorder %v67, 1
    %v127 = vsel %vm126, 1, 0
    %v128 = vperm.slane %v127, 0
    %vm129 = vcmp.eq.s32.totalorder %v128, 1
    %v130 = vsel %vm129, %v116, %v113
    %v131 = vld [vmem:[%s124 + $0x8] sm:$0xff]
    %133 = vset.pattern.permute.xlu0 0
    %134 = vperm.xlu0 %133, %v131
    %v135 = vpop.permute.xlu0 %134
    %138 = vset.pattern.permute.xlu0 0
    %139 = vperm.xlu0 %138, %v125
    %v140 = vpop.permute.xlu0 %139
    %v142 = vsel %vm129, %v135, %v140
    %vm143 = vcmp.eq.s32.totalorder %v67, 2
    %v144 = vsel %vm143, 1, 0
    %v145 = vperm.slane %v144, 0
    %vm146 = vcmp.eq.s32.totalorder %v145, 1
    %v147 = vsel %vm146, %v119, %v130
    %v148 = vld [vmem:[%s124 + $0x10] sm:$0xff]
    %150 = vset.pattern.permute.xlu0 0
    %151 = vperm.xlu0 %150, %v148
    %v152 = vpop.permute.xlu0 %151
    %v154 = vsel %vm146, %v152, %v142
    %vm155 = vcmp.eq.s32.totalorder %v67, 3
    %v156 = vsel %vm155, 1, 0
    %v157 = vperm.slane %v156, 0
    %vm158 = vcmp.eq.s32.totalorder %v157, 1
    %v159 = vsel %vm158, %v122, %v147
    %v160 = vld [vmem:[%s124 + $0x18] sm:$0xff]
    %162 = vset.pattern.permute.xlu0 0
    %163 = vperm.xlu0 %162, %v160
    %v164 = vpop.permute.xlu0 %163
    %v166 = vsel %vm158, %v164, %v154
    %v167 = vlog2.pop %v159
    %v168 = vmul.f32 %v167, 0.6931472
    %v169 = vadd.f32 %v168, %v166
    %v170 = vadd.f32 %v169, %v73
    %v171 = vld [vmem:[%s0 + $0xd] sm:$0x1]
    %v172 = vrot.slane %v170, 4
    %v173 = vmax.f32 %v170, %v172
    %v174 = vrot.slane %v173, 2
    %v175 = vmax.f32 %v173, %v174
    %v176 = vrot.slane %v175, 1
    %v177 = vmax.f32 %v175, %v176
    %v178 = vsub.f32 %v170, %v177
    %v179 = vmul.f32 %v178, 1.442695
    %v180 = vpow.pop %v179
    %s181 = scalar_lea.vmem %s1, 384
    %v182 = vld [vmem:[%s181] sm:$0xff]
    %v183 = vld [vmem:[%s181 + $0x8] sm:$0xff]
    %v184 = vld [vmem:[%s181 + $0x10] sm:$0xff]
    %v185 = vld [vmem:[%s181 + $0x18] sm:$0xff]
    %v187 = vsel %vm82, %v182, 0
    %v190 = vsel %vm82, %v183, 0
    %v193 = vsel %vm82, %v184, 0
    %v196 = vsel %vm82, %v185, 0
    %198 = vmatpush.msra.mxu0 0.0
    %199 = vmatpush.msra.mxu0 0.0
    %200 = vmatpush.msra.mxu0 0.0
    %201 = vmatpush.msra.mxu0 0.0
    %202 = vmatpush.msra.mxu0 0.0
    %203 = vmatpush.msra.mxu0 0.0
    %204 = vmatpush.msra.mxu0 0.0
    %205 = vmatpush.msra.mxu0 0.0
    %206 = vmatpush.msra.mxu0 0.0
    %207 = vmatpush.msra.mxu0 0.0
    %208 = vmatpush.msra.mxu0 0.0
    %209 = vmatpush.msra.mxu0 0.0
    %210 = vmatpush.msra.mxu0 0.0
    %211 = vmatpush.msra.mxu0 0.0
    %212 = vmatpush.msra.mxu0 0.0
    %213 = vmatpush.msra.mxu0 %v180
    %214 = vmatmul.f32.gmra.mxu0 %v187
    %v215 = vpop.f32.mrf.mxu0
    %v216 = vadd.f32 0.0, %v215
    %217 = vmatmul.f32.gmra.mxu0 %v190
    %v218 = vpop.f32.mrf.mxu0
    %v219 = vadd.f32 0.0, %v218
    %220 = vmatmul.f32.gmra.mxu0 %v193
    %v221 = vpop.f32.mrf.mxu0
    %v222 = vadd.f32 0.0, %v221
    %223 = vmatmul.f32.gmra.mxu0 %v196
    %v224 = vpop.f32.mrf.mxu0
    %v225 = vadd.f32 0.0, %v224
    %226 = vdwg.mxu0
    %s227 = scalar_lea.vmem %s2, 384
    %v228 = vld [vmem:[%s227] sm:$0xff]
    %vm229 = vcmp.eq.s32.totalorder %v171, 1
    %v230 = vsel %vm229, 1, 0
    %v231 = vperm.slane %v230, 0
    %vm232 = vcmp.eq.s32.totalorder %v231, 1
    %v233 = vsel %vm232, %v219, %v216
    %v234 = vld [vmem:[%s227 + $0x8] sm:$0xff]
    %236 = vset.pattern.permute.xlu0 0
    %237 = vperm.xlu0 %236, %v234
    %v238 = vpop.permute.xlu0 %237
    %241 = vset.pattern.permute.xlu0 0
    %242 = vperm.xlu0 %241, %v228
    %v243 = vpop.permute.xlu0 %242
    %v245 = vsel %vm232, %v238, %v243
    %vm246 = vcmp.eq.s32.totalorder %v171, 2
    %v247 = vsel %vm246, 1, 0
    %v248 = vperm.slane %v247, 0
    %vm249 = vcmp.eq.s32.totalorder %v248, 1
    %v250 = vsel %vm249, %v222, %v233
    %v251 = vld [vmem:[%s227 + $0x10] sm:$0xff]
    %253 = vset.pattern.permute.xlu0 0
    %254 = vperm.xlu0 %253, %v251
    %v255 = vpop.permute.xlu0 %254
    %v257 = vsel %vm249, %v255, %v245
    %vm258 = vcmp.eq.s32.totalorder %v171, 3
    %v259 = vsel %vm258, 1, 0
    %v260 = vperm.slane %v259, 0
    %vm261 = vcmp.eq.s32.totalorder %v260, 1
    %v262 = vsel %vm261, %v225, %v250
    %v263 = vld [vmem:[%s227 + $0x18] sm:$0xff]
    %265 = vset.pattern.permute.xlu0 0
    %266 = vperm.xlu0 %265, %v263
    %v267 = vpop.permute.xlu0 %266
    %v269 = vsel %vm261, %v267, %v257
    %v270 = vlog2.pop %v262
    %v271 = vmul.f32 %v270, 0.6931472
    %v272 = vadd.f32 %v271, %v269
    %v273 = vadd.f32 %v272, %v177
    %v274 = vld [vmem:[%s0 + $0xc] sm:$0x1]
    %v275 = vrot.slane %v273, 4
    %v276 = vmax.f32 %v273, %v275
    %v277 = vrot.slane %v276, 2
    %v278 = vmax.f32 %v276, %v277
    %v279 = vrot.slane %v278, 1
    %v280 = vmax.f32 %v278, %v279
    %v281 = vsub.f32 %v273, %v280
    %v282 = vmul.f32 %v281, 1.442695
    %v283 = vpow.pop %v282
    %s284 = scalar_lea.vmem %s1, 352
    %v285 = vld [vmem:[%s284] sm:$0xff]
    %v286 = vld [vmem:[%s284 + $0x8] sm:$0xff]
    %v287 = vld [vmem:[%s284 + $0x10] sm:$0xff]
    %v288 = vld [vmem:[%s284 + $0x18] sm:$0xff]
    %v290 = vsel %vm82, %v285, 0
    %v293 = vsel %vm82, %v286, 0
    %v296 = vsel %vm82, %v287, 0
    %v299 = vsel %vm82, %v288, 0
    %301 = vmatpush.msra.mxu0 0.0
    %302 = vmatpush.msra.mxu0 0.0
    %303 = vmatpush.msra.mxu0 0.0
    %304 = vmatpush.msra.mxu0 0.0
    %305 = vmatpush.msra.mxu0 0.0
    %306 = vmatpush.msra.mxu0 0.0
    %307 = vmatpush.msra.mxu0 0.0
    %308 = vmatpush.msra.mxu0 0.0
    %309 = vmatpush.msra.mxu0 0.0
    %310 = vmatpush.msra.mxu0 0.0
    %311 = vmatpush.msra.mxu0 0.0
    %312 = vmatpush.msra.mxu0 0.0
    %313 = vmatpush.msra.mxu0 0.0
    %314 = vmatpush.msra.mxu0 0.0
    %315 = vmatpush.msra.mxu0 0.0
    %316 = vmatpush.msra.mxu0 %v283
    %317 = vmatmul.f32.gmra.mxu0 %v290
    %v318 = vpop.f32.mrf.mxu0
    %v319 = vadd.f32 0.0, %v318
    %320 = vmatmul.f32.gmra.mxu0 %v293
    %v321 = vpop.f32.mrf.mxu0
    %v322 = vadd.f32 0.0, %v321
    %323 = vmatmul.f32.gmra.mxu0 %v296
    %v324 = vpop.f32.mrf.mxu0
    %v325 = vadd.f32 0.0, %v324
    %326 = vmatmul.f32.gmra.mxu0 %v299
    %v327 = vpop.f32.mrf.mxu0
    %v328 = vadd.f32 0.0, %v327
    %329 = vdwg.mxu0
    %s330 = scalar_lea.vmem %s2, 352
    %v331 = vld [vmem:[%s330] sm:$0xff]
    %vm332 = vcmp.eq.s32.totalorder %v274, 1
    %v333 = vsel %vm332, 1, 0
    %v334 = vperm.slane %v333, 0
    %vm335 = vcmp.eq.s32.totalorder %v334, 1
    %v336 = vsel %vm335, %v322, %v319
    %v337 = vld [vmem:[%s330 + $0x8] sm:$0xff]
    %339 = vset.pattern.permute.xlu0 0
    %340 = vperm.xlu0 %339, %v337
    %v341 = vpop.permute.xlu0 %340
    %344 = vset.pattern.permute.xlu0 0
    %345 = vperm.xlu0 %344, %v331
    %v346 = vpop.permute.xlu0 %345
    %v348 = vsel %vm335, %v341, %v346
    %vm349 = vcmp.eq.s32.totalorder %v274, 2
    %v350 = vsel %vm349, 1, 0
    %v351 = vperm.slane %v350, 0
    %vm352 = vcmp.eq.s32.totalorder %v351, 1
    %v353 = vsel %vm352, %v325, %v336
    %v354 = vld [vmem:[%s330 + $0x10] sm:$0xff]
    %356 = vset.pattern.permute.xlu0 0
    %357 = vperm.xlu0 %356, %v354
    %v358 = vpop.permute.xlu0 %357
    %v360 = vsel %vm352, %v358, %v348
    %vm361 = vcmp.eq.s32.totalorder %v274, 3
    %v362 = vsel %vm361, 1, 0
    %v363 = vperm.slane %v362, 0
    %vm364 = vcmp.eq.s32.totalorder %v363, 1
    %v365 = vsel %vm364, %v328, %v353
    %v366 = vld [vmem:[%s330 + $0x18] sm:$0xff]
    %368 = vset.pattern.permute.xlu0 0
    %369 = vperm.xlu0 %368, %v366
    %v370 = vpop.permute.xlu0 %369
    %v372 = vsel %vm364, %v370, %v360
    %v373 = vlog2.pop %v365
    %v374 = vmul.f32 %v373, 0.6931472
    %v375 = vadd.f32 %v374, %v372
    %v376 = vadd.f32 %v375, %v280
    %v377 = vld [vmem:[%s0 + $0xb] sm:$0x1]
    %v378 = vrot.slane %v376, 4
    %v379 = vmax.f32 %v376, %v378
    %v380 = vrot.slane %v379, 2
    %v381 = vmax.f32 %v379, %v380
    %v382 = vrot.slane %v381, 1
    %v383 = vmax.f32 %v381, %v382
    %v384 = vsub.f32 %v376, %v383
    %v385 = vmul.f32 %v384, 1.442695
    %v386 = vpow.pop %v385
    %s387 = scalar_lea.vmem %s1, 320
    %v388 = vld [vmem:[%s387] sm:$0xff]
    %v389 = vld [vmem:[%s387 + $0x8] sm:$0xff]
    %v390 = vld [vmem:[%s387 + $0x10] sm:$0xff]
    %v391 = vld [vmem:[%s387 + $0x18] sm:$0xff]
    %v393 = vsel %vm82, %v388, 0
    %v396 = vsel %vm82, %v389, 0
    %v399 = vsel %vm82, %v390, 0
    %v402 = vsel %vm82, %v391, 0
    %404 = vmatpush.msra.mxu0 0.0
    %405 = vmatpush.msra.mxu0 0.0
    %406 = vmatpush.msra.mxu0 0.0
    %407 = vmatpush.msra.mxu0 0.0
    %408 = vmatpush.msra.mxu0 0.0
    %409 = vmatpush.msra.mxu0 0.0
    %410 = vmatpush.msra.mxu0 0.0
    %411 = vmatpush.msra.mxu0 0.0
    %412 = vmatpush.msra.mxu0 0.0
    %413 = vmatpush.msra.mxu0 0.0
    %414 = vmatpush.msra.mxu0 0.0
    %415 = vmatpush.msra.mxu0 0.0
    %416 = vmatpush.msra.mxu0 0.0
    %417 = vmatpush.msra.mxu0 0.0
    %418 = vmatpush.msra.mxu0 0.0
    %419 = vmatpush.msra.mxu0 %v386
    %420 = vmatmul.f32.gmra.mxu0 %v393
    %v421 = vpop.f32.mrf.mxu0
    %v422 = vadd.f32 0.0, %v421
    %423 = vmatmul.f32.gmra.mxu0 %v396
    %v424 = vpop.f32.mrf.mxu0
    %v425 = vadd.f32 0.0, %v424
    %426 = vmatmul.f32.gmra.mxu0 %v399
    %v427 = vpop.f32.mrf.mxu0
    %v428 = vadd.f32 0.0, %v427
    %429 = vmatmul.f32.gmra.mxu0 %v402
    %v430 = vpop.f32.mrf.mxu0
    %v431 = vadd.f32 0.0, %v430
    %432 = vdwg.mxu0
    %s433 = scalar_lea.vmem %s2, 320
    %v434 = vld [vmem:[%s433] sm:$0xff]
    %vm435 = vcmp.eq.s32.totalorder %v377, 1
    %v436 = vsel %vm435, 1, 0
    %v437 = vperm.slane %v436, 0
    %vm438 = vcmp.eq.s32.totalorder %v437, 1
    %v439 = vsel %vm438, %v425, %v422
    %v440 = vld [vmem:[%s433 + $0x8] sm:$0xff]
    %442 = vset.pattern.permute.xlu0 0
    %443 = vperm.xlu0 %442, %v440
    %v444 = vpop.permute.xlu0 %443
    %447 = vset.pattern.permute.xlu0 0
    %448 = vperm.xlu0 %447, %v434
    %v449 = vpop.permute.xlu0 %448
    %v451 = vsel %vm438, %v444, %v449
    %vm452 = vcmp.eq.s32.totalorder %v377, 2
    %v453 = vsel %vm452, 1, 0
    %v454 = vperm.slane %v453, 0
    %vm455 = vcmp.eq.s32.totalorder %v454, 1
    %v456 = vsel %vm455, %v428, %v439
    %v457 = vld [vmem:[%s433 + $0x10] sm:$0xff]
    %459 = vset.pattern.permute.xlu0 0
    %460 = vperm.xlu0 %459, %v457
    %v461 = vpop.permute.xlu0 %460
    %v463 = vsel %vm455, %v461, %v451
    %vm464 = vcmp.eq.s32.totalorder %v377, 3
    %v465 = vsel %vm464, 1, 0
    %v466 = vperm.slane %v465, 0
    %vm467 = vcmp.eq.s32.totalorder %v466, 1
    %v468 = vsel %vm467, %v431, %v456
    %v469 = vld [vmem:[%s433 + $0x18] sm:$0xff]
    %471 = vset.pattern.permute.xlu0 0
    %472 = vperm.xlu0 %471, %v469
    %v473 = vpop.permute.xlu0 %472
    %v475 = vsel %vm467, %v473, %v463
    %v476 = vlog2.pop %v468
    %v477 = vmul.f32 %v476, 0.6931472
    %v478 = vadd.f32 %v477, %v475
    %v479 = vadd.f32 %v478, %v383
    %v480 = vld [vmem:[%s0 + $0xa] sm:$0x1]
    %v481 = vrot.slane %v479, 4
    %v482 = vmax.f32 %v479, %v481
    %v483 = vrot.slane %v482, 2
    %v484 = vmax.f32 %v482, %v483
    %v485 = vrot.slane %v484, 1
    %v486 = vmax.f32 %v484, %v485
    %v487 = vsub.f32 %v479, %v486
    %v488 = vmul.f32 %v487, 1.442695
    %v489 = vpow.pop %v488
    %s490 = scalar_lea.vmem %s1, 288
    %v491 = vld [vmem:[%s490] sm:$0xff]
    %v492 = vld [vmem:[%s490 + $0x8] sm:$0xff]
    %v493 = vld [vmem:[%s490 + $0x10] sm:$0xff]
    %v494 = vld [vmem:[%s490 + $0x18] sm:$0xff]
    %v496 = vsel %vm82, %v491, 0
    %v499 = vsel %vm82, %v492, 0
    %v502 = vsel %vm82, %v493, 0
    %v505 = vsel %vm82, %v494, 0
    %507 = vmatpush.msra.mxu0 0.0
    %508 = vmatpush.msra.mxu0 0.0
    %509 = vmatpush.msra.mxu0 0.0
    %510 = vmatpush.msra.mxu0 0.0
    %511 = vmatpush.msra.mxu0 0.0
    %512 = vmatpush.msra.mxu0 0.0
    %513 = vmatpush.msra.mxu0 0.0
    %514 = vmatpush.msra.mxu0 0.0
    %515 = vmatpush.msra.mxu0 0.0
    %516 = vmatpush.msra.mxu0 0.0
    %517 = vmatpush.msra.mxu0 0.0
    %518 = vmatpush.msra.mxu0 0.0
    %519 = vmatpush.msra.mxu0 0.0
    %520 = vmatpush.msra.mxu0 0.0
    %521 = vmatpush.msra.mxu0 0.0
    %522 = vmatpush.msra.mxu0 %v489
    %523 = vmatmul.f32.gmra.mxu0 %v496
    %v524 = vpop.f32.mrf.mxu0
    %v525 = vadd.f32 0.0, %v524
    %526 = vmatmul.f32.gmra.mxu0 %v499
    %v527 = vpop.f32.mrf.mxu0
    %v528 = vadd.f32 0.0, %v527
    %529 = vmatmul.f32.gmra.mxu0 %v502
    %v530 = vpop.f32.mrf.mxu0
    %v531 = vadd.f32 0.0, %v530
    %532 = vmatmul.f32.gmra.mxu0 %v505
    %v533 = vpop.f32.mrf.mxu0
    %v534 = vadd.f32 0.0, %v533
    %535 = vdwg.mxu0
    %s536 = scalar_lea.vmem %s2, 288
    %v537 = vld [vmem:[%s536] sm:$0xff]
    %vm538 = vcmp.eq.s32.totalorder %v480, 1
    %v539 = vsel %vm538, 1, 0
    %v540 = vperm.slane %v539, 0
    %vm541 = vcmp.eq.s32.totalorder %v540, 1
    %v542 = vsel %vm541, %v528, %v525
    %v543 = vld [vmem:[%s536 + $0x8] sm:$0xff]
    %545 = vset.pattern.permute.xlu0 0
    %546 = vperm.xlu0 %545, %v543
    %v547 = vpop.permute.xlu0 %546
    %550 = vset.pattern.permute.xlu0 0
    %551 = vperm.xlu0 %550, %v537
    %v552 = vpop.permute.xlu0 %551
    %v554 = vsel %vm541, %v547, %v552
    %vm555 = vcmp.eq.s32.totalorder %v480, 2
    %v556 = vsel %vm555, 1, 0
    %v557 = vperm.slane %v556, 0
    %vm558 = vcmp.eq.s32.totalorder %v557, 1
    %v559 = vsel %vm558, %v531, %v542
    %v560 = vld [vmem:[%s536 + $0x10] sm:$0xff]
    %562 = vset.pattern.permute.xlu0 0
    %563 = vperm.xlu0 %562, %v560
    %v564 = vpop.permute.xlu0 %563
    %v566 = vsel %vm558, %v564, %v554
    %vm567 = vcmp.eq.s32.totalorder %v480, 3
    %v568 = vsel %vm567, 1, 0
    %v569 = vperm.slane %v568, 0
    %vm570 = vcmp.eq.s32.totalorder %v569, 1
    %v571 = vsel %vm570, %v534, %v559
    %v572 = vld [vmem:[%s536 + $0x18] sm:$0xff]
    %574 = vset.pattern.permute.xlu0 0
    %575 = vperm.xlu0 %574, %v572
    %v576 = vpop.permute.xlu0 %575
    %v578 = vsel %vm570, %v576, %v566
    %v579 = vlog2.pop %v571
    %v580 = vmul.f32 %v579, 0.6931472
    %v581 = vadd.f32 %v580, %v578
    %v582 = vadd.f32 %v581, %v486
    %v583 = vld [vmem:[%s0 + $0x9] sm:$0x1]
    %v584 = vrot.slane %v582, 4
    %v585 = vmax.f32 %v582, %v584
    %v586 = vrot.slane %v585, 2
    %v587 = vmax.f32 %v585, %v586
    %v588 = vrot.slane %v587, 1
    %v589 = vmax.f32 %v587, %v588
    %v590 = vsub.f32 %v582, %v589
    %v591 = vmul.f32 %v590, 1.442695
    %v592 = vpow.pop %v591
    %s593 = scalar_lea.vmem %s1, 256
    %v594 = vld [vmem:[%s593] sm:$0xff]
    %v595 = vld [vmem:[%s593 + $0x8] sm:$0xff]
    %v596 = vld [vmem:[%s593 + $0x10] sm:$0xff]
    %v597 = vld [vmem:[%s593 + $0x18] sm:$0xff]
    %v599 = vsel %vm82, %v594, 0
    %v602 = vsel %vm82, %v595, 0
    %v605 = vsel %vm82, %v596, 0
    %v608 = vsel %vm82, %v597, 0
    %610 = vmatpush.msra.mxu0 0.0
    %611 = vmatpush.msra.mxu0 0.0
    %612 = vmatpush.msra.mxu0 0.0
    %613 = vmatpush.msra.mxu0 0.0
    %614 = vmatpush.msra.mxu0 0.0
    %615 = vmatpush.msra.mxu0 0.0
    %616 = vmatpush.msra.mxu0 0.0
    %617 = vmatpush.msra.mxu0 0.0
    %618 = vmatpush.msra.mxu0 0.0
    %619 = vmatpush.msra.mxu0 0.0
    %620 = vmatpush.msra.mxu0 0.0
    %621 = vmatpush.msra.mxu0 0.0
    %622 = vmatpush.msra.mxu0 0.0
    %623 = vmatpush.msra.mxu0 0.0
    %624 = vmatpush.msra.mxu0 0.0
    %625 = vmatpush.msra.mxu0 %v592
    %626 = vmatmul.f32.gmra.mxu0 %v599
    %v627 = vpop.f32.mrf.mxu0
    %v628 = vadd.f32 0.0, %v627
    %629 = vmatmul.f32.gmra.mxu0 %v602
    %v630 = vpop.f32.mrf.mxu0
    %v631 = vadd.f32 0.0, %v630
    %632 = vmatmul.f32.gmra.mxu0 %v605
    %v633 = vpop.f32.mrf.mxu0
    %v634 = vadd.f32 0.0, %v633
    %635 = vmatmul.f32.gmra.mxu0 %v608
    %v636 = vpop.f32.mrf.mxu0
    %v637 = vadd.f32 0.0, %v636
    %638 = vdwg.mxu0
    %s639 = scalar_lea.vmem %s2, 256
    %v640 = vld [vmem:[%s639] sm:$0xff]
    %vm641 = vcmp.eq.s32.totalorder %v583, 1
    %v642 = vsel %vm641, 1, 0
    %v643 = vperm.slane %v642, 0
    %vm644 = vcmp.eq.s32.totalorder %v643, 1
    %v645 = vsel %vm644, %v631, %v628
    %v646 = vld [vmem:[%s639 + $0x8] sm:$0xff]
    %648 = vset.pattern.permute.xlu0 0
    %649 = vperm.xlu0 %648, %v646
    %v650 = vpop.permute.xlu0 %649
    %653 = vset.pattern.permute.xlu0 0
    %654 = vperm.xlu0 %653, %v640
    %v655 = vpop.permute.xlu0 %654
    %v657 = vsel %vm644, %v650, %v655
    %vm658 = vcmp.eq.s32.totalorder %v583, 2
    %v659 = vsel %vm658, 1, 0
    %v660 = vperm.slane %v659, 0
    %vm661 = vcmp.eq.s32.totalorder %v660, 1
    %v662 = vsel %vm661, %v634, %v645
    %v663 = vld [vmem:[%s639 + $0x10] sm:$0xff]
    %665 = vset.pattern.permute.xlu0 0
    %666 = vperm.xlu0 %665, %v663
    %v667 = vpop.permute.xlu0 %666
    %v669 = vsel %vm661, %v667, %v657
    %vm670 = vcmp.eq.s32.totalorder %v583, 3
    %v671 = vsel %vm670, 1, 0
    %v672 = vperm.slane %v671, 0
    %vm673 = vcmp.eq.s32.totalorder %v672, 1
    %v674 = vsel %vm673, %v637, %v662
    %v675 = vld [vmem:[%s639 + $0x18] sm:$0xff]
    %677 = vset.pattern.permute.xlu0 0
    %678 = vperm.xlu0 %677, %v675
    %v679 = vpop.permute.xlu0 %678
    %v681 = vsel %vm673, %v679, %v669
    %v682 = vlog2.pop %v674
    %v683 = vmul.f32 %v682, 0.6931472
    %v684 = vadd.f32 %v683, %v681
    %v685 = vadd.f32 %v684, %v589
    %v686 = vld [vmem:[%s0 + $0x8] sm:$0x1]
    %v687 = vrot.slane %v685, 4
    %v688 = vmax.f32 %v685, %v687
    %v689 = vrot.slane %v688, 2
    %v690 = vmax.f32 %v688, %v689
    %v691 = vrot.slane %v690, 1
    %v692 = vmax.f32 %v690, %v691
    %v693 = vsub.f32 %v685, %v692
    %v694 = vmul.f32 %v693, 1.442695
    %v695 = vpow.pop %v694
    %s696 = scalar_lea.vmem %s1, 224
    %v697 = vld [vmem:[%s696] sm:$0xff]
    %v698 = vld [vmem:[%s696 + $0x8] sm:$0xff]
    %v699 = vld [vmem:[%s696 + $0x10] sm:$0xff]
    %v700 = vld [vmem:[%s696 + $0x18] sm:$0xff]
    %v702 = vsel %vm82, %v697, 0
    %v705 = vsel %vm82, %v698, 0
    %v708 = vsel %vm82, %v699, 0
    %v711 = vsel %vm82, %v700, 0
    %713 = vmatpush.msra.mxu0 0.0
    %714 = vmatpush.msra.mxu0 0.0
    %715 = vmatpush.msra.mxu0 0.0
    %716 = vmatpush.msra.mxu0 0.0
    %717 = vmatpush.msra.mxu0 0.0
    %718 = vmatpush.msra.mxu0 0.0
    %719 = vmatpush.msra.mxu0 0.0
    %720 = vmatpush.msra.mxu0 0.0
    %721 = vmatpush.msra.mxu0 0.0
    %722 = vmatpush.msra.mxu0 0.0
    %723 = vmatpush.msra.mxu0 0.0
    %724 = vmatpush.msra.mxu0 0.0
    %725 = vmatpush.msra.mxu0 0.0
    %726 = vmatpush.msra.mxu0 0.0
    %727 = vmatpush.msra.mxu0 0.0
    %728 = vmatpush.msra.mxu0 %v695
    %729 = vmatmul.f32.gmra.mxu0 %v702
    %v730 = vpop.f32.mrf.mxu0
    %v731 = vadd.f32 0.0, %v730
    %732 = vmatmul.f32.gmra.mxu0 %v705
    %v733 = vpop.f32.mrf.mxu0
    %v734 = vadd.f32 0.0, %v733
    %735 = vmatmul.f32.gmra.mxu0 %v708
    %v736 = vpop.f32.mrf.mxu0
    %v737 = vadd.f32 0.0, %v736
    %738 = vmatmul.f32.gmra.mxu0 %v711
    %v739 = vpop.f32.mrf.mxu0
    %v740 = vadd.f32 0.0, %v739
    %741 = vdwg.mxu0
    %s742 = scalar_lea.vmem %s2, 224
    %v743 = vld [vmem:[%s742] sm:$0xff]
    %vm744 = vcmp.eq.s32.totalorder %v686, 1
    %v745 = vsel %vm744, 1, 0
    %v746 = vperm.slane %v745, 0
    %vm747 = vcmp.eq.s32.totalorder %v746, 1
    %v748 = vsel %vm747, %v734, %v731
    %v749 = vld [vmem:[%s742 + $0x8] sm:$0xff]
    %751 = vset.pattern.permute.xlu0 0
    %752 = vperm.xlu0 %751, %v749
    %v753 = vpop.permute.xlu0 %752
    %756 = vset.pattern.permute.xlu0 0
    %757 = vperm.xlu0 %756, %v743
    %v758 = vpop.permute.xlu0 %757
    %v760 = vsel %vm747, %v753, %v758
    %vm761 = vcmp.eq.s32.totalorder %v686, 2
    %v762 = vsel %vm761, 1, 0
    %v763 = vperm.slane %v762, 0
    %vm764 = vcmp.eq.s32.totalorder %v763, 1
    %v765 = vsel %vm764, %v737, %v748
    %v766 = vld [vmem:[%s742 + $0x10] sm:$0xff]
    %768 = vset.pattern.permute.xlu0 0
    %769 = vperm.xlu0 %768, %v766
    %v770 = vpop.permute.xlu0 %769
    %v772 = vsel %vm764, %v770, %v760
    %vm773 = vcmp.eq.s32.totalorder %v686, 3
    %v774 = vsel %vm773, 1, 0
    %v775 = vperm.slane %v774, 0
    %vm776 = vcmp.eq.s32.totalorder %v775, 1
    %v777 = vsel %vm776, %v740, %v765
    %v778 = vld [vmem:[%s742 + $0x18] sm:$0xff]
    %780 = vset.pattern.permute.xlu0 0
    %781 = vperm.xlu0 %780, %v778
    %v782 = vpop.permute.xlu0 %781
    %v784 = vsel %vm776, %v782, %v772
    %v785 = vlog2.pop %v777
    %v786 = vmul.f32 %v785, 0.6931472
    %v787 = vadd.f32 %v786, %v784
    %v788 = vadd.f32 %v787, %v692
    %v789 = vld [vmem:[%s0 + $0x7] sm:$0x1]
    %v790 = vrot.slane %v788, 4
    %v791 = vmax.f32 %v788, %v790
    %v792 = vrot.slane %v791, 2
    %v793 = vmax.f32 %v791, %v792
    %v794 = vrot.slane %v793, 1
    %v795 = vmax.f32 %v793, %v794
    %v796 = vsub.f32 %v788, %v795
    %v797 = vmul.f32 %v796, 1.442695
    %v798 = vpow.pop %v797
    %s799 = scalar_lea.vmem %s1, 192
    %v800 = vld [vmem:[%s799] sm:$0xff]
    %v801 = vld [vmem:[%s799 + $0x8] sm:$0xff]
    %v802 = vld [vmem:[%s799 + $0x10] sm:$0xff]
    %v803 = vld [vmem:[%s799 + $0x18] sm:$0xff]
    %v805 = vsel %vm82, %v800, 0
    %v808 = vsel %vm82, %v801, 0
    %v811 = vsel %vm82, %v802, 0
    %v814 = vsel %vm82, %v803, 0
    %816 = vmatpush.msra.mxu0 0.0
    %817 = vmatpush.msra.mxu0 0.0
    %818 = vmatpush.msra.mxu0 0.0
    %819 = vmatpush.msra.mxu0 0.0
    %820 = vmatpush.msra.mxu0 0.0
    %821 = vmatpush.msra.mxu0 0.0
    %822 = vmatpush.msra.mxu0 0.0
    %823 = vmatpush.msra.mxu0 0.0
    %824 = vmatpush.msra.mxu0 0.0
    %825 = vmatpush.msra.mxu0 0.0
    %826 = vmatpush.msra.mxu0 0.0
    %827 = vmatpush.msra.mxu0 0.0
    %828 = vmatpush.msra.mxu0 0.0
    %829 = vmatpush.msra.mxu0 0.0
    %830 = vmatpush.msra.mxu0 0.0
    %831 = vmatpush.msra.mxu0 %v798
    %832 = vmatmul.f32.gmra.mxu0 %v805
    %v833 = vpop.f32.mrf.mxu0
    %v834 = vadd.f32 0.0, %v833
    %835 = vmatmul.f32.gmra.mxu0 %v808
    %v836 = vpop.f32.mrf.mxu0
    %v837 = vadd.f32 0.0, %v836
    %838 = vmatmul.f32.gmra.mxu0 %v811
    %v839 = vpop.f32.mrf.mxu0
    %v840 = vadd.f32 0.0, %v839
    %841 = vmatmul.f32.gmra.mxu0 %v814
    %v842 = vpop.f32.mrf.mxu0
    %v843 = vadd.f32 0.0, %v842
    %844 = vdwg.mxu0
    %s845 = scalar_lea.vmem %s2, 192
    %v846 = vld [vmem:[%s845] sm:$0xff]
    %vm847 = vcmp.eq.s32.totalorder %v789, 1
    %v848 = vsel %vm847, 1, 0
    %v849 = vperm.slane %v848, 0
    %vm850 = vcmp.eq.s32.totalorder %v849, 1
    %v851 = vsel %vm850, %v837, %v834
    %v852 = vld [vmem:[%s845 + $0x8] sm:$0xff]
    %854 = vset.pattern.permute.xlu0 0
    %855 = vperm.xlu0 %854, %v852
    %v856 = vpop.permute.xlu0 %855
    %859 = vset.pattern.permute.xlu0 0
    %860 = vperm.xlu0 %859, %v846
    %v861 = vpop.permute.xlu0 %860
    %v863 = vsel %vm850, %v856, %v861
    %vm864 = vcmp.eq.s32.totalorder %v789, 2
    %v865 = vsel %vm864, 1, 0
    %v866 = vperm.slane %v865, 0
    %vm867 = vcmp.eq.s32.totalorder %v866, 1
    %v868 = vsel %vm867, %v840, %v851
    %v869 = vld [vmem:[%s845 + $0x10] sm:$0xff]
    %871 = vset.pattern.permute.xlu0 0
    %872 = vperm.xlu0 %871, %v869
    %v873 = vpop.permute.xlu0 %872
    %v875 = vsel %vm867, %v873, %v863
    %vm876 = vcmp.eq.s32.totalorder %v789, 3
    %v877 = vsel %vm876, 1, 0
    %v878 = vperm.slane %v877, 0
    %vm879 = vcmp.eq.s32.totalorder %v878, 1
    %v880 = vsel %vm879, %v843, %v868
    %v881 = vld [vmem:[%s845 + $0x18] sm:$0xff]
    %883 = vset.pattern.permute.xlu0 0
    %884 = vperm.xlu0 %883, %v881
    %v885 = vpop.permute.xlu0 %884
    %v887 = vsel %vm879, %v885, %v875
    %v888 = vlog2.pop %v880
    %v889 = vmul.f32 %v888, 0.6931472
    %v890 = vadd.f32 %v889, %v887
    %v891 = vadd.f32 %v890, %v795
    %v892 = vld [vmem:[%s0 + $0x6] sm:$0x1]
    %v893 = vrot.slane %v891, 4
    %v894 = vmax.f32 %v891, %v893
    %v895 = vrot.slane %v894, 2
    %v896 = vmax.f32 %v894, %v895
    %v897 = vrot.slane %v896, 1
    %v898 = vmax.f32 %v896, %v897
    %v899 = vsub.f32 %v891, %v898
    %v900 = vmul.f32 %v899, 1.442695
    %v901 = vpow.pop %v900
    %s902 = scalar_lea.vmem %s1, 160
    %v903 = vld [vmem:[%s902] sm:$0xff]
    %v904 = vld [vmem:[%s902 + $0x8] sm:$0xff]
    %v905 = vld [vmem:[%s902 + $0x10] sm:$0xff]
    %v906 = vld [vmem:[%s902 + $0x18] sm:$0xff]
    %v908 = vsel %vm82, %v903, 0
    %v911 = vsel %vm82, %v904, 0
    %v914 = vsel %vm82, %v905, 0
    %v917 = vsel %vm82, %v906, 0
    %919 = vmatpush.msra.mxu0 0.0
    %920 = vmatpush.msra.mxu0 0.0
    %921 = vmatpush.msra.mxu0 0.0
    %922 = vmatpush.msra.mxu0 0.0
    %923 = vmatpush.msra.mxu0 0.0
    %924 = vmatpush.msra.mxu0 0.0
    %925 = vmatpush.msra.mxu0 0.0
    %926 = vmatpush.msra.mxu0 0.0
    %927 = vmatpush.msra.mxu0 0.0
    %928 = vmatpush.msra.mxu0 0.0
    %929 = vmatpush.msra.mxu0 0.0
    %930 = vmatpush.msra.mxu0 0.0
    %931 = vmatpush.msra.mxu0 0.0
    %932 = vmatpush.msra.mxu0 0.0
    %933 = vmatpush.msra.mxu0 0.0
    %934 = vmatpush.msra.mxu0 %v901
    %935 = vmatmul.f32.gmra.mxu0 %v908
    %v936 = vpop.f32.mrf.mxu0
    %v937 = vadd.f32 0.0, %v936
    %938 = vmatmul.f32.gmra.mxu0 %v911
    %v939 = vpop.f32.mrf.mxu0
    %v940 = vadd.f32 0.0, %v939
    %941 = vmatmul.f32.gmra.mxu0 %v914
    %v942 = vpop.f32.mrf.mxu0
    %v943 = vadd.f32 0.0, %v942
    %944 = vmatmul.f32.gmra.mxu0 %v917
    %v945 = vpop.f32.mrf.mxu0
    %v946 = vadd.f32 0.0, %v945
    %947 = vdwg.mxu0
    %s948 = scalar_lea.vmem %s2, 160
    %v949 = vld [vmem:[%s948] sm:$0xff]
    %vm950 = vcmp.eq.s32.totalorder %v892, 1
    %v951 = vsel %vm950, 1, 0
    %v952 = vperm.slane %v951, 0
    %vm953 = vcmp.eq.s32.totalorder %v952, 1
    %v954 = vsel %vm953, %v940, %v937
    %v955 = vld [vmem:[%s948 + $0x8] sm:$0xff]
    %957 = vset.pattern.permute.xlu0 0
    %958 = vperm.xlu0 %957, %v955
    %v959 = vpop.permute.xlu0 %958
    %962 = vset.pattern.permute.xlu0 0
    %963 = vperm.xlu0 %962, %v949
    %v964 = vpop.permute.xlu0 %963
    %v966 = vsel %vm953, %v959, %v964
    %vm967 = vcmp.eq.s32.totalorder %v892, 2
    %v968 = vsel %vm967, 1, 0
    %v969 = vperm.slane %v968, 0
    %vm970 = vcmp.eq.s32.totalorder %v969, 1
    %v971 = vsel %vm970, %v943, %v954
    %v972 = vld [vmem:[%s948 + $0x10] sm:$0xff]
    %974 = vset.pattern.permute.xlu0 0
    %975 = vperm.xlu0 %974, %v972
    %v976 = vpop.permute.xlu0 %975
    %v978 = vsel %vm970, %v976, %v966
    %vm979 = vcmp.eq.s32.totalorder %v892, 3
    %v980 = vsel %vm979, 1, 0
    %v981 = vperm.slane %v980, 0
    %vm982 = vcmp.eq.s32.totalorder %v981, 1
    %v983 = vsel %vm982, %v946, %v971
    %v984 = vld [vmem:[%s948 + $0x18] sm:$0xff]
    %986 = vset.pattern.permute.xlu0 0
    %987 = vperm.xlu0 %986, %v984
    %v988 = vpop.permute.xlu0 %987
    %v990 = vsel %vm982, %v988, %v978
    %v991 = vlog2.pop %v983
    %v992 = vmul.f32 %v991, 0.6931472
    %v993 = vadd.f32 %v992, %v990
    %v994 = vadd.f32 %v993, %v898
    %v995 = vld [vmem:[%s0 + $0x5] sm:$0x1]
    %v996 = vrot.slane %v994, 4
    %v997 = vmax.f32 %v994, %v996
    %v998 = vrot.slane %v997, 2
    %v999 = vmax.f32 %v997, %v998
    %v1000 = vrot.slane %v999, 1
    %v1001 = vmax.f32 %v999, %v1000
    %v1002 = vsub.f32 %v994, %v1001
    %v1003 = vmul.f32 %v1002, 1.442695
    %v1004 = vpow.pop %v1003
    %s1005 = scalar_lea.vmem %s1, 128
    %v1006 = vld [vmem:[%s1005] sm:$0xff]
    %v1007 = vld [vmem:[%s1005 + $0x8] sm:$0xff]
    %v1008 = vld [vmem:[%s1005 + $0x10] sm:$0xff]
    %v1009 = vld [vmem:[%s1005 + $0x18] sm:$0xff]
    %v1011 = vsel %vm82, %v1006, 0
    %v1014 = vsel %vm82, %v1007, 0
    %v1017 = vsel %vm82, %v1008, 0
    %v1020 = vsel %vm82, %v1009, 0
    %1022 = vmatpush.msra.mxu0 0.0
    %1023 = vmatpush.msra.mxu0 0.0
    %1024 = vmatpush.msra.mxu0 0.0
    %1025 = vmatpush.msra.mxu0 0.0
    %1026 = vmatpush.msra.mxu0 0.0
    %1027 = vmatpush.msra.mxu0 0.0
    %1028 = vmatpush.msra.mxu0 0.0
    %1029 = vmatpush.msra.mxu0 0.0
    %1030 = vmatpush.msra.mxu0 0.0
    %1031 = vmatpush.msra.mxu0 0.0
    %1032 = vmatpush.msra.mxu0 0.0
    %1033 = vmatpush.msra.mxu0 0.0
    %1034 = vmatpush.msra.mxu0 0.0
    %1035 = vmatpush.msra.mxu0 0.0
    %1036 = vmatpush.msra.mxu0 0.0
    %1037 = vmatpush.msra.mxu0 %v1004
    %1038 = vmatmul.f32.gmra.mxu0 %v1011
    %v1039 = vpop.f32.mrf.mxu0
    %v1040 = vadd.f32 0.0, %v1039
    %1041 = vmatmul.f32.gmra.mxu0 %v1014
    %v1042 = vpop.f32.mrf.mxu0
    %v1043 = vadd.f32 0.0, %v1042
    %1044 = vmatmul.f32.gmra.mxu0 %v1017
    %v1045 = vpop.f32.mrf.mxu0
    %v1046 = vadd.f32 0.0, %v1045
    %1047 = vmatmul.f32.gmra.mxu0 %v1020
    %v1048 = vpop.f32.mrf.mxu0
    %v1049 = vadd.f32 0.0, %v1048
    %1050 = vdwg.mxu0
    %s1051 = scalar_lea.vmem %s2, 128
    %v1052 = vld [vmem:[%s1051] sm:$0xff]
    %vm1053 = vcmp.eq.s32.totalorder %v995, 1
    %v1054 = vsel %vm1053, 1, 0
    %v1055 = vperm.slane %v1054, 0
    %vm1056 = vcmp.eq.s32.totalorder %v1055, 1
    %v1057 = vsel %vm1056, %v1043, %v1040
    %v1058 = vld [vmem:[%s1051 + $0x8] sm:$0xff]
    %1060 = vset.pattern.permute.xlu0 0
    %1061 = vperm.xlu0 %1060, %v1058
    %v1062 = vpop.permute.xlu0 %1061
    %1065 = vset.pattern.permute.xlu0 0
    %1066 = vperm.xlu0 %1065, %v1052
    %v1067 = vpop.permute.xlu0 %1066
    %v1069 = vsel %vm1056, %v1062, %v1067
    %vm1070 = vcmp.eq.s32.totalorder %v995, 2
    %v1071 = vsel %vm1070, 1, 0
    %v1072 = vperm.slane %v1071, 0
    %vm1073 = vcmp.eq.s32.totalorder %v1072, 1
    %v1074 = vsel %vm1073, %v1046, %v1057
    %v1075 = vld [vmem:[%s1051 + $0x10] sm:$0xff]
    %1077 = vset.pattern.permute.xlu0 0
    %1078 = vperm.xlu0 %1077, %v1075
    %v1079 = vpop.permute.xlu0 %1078
    %v1081 = vsel %vm1073, %v1079, %v1069
    %vm1082 = vcmp.eq.s32.totalorder %v995, 3
    %v1083 = vsel %vm1082, 1, 0
    %v1084 = vperm.slane %v1083, 0
    %vm1085 = vcmp.eq.s32.totalorder %v1084, 1
    %v1086 = vsel %vm1085, %v1049, %v1074
    %v1087 = vld [vmem:[%s1051 + $0x18] sm:$0xff]
    %1089 = vset.pattern.permute.xlu0 0
    %1090 = vperm.xlu0 %1089, %v1087
    %v1091 = vpop.permute.xlu0 %1090
    %v1093 = vsel %vm1085, %v1091, %v1081
    %v1094 = vlog2.pop %v1086
    %v1095 = vmul.f32 %v1094, 0.6931472
    %v1096 = vadd.f32 %v1095, %v1093
    %v1097 = vadd.f32 %v1096, %v1001
    %v1098 = vld [vmem:[%s0 + $0x4] sm:$0x1]
    %v1099 = vrot.slane %v1097, 4
    %v1100 = vmax.f32 %v1097, %v1099
    %v1101 = vrot.slane %v1100, 2
    %v1102 = vmax.f32 %v1100, %v1101
    %v1103 = vrot.slane %v1102, 1
    %v1104 = vmax.f32 %v1102, %v1103
    %v1105 = vsub.f32 %v1097, %v1104
    %v1106 = vmul.f32 %v1105, 1.442695
    %v1107 = vpow.pop %v1106
    %s1108 = scalar_lea.vmem %s1, 96
    %v1109 = vld [vmem:[%s1108] sm:$0xff]
    %v1110 = vld [vmem:[%s1108 + $0x8] sm:$0xff]
    %v1111 = vld [vmem:[%s1108 + $0x10] sm:$0xff]
    %v1112 = vld [vmem:[%s1108 + $0x18] sm:$0xff]
    %v1114 = vsel %vm82, %v1109, 0
    %v1117 = vsel %vm82, %v1110, 0
    %v1120 = vsel %vm82, %v1111, 0
    %v1123 = vsel %vm82, %v1112, 0
    %1125 = vmatpush.msra.mxu0 0.0
    %1126 = vmatpush.msra.mxu0 0.0
    %1127 = vmatpush.msra.mxu0 0.0
    %1128 = vmatpush.msra.mxu0 0.0
    %1129 = vmatpush.msra.mxu0 0.0
    %1130 = vmatpush.msra.mxu0 0.0
    %1131 = vmatpush.msra.mxu0 0.0
    %1132 = vmatpush.msra.mxu0 0.0
    %1133 = vmatpush.msra.mxu0 0.0
    %1134 = vmatpush.msra.mxu0 0.0
    %1135 = vmatpush.msra.mxu0 0.0
    %1136 = vmatpush.msra.mxu0 0.0
    %1137 = vmatpush.msra.mxu0 0.0
    %1138 = vmatpush.msra.mxu0 0.0
    %1139 = vmatpush.msra.mxu0 0.0
    %1140 = vmatpush.msra.mxu0 %v1107
    %1141 = vmatmul.f32.gmra.mxu0 %v1114
    %v1142 = vpop.f32.mrf.mxu0
    %v1143 = vadd.f32 0.0, %v1142
    %1144 = vmatmul.f32.gmra.mxu0 %v1117
    %v1145 = vpop.f32.mrf.mxu0
    %v1146 = vadd.f32 0.0, %v1145
    %1147 = vmatmul.f32.gmra.mxu0 %v1120
    %v1148 = vpop.f32.mrf.mxu0
    %v1149 = vadd.f32 0.0, %v1148
    %1150 = vmatmul.f32.gmra.mxu0 %v1123
    %v1151 = vpop.f32.mrf.mxu0
    %v1152 = vadd.f32 0.0, %v1151
    %1153 = vdwg.mxu0
    %s1154 = scalar_lea.vmem %s2, 96
    %v1155 = vld [vmem:[%s1154] sm:$0xff]
    %vm1156 = vcmp.eq.s32.totalorder %v1098, 1
    %v1157 = vsel %vm1156, 1, 0
    %v1158 = vperm.slane %v1157, 0
    %vm1159 = vcmp.eq.s32.totalorder %v1158, 1
    %v1160 = vsel %vm1159, %v1146, %v1143
    %v1161 = vld [vmem:[%s1154 + $0x8] sm:$0xff]
    %1163 = vset.pattern.permute.xlu0 0
    %1164 = vperm.xlu0 %1163, %v1161
    %v1165 = vpop.permute.xlu0 %1164
    %1168 = vset.pattern.permute.xlu0 0
    %1169 = vperm.xlu0 %1168, %v1155
    %v1170 = vpop.permute.xlu0 %1169
    %v1172 = vsel %vm1159, %v1165, %v1170
    %vm1173 = vcmp.eq.s32.totalorder %v1098, 2
    %v1174 = vsel %vm1173, 1, 0
    %v1175 = vperm.slane %v1174, 0
    %vm1176 = vcmp.eq.s32.totalorder %v1175, 1
    %v1177 = vsel %vm1176, %v1149, %v1160
    %v1178 = vld [vmem:[%s1154 + $0x10] sm:$0xff]
    %1180 = vset.pattern.permute.xlu0 0
    %1181 = vperm.xlu0 %1180, %v1178
    %v1182 = vpop.permute.xlu0 %1181
    %v1184 = vsel %vm1176, %v1182, %v1172
    %vm1185 = vcmp.eq.s32.totalorder %v1098, 3
    %v1186 = vsel %vm1185, 1, 0
    %v1187 = vperm.slane %v1186, 0
    %vm1188 = vcmp.eq.s32.totalorder %v1187, 1
    %v1189 = vsel %vm1188, %v1152, %v1177
    %v1190 = vld [vmem:[%s1154 + $0x18] sm:$0xff]
    %1192 = vset.pattern.permute.xlu0 0
    %1193 = vperm.xlu0 %1192, %v1190
    %v1194 = vpop.permute.xlu0 %1193
    %v1196 = vsel %vm1188, %v1194, %v1184
    %v1197 = vlog2.pop %v1189
    %v1198 = vmul.f32 %v1197, 0.6931472
    %v1199 = vadd.f32 %v1198, %v1196
    %v1200 = vadd.f32 %v1199, %v1104
    %v1201 = vld [vmem:[%s0 + $0x3] sm:$0x1]
    %v1202 = vrot.slane %v1200, 4
    %v1203 = vmax.f32 %v1200, %v1202
    %v1204 = vrot.slane %v1203, 2
    %v1205 = vmax.f32 %v1203, %v1204
    %v1206 = vrot.slane %v1205, 1
    %v1207 = vmax.f32 %v1205, %v1206
    %v1208 = vsub.f32 %v1200, %v1207
    %v1209 = vmul.f32 %v1208, 1.442695
    %v1210 = vpow.pop %v1209
    %s1211 = scalar_lea.vmem %s1, 64
    %v1212 = vld [vmem:[%s1211] sm:$0xff]
    %v1213 = vld [vmem:[%s1211 + $0x8] sm:$0xff]
    %v1214 = vld [vmem:[%s1211 + $0x10] sm:$0xff]
    %v1215 = vld [vmem:[%s1211 + $0x18] sm:$0xff]
    %v1217 = vsel %vm82, %v1212, 0
    %v1220 = vsel %vm82, %v1213, 0
    %v1223 = vsel %vm82, %v1214, 0
    %v1226 = vsel %vm82, %v1215, 0
    %1228 = vmatpush.msra.mxu0 0.0
    %1229 = vmatpush.msra.mxu0 0.0
    %1230 = vmatpush.msra.mxu0 0.0
    %1231 = vmatpush.msra.mxu0 0.0
    %1232 = vmatpush.msra.mxu0 0.0
    %1233 = vmatpush.msra.mxu0 0.0
    %1234 = vmatpush.msra.mxu0 0.0
    %1235 = vmatpush.msra.mxu0 0.0
    %1236 = vmatpush.msra.mxu0 0.0
    %1237 = vmatpush.msra.mxu0 0.0
    %1238 = vmatpush.msra.mxu0 0.0
    %1239 = vmatpush.msra.mxu0 0.0
    %1240 = vmatpush.msra.mxu0 0.0
    %1241 = vmatpush.msra.mxu0 0.0
    %1242 = vmatpush.msra.mxu0 0.0
    %1243 = vmatpush.msra.mxu0 %v1210
    %1244 = vmatmul.f32.gmra.mxu0 %v1217
    %v1245 = vpop.f32.mrf.mxu0
    %v1246 = vadd.f32 0.0, %v1245
    %1247 = vmatmul.f32.gmra.mxu0 %v1220
    %v1248 = vpop.f32.mrf.mxu0
    %v1249 = vadd.f32 0.0, %v1248
    %1250 = vmatmul.f32.gmra.mxu0 %v1223
    %v1251 = vpop.f32.mrf.mxu0
    %v1252 = vadd.f32 0.0, %v1251
    %1253 = vmatmul.f32.gmra.mxu0 %v1226
    %v1254 = vpop.f32.mrf.mxu0
    %v1255 = vadd.f32 0.0, %v1254
    %1256 = vdwg.mxu0
    %s1257 = scalar_lea.vmem %s2, 64
    %v1258 = vld [vmem:[%s1257] sm:$0xff]
    %vm1259 = vcmp.eq.s32.totalorder %v1201, 1
    %v1260 = vsel %vm1259, 1, 0
    %v1261 = vperm.slane %v1260, 0
    %vm1262 = vcmp.eq.s32.totalorder %v1261, 1
    %v1263 = vsel %vm1262, %v1249, %v1246
    %v1264 = vld [vmem:[%s1257 + $0x8] sm:$0xff]
    %1266 = vset.pattern.permute.xlu0 0
    %1267 = vperm.xlu0 %1266, %v1264
    %v1268 = vpop.permute.xlu0 %1267
    %1271 = vset.pattern.permute.xlu0 0
    %1272 = vperm.xlu0 %1271, %v1258
    %v1273 = vpop.permute.xlu0 %1272
    %v1275 = vsel %vm1262, %v1268, %v1273
    %vm1276 = vcmp.eq.s32.totalorder %v1201, 2
    %v1277 = vsel %vm1276, 1, 0
    %v1278 = vperm.slane %v1277, 0
    %vm1279 = vcmp.eq.s32.totalorder %v1278, 1
    %v1280 = vsel %vm1279, %v1252, %v1263
    %v1281 = vld [vmem:[%s1257 + $0x10] sm:$0xff]
    %1283 = vset.pattern.permute.xlu0 0
    %1284 = vperm.xlu0 %1283, %v1281
    %v1285 = vpop.permute.xlu0 %1284
    %v1287 = vsel %vm1279, %v1285, %v1275
    %vm1288 = vcmp.eq.s32.totalorder %v1201, 3
    %v1289 = vsel %vm1288, 1, 0
    %v1290 = vperm.slane %v1289, 0
    %vm1291 = vcmp.eq.s32.totalorder %v1290, 1
    %v1292 = vsel %vm1291, %v1255, %v1280
    %v1293 = vld [vmem:[%s1257 + $0x18] sm:$0xff]
    %1295 = vset.pattern.permute.xlu0 0
    %1296 = vperm.xlu0 %1295, %v1293
    %v1297 = vpop.permute.xlu0 %1296
    %v1299 = vsel %vm1291, %v1297, %v1287
    %v1300 = vlog2.pop %v1292
    %v1301 = vmul.f32 %v1300, 0.6931472
    %v1302 = vadd.f32 %v1301, %v1299
    %v1303 = vadd.f32 %v1302, %v1207
    %v1304 = vld [vmem:[%s0 + $0x2] sm:$0x1]
    %v1305 = vrot.slane %v1303, 4
    %v1306 = vmax.f32 %v1303, %v1305
    %v1307 = vrot.slane %v1306, 2
    %v1308 = vmax.f32 %v1306, %v1307
    %v1309 = vrot.slane %v1308, 1
    %v1310 = vmax.f32 %v1308, %v1309
    %v1311 = vsub.f32 %v1303, %v1310
    %v1312 = vmul.f32 %v1311, 1.442695
    %v1313 = vpow.pop %v1312
    %s1314 = scalar_lea.vmem %s1, 32
    %v1315 = vld [vmem:[%s1314] sm:$0xff]
    %v1316 = vld [vmem:[%s1314 + $0x8] sm:$0xff]
    %v1317 = vld [vmem:[%s1314 + $0x10] sm:$0xff]
    %v1318 = vld [vmem:[%s1314 + $0x18] sm:$0xff]
    %v1320 = vsel %vm82, %v1315, 0
    %v1323 = vsel %vm82, %v1316, 0
    %v1326 = vsel %vm82, %v1317, 0
    %v1329 = vsel %vm82, %v1318, 0
    %1331 = vmatpush.msra.mxu0 0.0
    %1332 = vmatpush.msra.mxu0 0.0
    %1333 = vmatpush.msra.mxu0 0.0
    %1334 = vmatpush.msra.mxu0 0.0
    %1335 = vmatpush.msra.mxu0 0.0
    %1336 = vmatpush.msra.mxu0 0.0
    %1337 = vmatpush.msra.mxu0 0.0
    %1338 = vmatpush.msra.mxu0 0.0
    %1339 = vmatpush.msra.mxu0 0.0
    %1340 = vmatpush.msra.mxu0 0.0
    %1341 = vmatpush.msra.mxu0 0.0
    %1342 = vmatpush.msra.mxu0 0.0
    %1343 = vmatpush.msra.mxu0 0.0
    %1344 = vmatpush.msra.mxu0 0.0
    %1345 = vmatpush.msra.mxu0 0.0
    %1346 = vmatpush.msra.mxu0 %v1313
    %1347 = vmatmul.f32.gmra.mxu0 %v1320
    %v1348 = vpop.f32.mrf.mxu0
    %v1349 = vadd.f32 0.0, %v1348
    %1350 = vmatmul.f32.gmra.mxu0 %v1323
    %v1351 = vpop.f32.mrf.mxu0
    %v1352 = vadd.f32 0.0, %v1351
    %1353 = vmatmul.f32.gmra.mxu0 %v1326
    %v1354 = vpop.f32.mrf.mxu0
    %v1355 = vadd.f32 0.0, %v1354
    %1356 = vmatmul.f32.gmra.mxu0 %v1329
    %v1357 = vpop.f32.mrf.mxu0
    %v1358 = vadd.f32 0.0, %v1357
    %1359 = vdwg.mxu0
    %s1360 = scalar_lea.vmem %s2, 32
    %v1361 = vld [vmem:[%s1360] sm:$0xff]
    %vm1362 = vcmp.eq.s32.totalorder %v1304, 1
    %v1363 = vsel %vm1362, 1, 0
    %v1364 = vperm.slane %v1363, 0
    %vm1365 = vcmp.eq.s32.totalorder %v1364, 1
    %v1366 = vsel %vm1365, %v1352, %v1349
    %v1367 = vld [vmem:[%s1360 + $0x8] sm:$0xff]
    %1369 = vset.pattern.permute.xlu0 0
    %1370 = vperm.xlu0 %1369, %v1367
    %v1371 = vpop.permute.xlu0 %1370
    %1374 = vset.pattern.permute.xlu0 0
    %1375 = vperm.xlu0 %1374, %v1361
    %v1376 = vpop.permute.xlu0 %1375
    %v1378 = vsel %vm1365, %v1371, %v1376
    %vm1379 = vcmp.eq.s32.totalorder %v1304, 2
    %v1380 = vsel %vm1379, 1, 0
    %v1381 = vperm.slane %v1380, 0
    %vm1382 = vcmp.eq.s32.totalorder %v1381, 1
    %v1383 = vsel %vm1382, %v1355, %v1366
    %v1384 = vld [vmem:[%s1360 + $0x10] sm:$0xff]
    %1386 = vset.pattern.permute.xlu0 0
    %1387 = vperm.xlu0 %1386, %v1384
    %v1388 = vpop.permute.xlu0 %1387
    %v1390 = vsel %vm1382, %v1388, %v1378
    %vm1391 = vcmp.eq.s32.totalorder %v1304, 3
    %v1392 = vsel %vm1391, 1, 0
    %v1393 = vperm.slane %v1392, 0
    %vm1394 = vcmp.eq.s32.totalorder %v1393, 1
    %v1395 = vsel %vm1394, %v1358, %v1383
    %v1396 = vld [vmem:[%s1360 + $0x18] sm:$0xff]
    %1398 = vset.pattern.permute.xlu0 0
    %1399 = vperm.xlu0 %1398, %v1396
    %v1400 = vpop.permute.xlu0 %1399
    %v1402 = vsel %vm1394, %v1400, %v1390
    %v1403 = vlog2.pop %v1395
    %v1404 = vmul.f32 %v1403, 0.6931472
    %v1405 = vadd.f32 %v1404, %v1402
    %v1406 = vadd.f32 %v1405, %v1310
    %v1407 = vld [vmem:[%s0 + $0x1] sm:$0x1]
    %v1408 = vrot.slane %v1406, 4
    %v1409 = vmax.f32 %v1406, %v1408
    %v1410 = vrot.slane %v1409, 2
    %v1411 = vmax.f32 %v1409, %v1410
    %v1412 = vrot.slane %v1411, 1
    %v1413 = vmax.f32 %v1411, %v1412
    %v1414 = vsub.f32 %v1406, %v1413
    %v1415 = vmul.f32 %v1414, 1.442695
    %v1416 = vpow.pop %v1415
    %v1417 = vld [vmem:[%s1] sm:$0xff]
    %v1418 = vld [vmem:[%s1 + $0x8] sm:$0xff]
    %v1419 = vld [vmem:[%s1 + $0x10] sm:$0xff]
    %v1420 = vld [vmem:[%s1 + $0x18] sm:$0xff]
    %v1422 = vsel %vm82, %v1417, 0
    %v1425 = vsel %vm82, %v1418, 0
    %v1428 = vsel %vm82, %v1419, 0
    %v1431 = vsel %vm82, %v1420, 0
    %1433 = vmatpush.msra.mxu0 0.0
    %1434 = vmatpush.msra.mxu0 0.0
    %1435 = vmatpush.msra.mxu0 0.0
    %1436 = vmatpush.msra.mxu0 0.0
    %1437 = vmatpush.msra.mxu0 0.0
    %1438 = vmatpush.msra.mxu0 0.0
    %1439 = vmatpush.msra.mxu0 0.0
    %1440 = vmatpush.msra.mxu0 0.0
    %1441 = vmatpush.msra.mxu0 0.0
    %1442 = vmatpush.msra.mxu0 0.0
    %1443 = vmatpush.msra.mxu0 0.0
    %1444 = vmatpush.msra.mxu0 0.0
    %1445 = vmatpush.msra.mxu0 0.0
    %1446 = vmatpush.msra.mxu0 0.0
    %1447 = vmatpush.msra.mxu0 0.0
    %1448 = vmatpush.msra.mxu0 %v1416
    %1449 = vmatmul.f32.gmra.mxu0 %v1422
    %v1450 = vpop.f32.mrf.mxu0
    %v1451 = vadd.f32 0.0, %v1450
    %1452 = vmatmul.f32.gmra.mxu0 %v1425
    %v1453 = vpop.f32.mrf.mxu0
    %v1454 = vadd.f32 0.0, %v1453
    %1455 = vmatmul.f32.gmra.mxu0 %v1428
    %v1456 = vpop.f32.mrf.mxu0
    %v1457 = vadd.f32 0.0, %v1456
    %1458 = vmatmul.f32.gmra.mxu0 %v1431
    %v1459 = vpop.f32.mrf.mxu0
    %v1460 = vadd.f32 0.0, %v1459
    %1461 = vdwg.mxu0
    %v1462 = vld [vmem:[%s2] sm:$0xff]
    %vm1463 = vcmp.eq.s32.totalorder %v1407, 1
    %v1464 = vsel %vm1463, 1, 0
    %v1465 = vperm.slane %v1464, 0
    %vm1466 = vcmp.eq.s32.totalorder %v1465, 1
    %v1467 = vsel %vm1466, %v1454, %v1451
    %v1468 = vld [vmem:[%s2 + $0x8] sm:$0xff]
    %1470 = vset.pattern.permute.xlu0 0
    %1471 = vperm.xlu0 %1470, %v1468
    %v1472 = vpop.permute.xlu0 %1471
    %1475 = vset.pattern.permute.xlu0 0
    %1476 = vperm.xlu0 %1475, %v1462
    %v1477 = vpop.permute.xlu0 %1476
    %v1479 = vsel %vm1466, %v1472, %v1477
    %vm1480 = vcmp.eq.s32.totalorder %v1407, 2
    %v1481 = vsel %vm1480, 1, 0
    %v1482 = vperm.slane %v1481, 0
    %vm1483 = vcmp.eq.s32.totalorder %v1482, 1
    %v1484 = vsel %vm1483, %v1457, %v1467
    %v1485 = vld [vmem:[%s2 + $0x10] sm:$0xff]
    %1487 = vset.pattern.permute.xlu0 0
    %1488 = vperm.xlu0 %1487, %v1485
    %v1489 = vpop.permute.xlu0 %1488
    %v1491 = vsel %vm1483, %v1489, %v1479
    %vm1492 = vcmp.eq.s32.totalorder %v1407, 3
    %v1493 = vsel %vm1492, 1, 0
    %v1494 = vperm.slane %v1493, 0
    %vm1495 = vcmp.eq.s32.totalorder %v1494, 1
    %v1496 = vsel %vm1495, %v1460, %v1484
    %v1497 = vld [vmem:[%s2 + $0x18] sm:$0xff]
    %1499 = vset.pattern.permute.xlu0 0
    %1500 = vperm.xlu0 %1499, %v1497
    %v1501 = vpop.permute.xlu0 %1500
    %v1503 = vsel %vm1495, %v1501, %v1491
    %v1504 = vlog2.pop %v1496
    %v1505 = vmul.f32 %v1504, 0.6931472
    %v1506 = vadd.f32 %v1505, %v1503
    %v1507 = vadd.f32 %v1506, %v1413
    %v1508 = vrot.slane %v1507, 4
    %v1509 = vmax.f32 %v1507, %v1508
    %v1510 = vrot.slane %v1509, 2
    %v1511 = vmax.f32 %v1509, %v1510
    %v1512 = vrot.slane %v1511, 1
    %v1513 = vmax.f32 %v1511, %v1512
    %v1514 = vsub.f32 %v1507, %v1513
    %v1515 = vmul.f32 %v1514, 1.442695
    %v1516 = vpow.pop %v1515
    %v1517 = vld [vmem:[%s3] sm:$0xff]
    %v1519 = vsel %vm82, %v1517, 0
    %1521 = vmatpush.msra.mxu0 0.0
    %1522 = vmatpush.msra.mxu0 0.0
    %1523 = vmatpush.msra.mxu0 0.0
    %1524 = vmatpush.msra.mxu0 0.0
    %1525 = vmatpush.msra.mxu0 0.0
    %1526 = vmatpush.msra.mxu0 0.0
    %1527 = vmatpush.msra.mxu0 0.0
    %1528 = vmatpush.msra.mxu0 0.0
    %1529 = vmatpush.msra.mxu0 0.0
    %1530 = vmatpush.msra.mxu0 0.0
    %1531 = vmatpush.msra.mxu0 0.0
    %1532 = vmatpush.msra.mxu0 0.0
    %1533 = vmatpush.msra.mxu0 0.0
    %1534 = vmatpush.msra.mxu0 0.0
    %1535 = vmatpush.msra.mxu0 0.0
    %1536 = vmatpush.msra.mxu0 %v1516
    %1537 = vmatmul.f32.gmra.mxu0 %v1519
    %v1538 = vpop.f32.mrf.mxu0
    %v1539 = vadd.f32 0.0, %v1538
    %1540 = vdwg.mxu0
    %v1541 = vld [vmem:[%s0] sm:$0x1]
    %v1542 = vld [vmem:[%s4] sm:$0x1]
    %vm1543 = vcmp.eq.s32.totalorder %v1541, 1
    %v1545 = vrot.slane %v1539, 1
    %v1547 = vsel %vm1543, %v1545, %v1539
    %v1548 = vld [vmem:[%s4 + $0x1] sm:$0x1]
    %1550 = vset.pattern.permute.xlu0 0
    %1551 = vperm.xlu0 %1550, %v1548
    %v1552 = vpop.permute.xlu0 %1551
    %1555 = vset.pattern.permute.xlu0 0
    %1556 = vperm.xlu0 %1555, %v1542
    %v1557 = vpop.permute.xlu0 %1556
    %v1559 = vsel %vm1543, %v1552, %v1557
    %vm1560 = vcmp.eq.s32.totalorder %v1541, 2
    %v1561 = vrot.slane %v1539, 2
    %v1563 = vsel %vm1560, %v1561, %v1547
    %v1564 = vld [vmem:[%s4 + $0x2] sm:$0x1]
    %1566 = vset.pattern.permute.xlu0 0
    %1567 = vperm.xlu0 %1566, %v1564
    %v1568 = vpop.permute.xlu0 %1567
    %v1570 = vsel %vm1560, %v1568, %v1559
    %vm1571 = vcmp.eq.s32.totalorder %v1541, 3
    %v1572 = vrot.slane %v1539, 3
    %v1574 = vsel %vm1571, %v1572, %v1563
    %v1575 = vld [vmem:[%s4 + $0x3] sm:$0x1]
    %1577 = vset.pattern.permute.xlu0 0
    %1578 = vperm.xlu0 %1577, %v1575
    %v1579 = vpop.permute.xlu0 %1578
    %v1581 = vsel %vm1571, %v1579, %v1570
    %v1582 = vlog2.pop %v1574
    %v1583 = vmul.f32 %v1582, 0.6931472
    %v1584 = vadd.f32 %v1583, %v1581
    %v1585 = vadd.f32 %v1584, %v1513
    %1586 = vst [vmem:[#allocation2] sm:$0x1] %v1585
    // Predicated region
    $region26: #{tpu_custom_call.1} parent=1 // pred_check
      _
    $region27: #{tpu_custom_call.1} parent=1 // pred_check_branch
      %1588 = sbr.rel (0) target = $region29
    $region28: #{tpu_custom_call.1} parent=1 // pred_region
      %1590 = vsyncadd [#allocation3], 0
      %s1592 = sshll.u32 [#allocation2], 4
      %s1593 = int_to_ptr.vmem [resolvable:$true] %s1592
      %s1594 = sshll.u32 %s6, 4
      %s1595 = int_to_ptr.hbm [resolvable:$true] %s1594
      %1597 = dma.vmem_to_hbm [thread:$0]  %s1593, 16, %s1595, [#allocation3]
    $region29: #{tpu_custom_call.1} parent=1 // pred_fallthru
      _
    // Predicated region
    $region30: #{tpu_custom_call.1} parent=1 // pred_check
      _
    $region31: #{tpu_custom_call.1} parent=1 // pred_check_branch
      %1599 = sbr.rel (0) target = $region33
    $region32: #{tpu_custom_call.1} parent=1 // pred_region
      %1601 = dma.done [#allocation3], 16
    $region33: #{tpu_custom_call.1} parent=1 // pred_fallthru
      _
    %1602 = vsyncpa [#allocation3], 1

</llo_original>
